<compile_context>
chip_gen: v7x
topology: tpu7x:2x2x1
jax: 0.10.0
libtpu: 0.0.40
codegen_flags: <defaults>
</compile_context>

<pallas_src>
import functools

import jax
import jax.numpy as jnp
from jax.experimental import pallas as pl
from jax.experimental.pallas import tpu as pltpu


def hrr_attn_kernel(x_ref, proj_ref, inv_ref, tril_ref, out_ref, carry_ref,
                    *, nc, fp, compute_dtype):
    f32 = jnp.float32
    t_idx = pl.program_id(1)

    # Reset the causal running-sum carry at the start of each batch element's time
    # sweep (grid = (batch, time); time is the sequential "arbitrary" axis).
    @pl.when(t_idx == 0)
    def _():
        carry_ref[...] = jnp.zeros_like(carry_ref)

    xb = x_ref[0].astype(compute_dtype)                       # (TT, D)
    tt = xb.shape[0]
    w = nc * fp                                               # lane width of one re/im slab

    # One wide projection matmul produces every frequency-domain slab at once:
    #   columns = [Q_re (all copies) | Q_im | K_re | K_im | V_re | V_im]
    # (Wq/Wk/Wv and the per-copy bin permutations are folded into proj on the host.)
    slab = jnp.dot(xb, proj_ref[...], preferred_element_type=f32)   # (TT, 4w + 2fp)

    q_re = slab[:, 0 * w:1 * w]
    q_im = slab[:, 1 * w:2 * w]
    k_re = slab[:, 2 * w:3 * w]
    k_im = slab[:, 3 * w:4 * w]
    v_re = slab[:, 4 * w:4 * w + fp]
    v_im = slab[:, 4 * w + fp:4 * w + 2 * fp]

    # V is shared across copies: replicate along lanes (cheap, lane-aligned copies).
    v_re = jnp.concatenate([v_re] * nc, axis=-1)              # (TT, w)
    v_im = jnp.concatenate([v_im] * nc, axis=-1)

    # HRR binding in frequency space: KV = K_perm * V (complex multiply), all copies.
    kv_re = k_re * v_re - k_im * v_im
    kv_im = k_re * v_im + k_im * v_re
    kv = jnp.concatenate([kv_re, kv_im], axis=-1).astype(compute_dtype)   # (TT, 2w)

    # Causal cumulative sum over time = in-tile prefix sum (lower-triangular matmul
    # on the MXU, f32 accumulate) + carry of everything before this tile.
    s = jnp.dot(tril_ref[...], kv, preferred_element_type=f32) + carry_ref[...]
    # The last row of s already equals the new carry (no extra XLU reduction).
    carry_ref[...] = s[tt - 1:tt, :]

    s_re = s[:, :w]
    s_im = s[:, w:]

    # HRR unbinding / retrieval: R = conj(Q_perm) * S.
    r_re = q_re * s_re + q_im * s_im
    r_im = q_re * s_im - q_im * s_re
    r = jnp.concatenate([r_re, r_im], axis=-1).astype(compute_dtype)      # (TT, 2w)

    # inv folds: mean over copies + irfft (inverse DFT) + output projection Wo.
    out = jnp.dot(r, inv_ref[...], preferred_element_type=f32)            # (TT, D)
    out_ref[0] = out.astype(out_ref.dtype)


def redundant_hrr_self_attention(x, wq, wk, wv, wo, perms, *, tile_t=None,
                                 compute_dtype=jnp.bfloat16):
    """x: (B,T,D); wq/wk/wv/wo: (D,D) applied as x @ W; perms: (NC, D//2+1) int."""
    B, T, D = x.shape
    NC, F = perms.shape
    assert F == D // 2 + 1, "perm_freq=True: permutations index rfft bins"

    if tile_t is None:
        tile_t = T if T <= 256 else 256            # 256 fills the v6e/v7x MXU M dim
    sub = 16 if x.dtype == jnp.bfloat16 else 8     # bf16 packs 2 rows per sublane
    assert T % tile_t == 0 and (tile_t % sub == 0 or tile_t == T)
    nT = T // tile_t

    # Lane-dense frequency axis: zero-pad the F = D//2+1 rfft bins up to a multiple
    # of 128 (padded bins contribute exactly zero everywhere).
    Fp = ((F + 127) // 128) * 128
    W = NC * Fp

    f32 = jnp.float32
    # ---- Host-side, parameter-only precompute --------------------------------
    n = jnp.arange(D, dtype=f32)[:, None]
    j = jnp.arange(F, dtype=f32)[None, :]
    ang = 2.0 * jnp.pi * n * j / D
    Cf = jnp.cos(ang)                              # (D, F) rfft real part
    Sf = -jnp.sin(ang)                             # (D, F) rfft imag part

    pad_c = lambda m: jnp.pad(m, ((0, 0), (0, Fp - F)))
    pad_r = lambda m: jnp.pad(m, ((0, Fp - F), (0, 0)))

    # Per-copy permuted forward DFT with the q/k/v projection weights folded in.
    Cp = jnp.take(Cf, perms, axis=1)               # (D, NC, F)
    Sp = jnp.take(Sf, perms, axis=1)
    q_re_b = [pad_c(wq @ Cp[:, c]) for c in range(NC)]
    q_im_b = [pad_c(wq @ Sp[:, c]) for c in range(NC)]
    k_re_b = [pad_c(wk @ Cp[:, c]) for c in range(NC)]
    k_im_b = [pad_c(wk @ Sp[:, c]) for c in range(NC)]
    v_b = [pad_c(wv @ Cf), pad_c(wv @ Sf)]
    proj = jnp.concatenate(q_re_b + q_im_b + k_re_b + k_im_b + v_b,
                           axis=1).astype(compute_dtype)      # (D, (4NC+2)*Fp)

    # Inverse real-DFT with Wo and the 1/num_copies mean folded in.
    freqs = jnp.arange(F, dtype=f32)
    if D % 2 == 0:
        wgt = jnp.where((freqs == 0) | (freqs == D // 2), 1.0, 2.0)
    else:
        wgt = jnp.where(freqs == 0, 1.0, 2.0)
    ang_i = 2.0 * jnp.pi * freqs[:, None] * jnp.arange(D, dtype=f32)[None, :] / D
    ic_o = ((wgt[:, None] * jnp.cos(ang_i)) / D) @ wo / NC     # (F, D)
    is_o = ((-wgt[:, None] * jnp.sin(ang_i)) / D) @ wo / NC
    inv = jnp.concatenate([pad_r(ic_o)] * NC + [pad_r(is_o)] * NC,
                          axis=0).astype(compute_dtype)        # (2*NC*Fp, D)

    # Lower-triangular ones for the in-tile causal prefix sum (hoisted to a constant).
    tril = jnp.tril(jnp.ones((tile_t, tile_t), f32)).astype(compute_dtype)

    # ---- VMEM budget + advisory cost estimate ---------------------------------
    cb = proj.dtype.itemsize
    const_bytes = (proj.size + inv.size + tril.size) * cb
    io_bytes = 2 * 2 * tile_t * D * x.dtype.itemsize           # x & out, double buffered
    interm_bytes = 8 * tile_t * (4 * NC + 2) * Fp * 4 + 64 * 1024
    demand = 2 * const_bytes + io_bytes + interm_bytes
    try:
        vmem_cap = pltpu.get_tpu_info().vmem_capacity_bytes
    except Exception:
        vmem_cap = 64 * 2 ** 20
    vmem_limit = int(min(max(2 * demand, 32 * 2 ** 20), int(0.75 * vmem_cap)))

    flops = int(B * T * (2 * D * proj.shape[1] + 2 * tile_t * 2 * W
                         + 2 * 2 * W * D + 12 * W))
    # Constants counted once (they stay resident across the whole grid) — advisory only.
    bytes_accessed = int(2 * B * T * D * x.dtype.itemsize + const_bytes)

    kernel = functools.partial(hrr_attn_kernel, nc=NC, fp=Fp,
                               compute_dtype=compute_dtype)
    xmap = lambda b, t: (b, t, 0)
    cmap = lambda b, t: (0, 0)

    def build(const_mode):
        def cspec(shape):
            if const_mode is None:
                return pl.BlockSpec(shape, cmap)
            # Single-buffer the constants so they are not double-allocated in VMEM.
            return pl.BlockSpec(shape, cmap, pipeline_mode=const_mode)
        return pl.pallas_call(
            kernel,
            out_shape=jax.ShapeDtypeStruct((B, T, D), x.dtype),
            grid_spec=pltpu.PrefetchScalarGridSpec(
                num_scalar_prefetch=0,
                grid=(B, nT),
                in_specs=[
                    pl.BlockSpec((1, tile_t, D), xmap),   # x
                    cspec(proj.shape),                    # folded fwd DFT (Wq/Wk/Wv, perms)
                    cspec(inv.shape),                     # folded inv DFT (Wo, 1/NC)
                    cspec(tril.shape),                    # causal prefix-sum matrix
                ],
                out_specs=pl.BlockSpec((1, tile_t, D), xmap),
                scratch_shapes=[pltpu.VMEM((1, 2 * W), jnp.float32)],   # causal carry
            ),
            compiler_params=pltpu.CompilerParams(
                dimension_semantics=("parallel", "arbitrary"),
                vmem_limit_bytes=vmem_limit),
            cost_estimate=pl.CostEstimate(flops=flops, transcendentals=0,
                                          bytes_accessed=bytes_accessed),
        )

    try:
        out = build(pl.Buffered(1))(x, proj, inv, tril)
        return jax.block_until_ready(out)
    except Exception:
        # pipeline_mode=pl.Buffered(1) not supported on this jax/libtpu: fall back
        # to default double-buffered constants (correctness identical).
        return build(None)(x, proj, inv, tril)


def _reference(x, wq, wk, wv, wo, perms):
    """Pure-JAX reference mirroring the PyTorch forward (perm_freq=True, causal=True)."""
    hi = jax.lax.Precision.HIGHEST
    D = x.shape[-1]
    q = jnp.dot(x, wq, precision=hi)
    k = jnp.dot(x, wk, precision=hi)
    v = jnp.dot(x, wv, precision=hi)
    qf = jnp.fft.rfft(q, axis=-1)
    kf = jnp.fft.rfft(k, axis=-1)
    vf = jnp.fft.rfft(v, axis=-1)
    qp = qf[..., perms]                              # (B, T, NC, F)
    kp = kf[..., perms]
    kv = kp * vf[..., None, :]
    s = jnp.cumsum(kv, axis=1)                       # causal over time
    r = jnp.mean(jnp.conj(qp) * s, axis=-2)          # mean over copies
    vh = jnp.fft.irfft(r, n=D, axis=-1)
    return jnp.dot(vh, wo, precision=hi)


if __name__ == "__main__":
    key = jax.random.PRNGKey(0)
    kx, kq, kk, kv_, ko, kp = jax.random.split(key, 6)

    B, T, D, NC = 2, 16, 32, 4
    F = D // 2 + 1
    scale = 1.0 / (D ** 0.5)

    x = jax.random.normal(kx, (B, T, D), dtype=jnp.float32)
    wq = jax.random.normal(kq, (D, D), dtype=jnp.float32) * scale
    wk = jax.random.normal(kk, (D, D), dtype=jnp.float32) * scale
    wv = jax.random.normal(kv_, (D, D), dtype=jnp.float32) * scale
    wo = jax.random.normal(ko, (D, D), dtype=jnp.float32) * scale
    # Same construction as the PyTorch buffer: randn(...).argsort(-1)
    perms = jnp.argsort(jax.random.normal(kp, (NC, F)), axis=-1).astype(jnp.int32)

    out = redundant_hrr_self_attention(x, wq, wk, wv, wo, perms, tile_t=8)
    out = jax.block_until_ready(out)

    ref = _reference(x, wq, wk, wv, wo, perms)
    rel_err = float(jnp.max(jnp.abs(out - ref)) / (jnp.max(jnp.abs(ref)) + 1e-6))
    # bf16 MXU operands (per perf guidance): tolerance covers bf16 rounding through the
    # DFT -> bind -> causal-cumsum -> unbind -> inverse-DFT chain; real bugs (wrong
    # perm / conj / cumsum / Nyquist weight) give O(0.1..1) error and are still caught.
    assert rel_err < 5e-2, rel_err
    print("KERNEL_OK")
</pallas_src>

<mosaic_0001>
module attributes {stable_mosaic.version = 11 : i64} {
  func.func @hrr_attn_kernel(%arg0: i32, %arg1: i32, %arg2: memref<1x8x32xf32, #tpu.memory_space<vmem>>, %arg3: memref<32x2304xbf16, #tpu.memory_space<vmem>>, %arg4: memref<1024x32xbf16, #tpu.memory_space<vmem>>, %arg5: memref<8x8xbf16, #tpu.memory_space<vmem>>, %arg6: memref<1x8x32xf32, #tpu.memory_space<vmem>>, %arg7: memref<1x1024xf32, #tpu.memory_space<vmem>>) attributes {dimension_semantics = [#tpu.dimension_semantics<parallel>, #tpu.dimension_semantics<arbitrary>], iteration_bounds = array<i64: 2, 2>, scalar_prefetch = 0 : i64, scratch_operands = 1 : i64, tpu.core_type = #tpu.core_type<tc>, window_params = [{transform_indices = @transform_0, window_bounds = array<i64: 1, 8, 32>}, {pipeline_mode = #tpu.pipeline_mode<synchronous>, transform_indices = @transform_1, window_bounds = array<i64: 32, 2304>}, {pipeline_mode = #tpu.pipeline_mode<synchronous>, transform_indices = @transform_2, window_bounds = array<i64: 1024, 32>}, {pipeline_mode = #tpu.pipeline_mode<synchronous>, transform_indices = @transform_3, window_bounds = array<i64: 8, 8>}, {transform_indices = @transform_4, window_bounds = array<i64: 1, 8, 32>}]} {
    %c0_i32 = arith.constant 0 : i32
    %0 = arith.cmpi eq, %arg1, %c0_i32 : i32
    %1 = arith.extui %0 : i1 to i32
    %c0_i32_0 = arith.constant 0 : i32
    %2 = arith.cmpi ne, %1, %c0_i32_0 : i32
    scf.if %2 {
      %cst_18 = arith.constant 0.000000e+00 : f32
      %46 = vector.broadcast %cst_18 : f32 to vector<1x1024xf32>
      %c0_19 = arith.constant 0 : index
      %c0_20 = arith.constant 0 : index
      %47 = vector.load %arg7[%c0_19, %c0_20] : memref<1x1024xf32, #tpu.memory_space<vmem>>, vector<1x1024xf32>
      tpu.vector_store %arg7[%c0_19, %c0_20], %46 {strides = array<i32>} : memref<1x1024xf32, #tpu.memory_space<vmem>>, vector<1x1024xf32>,
    } else {
    }
    %c0 = arith.constant 0 : index
    %c0_1 = arith.constant 0 : index
    %c0_2 = arith.constant 0 : index
    %3 = vector.load %arg2[%c0, %c0_1, %c0_2] : memref<1x8x32xf32, #tpu.memory_space<vmem>>, vector<1x8x32xf32>
    %4 = vector.shape_cast %3 : vector<1x8x32xf32> to vector<8x32xf32>
    %5 = arith.truncf %4 : vector<8x32xf32> to vector<8x32xbf16>
    %c0_3 = arith.constant 0 : index
    %c0_4 = arith.constant 0 : index
    %6 = vector.load %arg3[%c0_3, %c0_4] : memref<32x2304xbf16, #tpu.memory_space<vmem>>, vector<32x2304xbf16>
    %cst = arith.constant dense<0.000000e+00> : vector<8x2304xf32>
    %7 = tpu.matmul %5, %6, %cst {dimension_numbers = #tpu.dot_dimension_numbers<[1], [0], [0], [1], [0, 0, 1, 1], [], []>} : vector<8x32xbf16>, vector<32x2304xbf16>, vector<8x2304xf32> -> vector<8x2304xf32>
    %8 = vector.extract_strided_slice %7 {offsets = [0, 0], sizes = [8, 512], strides = [1, 1]} : vector<8x2304xf32> to vector<8x512xf32>
    %9 = vector.extract_strided_slice %7 {offsets = [0, 512], sizes = [8, 512], strides = [1, 1]} : vector<8x2304xf32> to vector<8x512xf32>
    %10 = vector.extract_strided_slice %7 {offsets = [0, 1024], sizes = [8, 512], strides = [1, 1]} : vector<8x2304xf32> to vector<8x512xf32>
    %11 = vector.extract_strided_slice %7 {offsets = [0, 1536], sizes = [8, 512], strides = [1, 1]} : vector<8x2304xf32> to vector<8x512xf32>
    %12 = vector.extract_strided_slice %7 {offsets = [0, 2048], sizes = [8, 128], strides = [1, 1]} : vector<8x2304xf32> to vector<8x128xf32>
    %13 = vector.extract_strided_slice %7 {offsets = [0, 2176], sizes = [8, 128], strides = [1, 1]} : vector<8x2304xf32> to vector<8x128xf32>
    %14 = tpu.concatenate %12, %12, %12, %12 in 1 : vector<8x128xf32>, vector<8x128xf32>, vector<8x128xf32>, vector<8x128xf32> -> vector<8x512xf32>
    %15 = tpu.concatenate %13, %13, %13, %13 in 1 : vector<8x128xf32>, vector<8x128xf32>, vector<8x128xf32>, vector<8x128xf32> -> vector<8x512xf32>
    %16 = arith.mulf %10, %14 : vector<8x512xf32>
    %17 = arith.mulf %11, %15 : vector<8x512xf32>
    %18 = arith.subf %16, %17 : vector<8x512xf32>
    %19 = arith.mulf %10, %15 : vector<8x512xf32>
    %20 = arith.mulf %11, %14 : vector<8x512xf32>
    %21 = arith.addf %19, %20 : vector<8x512xf32>
    %22 = tpu.concatenate %18, %21 in 1 : vector<8x512xf32>, vector<8x512xf32> -> vector<8x1024xf32>
    %23 = arith.truncf %22 : vector<8x1024xf32> to vector<8x1024xbf16>
    %c0_5 = arith.constant 0 : index
    %c0_6 = arith.constant 0 : index
    %24 = vector.load %arg5[%c0_5, %c0_6] : memref<8x8xbf16, #tpu.memory_space<vmem>>, vector<8x8xbf16>
    %cst_7 = arith.constant dense<0.000000e+00> : vector<8x1024xf32>
    %25 = tpu.matmul %24, %23, %cst_7 {dimension_numbers = #tpu.dot_dimension_numbers<[1], [0], [0], [1], [0, 0, 1, 1], [], []>} : vector<8x8xbf16>, vector<8x1024xbf16>, vector<8x1024xf32> -> vector<8x1024xf32>
    %c0_8 = arith.constant 0 : index
    %c0_9 = arith.constant 0 : index
    %26 = vector.load %arg7[%c0_8, %c0_9] : memref<1x1024xf32, #tpu.memory_space<vmem>>, vector<1x1024xf32>
    %27 = vector.broadcast %26 : vector<1x1024xf32> to vector<8x1024xf32>
    %28 = arith.addf %25, %27 : vector<8x1024xf32>
    %29 = vector.extract_strided_slice %28 {offsets = [7, 0], sizes = [1, 1024], strides = [1, 1]} : vector<8x1024xf32> to vector<1x1024xf32>
    %c0_10 = arith.constant 0 : index
    %c0_11 = arith.constant 0 : index
    %30 = vector.load %arg7[%c0_10, %c0_11] : memref<1x1024xf32, #tpu.memory_space<vmem>>, vector<1x1024xf32>
    tpu.vector_store %arg7[%c0_10, %c0_11], %29 {strides = array<i32>} : memref<1x1024xf32, #tpu.memory_space<vmem>>, vector<1x1024xf32>,
    %31 = vector.extract_strided_slice %28 {offsets = [0, 0], sizes = [8, 512], strides = [1, 1]} : vector<8x1024xf32> to vector<8x512xf32>
    %32 = vector.extract_strided_slice %28 {offsets = [0, 512], sizes = [8, 512], strides = [1, 1]} : vector<8x1024xf32> to vector<8x512xf32>
    %33 = arith.mulf %8, %31 : vector<8x512xf32>
    %34 = arith.mulf %9, %32 : vector<8x512xf32>
    %35 = arith.addf %33, %34 : vector<8x512xf32>
    %36 = arith.mulf %8, %32 : vector<8x512xf32>
    %37 = arith.mulf %9, %31 : vector<8x512xf32>
    %38 = arith.subf %36, %37 : vector<8x512xf32>
    %39 = tpu.concatenate %35, %38 in 1 : vector<8x512xf32>, vector<8x512xf32> -> vector<8x1024xf32>
    %40 = arith.truncf %39 : vector<8x1024xf32> to vector<8x1024xbf16>
    %c0_12 = arith.constant 0 : index
    %c0_13 = arith.constant 0 : index
    %41 = vector.load %arg4[%c0_12, %c0_13] : memref<1024x32xbf16, #tpu.memory_space<vmem>>, vector<1024x32xbf16>
    %cst_14 = arith.constant dense<0.000000e+00> : vector<8x32xf32>
    %42 = tpu.matmul %40, %41, %cst_14 {dimension_numbers = #tpu.dot_dimension_numbers<[1], [0], [0], [1], [0, 0, 1, 1], [], []>} : vector<8x1024xbf16>, vector<1024x32xbf16>, vector<8x32xf32> -> vector<8x32xf32>
    %c0_15 = arith.constant 0 : index
    %c0_16 = arith.constant 0 : index
    %c0_17 = arith.constant 0 : index
    %43 = vector.load %arg6[%c0_15, %c0_16, %c0_17] : memref<1x8x32xf32, #tpu.memory_space<vmem>>, vector<1x8x32xf32>
    %44 = vector.shape_cast %43 : vector<1x8x32xf32> to vector<8x32xf32>
    %45 = vector.shape_cast %42 : vector<8x32xf32> to vector<1x8x32xf32>
    tpu.vector_store %arg6[%c0_15, %c0_16, %c0_17], %45 {strides = array<i32>} : memref<1x8x32xf32, #tpu.memory_space<vmem>>, vector<1x8x32xf32>,
    return
  }
  func.func @transform_0(%arg0: i32, %arg1: i32) -> (i32, i32, i32) {
    %c0_i32 = arith.constant 0 : i32
    %c0_i32_0 = arith.constant 0 : i32
    return %arg0, %arg1, %c0_i32 : i32, i32, i32
  }
  func.func @transform_1(%arg0: i32, %arg1: i32) -> (i32, i32) {
    %c0_i32 = arith.constant 0 : i32
    %c0_i32_0 = arith.constant 0 : i32
    %c0_i32_1 = arith.constant 0 : i32
    return %c0_i32, %c0_i32_0 : i32, i32
  }
  func.func @transform_2(%arg0: i32, %arg1: i32) -> (i32, i32) {
    %c0_i32 = arith.constant 0 : i32
    %c0_i32_0 = arith.constant 0 : i32
    %c0_i32_1 = arith.constant 0 : i32
    return %c0_i32, %c0_i32_0 : i32, i32
  }
  func.func @transform_3(%arg0: i32, %arg1: i32) -> (i32, i32) {
    %c0_i32 = arith.constant 0 : i32
    %c0_i32_0 = arith.constant 0 : i32
    %c0_i32_1 = arith.constant 0 : i32
    return %c0_i32, %c0_i32_0 : i32, i32
  }
  func.func @transform_4(%arg0: i32, %arg1: i32) -> (i32, i32, i32) {
    %c0_i32 = arith.constant 0 : i32
    %c0_i32_0 = arith.constant 0 : i32
    return %arg0, %arg1, %c0_i32 : i32, i32, i32
  }
}

module attributes {stable_mosaic.version = 11 : i64} {
  func.func @hrr_attn_kernel(%arg0: i32, %arg1: i32, %arg2: memref<1x8x32xf32, #tpu.memory_space<vmem>>, %arg3: memref<32x2304xbf16, #tpu.memory_space<vmem>>, %arg4: memref<1024x32xbf16, #tpu.memory_space<vmem>>, %arg5: memref<8x8xbf16, #tpu.memory_space<vmem>>, %arg6: memref<1x8x32xf32, #tpu.memory_space<vmem>>, %arg7: memref<1x1024xf32, #tpu.memory_space<vmem>>) attributes {dimension_semantics = [#tpu.dimension_semantics<parallel>, #tpu.dimension_semantics<arbitrary>], iteration_bounds = array<i64: 2, 2>, scalar_prefetch = 0 : i64, scratch_operands = 1 : i64, tpu.core_type = #tpu.core_type<tc>, window_params = [{transform_indices = @transform_0, window_bounds = array<i64: 1, 8, 32>}, {pipeline_mode = #tpu.pipeline_mode<synchronous>, transform_indices = @transform_1, window_bounds = array<i64: 32, 2304>}, {pipeline_mode = #tpu.pipeline_mode<synchronous>, transform_indices = @transform_2, window_bounds = array<i64: 1024, 32>}, {pipeline_mode = #tpu.pipeline_mode<synchronous>, transform_indices = @transform_3, window_bounds = array<i64: 8, 8>}, {transform_indices = @transform_4, window_bounds = array<i64: 1, 8, 32>}]} {
    %c0_i32 = arith.constant 0 : i32
    %0 = arith.cmpi eq, %arg1, %c0_i32 : i32
    %1 = arith.extui %0 : i1 to i32
    %c0_i32_0 = arith.constant 0 : i32
    %2 = arith.cmpi ne, %1, %c0_i32_0 : i32
    scf.if %2 {
      %cst_18 = arith.constant 0.000000e+00 : f32
      %46 = vector.broadcast %cst_18 : f32 to vector<1x1024xf32>
      %c0_19 = arith.constant 0 : index
      %c0_20 = arith.constant 0 : index
      %47 = vector.load %arg7[%c0_19, %c0_20] : memref<1x1024xf32, #tpu.memory_space<vmem>>, vector<1x1024xf32>
      tpu.vector_store %arg7[%c0_19, %c0_20], %46 {strides = array<i32>} : memref<1x1024xf32, #tpu.memory_space<vmem>>, vector<1x1024xf32>,
    } else {
    }
    %c0 = arith.constant 0 : index
    %c0_1 = arith.constant 0 : index
    %c0_2 = arith.constant 0 : index
    %3 = vector.load %arg2[%c0, %c0_1, %c0_2] : memref<1x8x32xf32, #tpu.memory_space<vmem>>, vector<1x8x32xf32>
    %4 = vector.shape_cast %3 : vector<1x8x32xf32> to vector<8x32xf32>
    %5 = arith.truncf %4 : vector<8x32xf32> to vector<8x32xbf16>
    %c0_3 = arith.constant 0 : index
    %c0_4 = arith.constant 0 : index
    %6 = vector.load %arg3[%c0_3, %c0_4] : memref<32x2304xbf16, #tpu.memory_space<vmem>>, vector<32x2304xbf16>
    %cst = arith.constant dense<0.000000e+00> : vector<8x2304xf32>
    %7 = tpu.matmul %5, %6, %cst {dimension_numbers = #tpu.dot_dimension_numbers<[1], [0], [0], [1], [0, 0, 1, 1], [], []>} : vector<8x32xbf16>, vector<32x2304xbf16>, vector<8x2304xf32> -> vector<8x2304xf32>
    %8 = vector.extract_strided_slice %7 {offsets = [0, 0], sizes = [8, 512], strides = [1, 1]} : vector<8x2304xf32> to vector<8x512xf32>
    %9 = vector.extract_strided_slice %7 {offsets = [0, 512], sizes = [8, 512], strides = [1, 1]} : vector<8x2304xf32> to vector<8x512xf32>
    %10 = vector.extract_strided_slice %7 {offsets = [0, 1024], sizes = [8, 512], strides = [1, 1]} : vector<8x2304xf32> to vector<8x512xf32>
    %11 = vector.extract_strided_slice %7 {offsets = [0, 1536], sizes = [8, 512], strides = [1, 1]} : vector<8x2304xf32> to vector<8x512xf32>
    %12 = vector.extract_strided_slice %7 {offsets = [0, 2048], sizes = [8, 128], strides = [1, 1]} : vector<8x2304xf32> to vector<8x128xf32>
    %13 = vector.extract_strided_slice %7 {offsets = [0, 2176], sizes = [8, 128], strides = [1, 1]} : vector<8x2304xf32> to vector<8x128xf32>
    %14 = tpu.concatenate %12, %12, %12, %12 in 1 : vector<8x128xf32>, vector<8x128xf32>, vector<8x128xf32>, vector<8x128xf32> -> vector<8x512xf32>
    %15 = tpu.concatenate %13, %13, %13, %13 in 1 : vector<8x128xf32>, vector<8x128xf32>, vector<8x128xf32>, vector<8x128xf32> -> vector<8x512xf32>
    %16 = arith.mulf %10, %14 : vector<8x512xf32>
    %17 = arith.mulf %11, %15 : vector<8x512xf32>
    %18 = arith.subf %16, %17 : vector<8x512xf32>
    %19 = arith.mulf %10, %15 : vector<8x512xf32>
    %20 = arith.mulf %11, %14 : vector<8x512xf32>
    %21 = arith.addf %19, %20 : vector<8x512xf32>
    %22 = tpu.concatenate %18, %21 in 1 : vector<8x512xf32>, vector<8x512xf32> -> vector<8x1024xf32>
    %23 = arith.truncf %22 : vector<8x1024xf32> to vector<8x1024xbf16>
    %c0_5 = arith.constant 0 : index
    %c0_6 = arith.constant 0 : index
    %24 = vector.load %arg5[%c0_5, %c0_6] : memref<8x8xbf16, #tpu.memory_space<vmem>>, vector<8x8xbf16>
    %cst_7 = arith.constant dense<0.000000e+00> : vector<8x1024xf32>
    %25 = tpu.matmul %24, %23, %cst_7 {dimension_numbers = #tpu.dot_dimension_numbers<[1], [0], [0], [1], [0, 0, 1, 1], [], []>} : vector<8x8xbf16>, vector<8x1024xbf16>, vector<8x1024xf32> -> vector<8x1024xf32>
    %c0_8 = arith.constant 0 : index
    %c0_9 = arith.constant 0 : index
    %26 = vector.load %arg7[%c0_8, %c0_9] : memref<1x1024xf32, #tpu.memory_space<vmem>>, vector<1x1024xf32>
    %27 = vector.broadcast %26 : vector<1x1024xf32> to vector<8x1024xf32>
    %28 = arith.addf %25, %27 : vector<8x1024xf32>
    %29 = vector.extract_strided_slice %28 {offsets = [7, 0], sizes = [1, 1024], strides = [1, 1]} : vector<8x1024xf32> to vector<1x1024xf32>
    %c0_10 = arith.constant 0 : index
    %c0_11 = arith.constant 0 : index
    %30 = vector.load %arg7[%c0_10, %c0_11] : memref<1x1024xf32, #tpu.memory_space<vmem>>, vector<1x1024xf32>
    tpu.vector_store %arg7[%c0_10, %c0_11], %29 {strides = array<i32>} : memref<1x1024xf32, #tpu.memory_space<vmem>>, vector<1x1024xf32>,
    %31 = vector.extract_strided_slice %28 {offsets = [0, 0], sizes = [8, 512], strides = [1, 1]} : vector<8x1024xf32> to vector<8x512xf32>
    %32 = vector.extract_strided_slice %28 {offsets = [0, 512], sizes = [8, 512], strides = [1, 1]} : vector<8x1024xf32> to vector<8x512xf32>
    %33 = arith.mulf %8, %31 : vector<8x512xf32>
    %34 = arith.mulf %9, %32 : vector<8x512xf32>
    %35 = arith.addf %33, %34 : vector<8x512xf32>
    %36 = arith.mulf %8, %32 : vector<8x512xf32>
    %37 = arith.mulf %9, %31 : vector<8x512xf32>
    %38 = arith.subf %36, %37 : vector<8x512xf32>
    %39 = tpu.concatenate %35, %38 in 1 : vector<8x512xf32>, vector<8x512xf32> -> vector<8x1024xf32>
    %40 = arith.truncf %39 : vector<8x1024xf32> to vector<8x1024xbf16>
    %c0_12 = arith.constant 0 : index
    %c0_13 = arith.constant 0 : index
    %41 = vector.load %arg4[%c0_12, %c0_13] : memref<1024x32xbf16, #tpu.memory_space<vmem>>, vector<1024x32xbf16>
    %cst_14 = arith.constant dense<0.000000e+00> : vector<8x32xf32>
    %42 = tpu.matmul %40, %41, %cst_14 {dimension_numbers = #tpu.dot_dimension_numbers<[1], [0], [0], [1], [0, 0, 1, 1], [], []>} : vector<8x1024xbf16>, vector<1024x32xbf16>, vector<8x32xf32> -> vector<8x32xf32>
    %c0_15 = arith.constant 0 : index
    %c0_16 = arith.constant 0 : index
    %c0_17 = arith.constant 0 : index
    %43 = vector.load %arg6[%c0_15, %c0_16, %c0_17] : memref<1x8x32xf32, #tpu.memory_space<vmem>>, vector<1x8x32xf32>
    %44 = vector.shape_cast %43 : vector<1x8x32xf32> to vector<8x32xf32>
    %45 = vector.shape_cast %42 : vector<8x32xf32> to vector<1x8x32xf32>
    tpu.vector_store %arg6[%c0_15, %c0_16, %c0_17], %45 {strides = array<i32>} : memref<1x8x32xf32, #tpu.memory_space<vmem>>, vector<1x8x32xf32>,
    return
  }
  func.func @transform_0(%arg0: i32, %arg1: i32) -> (i32, i32, i32) {
    %c0_i32 = arith.constant 0 : i32
    %c0_i32_0 = arith.constant 0 : i32
    return %arg0, %arg1, %c0_i32 : i32, i32, i32
  }
  func.func @transform_1(%arg0: i32, %arg1: i32) -> (i32, i32) {
    %c0_i32 = arith.constant 0 : i32
    %c0_i32_0 = arith.constant 0 : i32
    %c0_i32_1 = arith.constant 0 : i32
    return %c0_i32, %c0_i32_0 : i32, i32
  }
  func.func @transform_2(%arg0: i32, %arg1: i32) -> (i32, i32) {
    %c0_i32 = arith.constant 0 : i32
    %c0_i32_0 = arith.constant 0 : i32
    %c0_i32_1 = arith.constant 0 : i32
    return %c0_i32, %c0_i32_0 : i32, i32
  }
  func.func @transform_3(%arg0: i32, %arg1: i32) -> (i32, i32) {
    %c0_i32 = arith.constant 0 : i32
    %c0_i32_0 = arith.constant 0 : i32
    %c0_i32_1 = arith.constant 0 : i32
    return %c0_i32, %c0_i32_0 : i32, i32
  }
  func.func @transform_4(%arg0: i32, %arg1: i32) -> (i32, i32, i32) {
    %c0_i32 = arith.constant 0 : i32
    %c0_i32_0 = arith.constant 0 : i32
    return %arg0, %arg1, %c0_i32 : i32, i32, i32
  }
}

</mosaic_0001>

<llo_original>
// kernel: tpu_custom_call.1
$region0: #{tpu_custom_call.1}
  #allocation0 [shape = 'u32[]', space=smem, size = 0x4, offset = 0x4, fixed_abs, tag = 'smem constant byte address 0x4 - core index']
  #allocation1 [shape = 'u32[144,128]{1,0:T(1,128)}', space=vmem, size = 0x12000, scoped, tag = 'internal scratch']
  #allocation2 [shape = 'f32[1,1024]{1,0:T(1,128)}', space=vmem, size = 0x1000, scoped, tag = 'scratch operand']
  %s0 = inlined_call_operand.vmem [shape: f32[2,16,32], index: 0, kind: input, shape index: {}]
  %s1 = inlined_call_operand.vmem [shape: bf16[32,2304], index: 1, kind: input, shape index: {}]
  %s2 = inlined_call_operand.vmem [shape: bf16[1024,32], index: 2, kind: input, shape index: {}]
  %s3 = inlined_call_operand.vmem [shape: bf16[8,8], index: 3, kind: input, shape index: {}]
  %s4 = inlined_call_operand.hbm [shape: f32[2,16,32], index: 4, kind: output, shape index: {}]
  %s5 = sld [smem:[#allocation0]]
  $region53: #{tpu_custom_call.1} parent=0
    _
  %s7 = ssub.s32 1, %s5
  %s8 = scalar_select 0, %s7, %s5
  $region1: #{tpu_custom_call.1} parent=0
    #allocation3 [shape = 'u8[8192]{0}', space=vmem, size = 0x2000, scoped, tag = 'output window, operand 0']
    #allocation4 [shape = 's32[2]{0}', space=sflag, size = 0x8, scoped, tag = 'scoped memory for tpu_custom_call.1']
    %9 = vsyncpa [#allocation4], 0
    %s10 = scalar_lea.sflag [#allocation4], 1
    %11 = vsyncpa %s10, 0
    loop: start=0, step=1, limit=6
    $region2: #{tpu_custom_call.1} parent=1 // loop_pre_header
      _
    $region3: #{tpu_custom_call.1} parent=1 // loop_header
      %s13 = sphi 0, %s17
      %p14 = scmp.ge.s32.totalorder %s13, 6
      %s20 = sphi 0, %s32
      %s21 = sphi 0, %s28
      %s22 = sphi 0, %s20
      %s23 = sphi 0, %s21
      %s24 = sphi 0, %s22
      %s25 = sphi 0, %s23
      %s37 = sphi 0, %s39
      %s40 = sphi 0, %s37
      %s41 = sphi 0, %s40
      %s57 = sphi 0, %s41
      %s61 = sphi 0, %s61
      %s63 = sphi 0, %s61
      %s64 = sphi 0, %s63
      %s78 = sphi 0, %s64
      %s82 = sphi 0, %s82
      %s84 = sphi 0, %s82
      %s85 = sphi 0, %s84
      %s99 = sphi 0, %s85
      %s103 = sphi 0, %s103
      %s105 = sphi 0, %s103
      %s106 = sphi 0, %s105
      %s120 = sphi 0, %s106
      %s128 = sphi 0, %s130
      %s131 = sphi 0, %s128
      %s132 = sphi 0, %s131
      %s148 = sphi 0, %s132
    $region4: #{tpu_custom_call.1} parent=1 // loop_header_branch
      %16 = sbr.rel (%p14) target = $region8
    $region5: #{tpu_custom_call.1} parent=1 // loop_body
      %s18 = ssub.s32 %s13, 1
      %s19 = ssub.s32 %s13, 2
      %s26 = sadd.s32 1, %s21
      %p27 = scmp.ge.s32.totalorder %s26, 2
      %s28 = scalar_select %p27, 0, %s26
      %s29 = sadd.s32 1, %s20
      %s30 = scalar_select %p27, %s29, %s20
      %p31 = scmp.ge.s32.totalorder %s30, 2
      %s32 = scalar_select %p31, 0, %s30
      %s33 = ssub.s32 %s20, %s32
      %s34 = ssub.s32 %s21, %s28
      %s35 = sor.u32 %s33, %s34
      %p36 = scmp.eq.s32.totalorder %s35, 0
      %s38 = sadd.s32 %s37, 1
      %s39 = scalar_select %p36, %s37, %s38
      %p42 = pneg %p36
      %p43 = scmp.eq.s32.totalorder %s13, 3
      %p44 = por %p42, %p43
      %p45 = scmp.ne.s32.totalorder %s37, %s40
      %p46 = scmp.eq.s32.totalorder %s13, 0
      %p47 = por %p45, %p46
      %p48 = scmp.ne.s32.totalorder %s37, %s40
      %p49 = scmp.eq.s32.totalorder %s18, 3
      %p50 = por %p48, %p49
      %p51 = scmp.ne.s32.totalorder %s40, %s41
      %p52 = scmp.eq.s32.totalorder %s18, 0
      %p53 = por %p51, %p52
      %p54 = scmp.ne.s32.totalorder %s40, %s41
      %p55 = scmp.eq.s32.totalorder %s19, 3
      %p56 = por %p54, %p55
      %p58 = scmp.ne.s32.totalorder %s41, %s57
      %p59 = scmp.eq.s32.totalorder %s19, 0
      %p60 = por %p58, %p59
      %s62 = sadd.s32 %s61, 1
      %p65 = scmp.eq.s32.totalorder %s13, 3
      %p66 = scmp.ne.s32.totalorder %s61, %s63
      %p67 = scmp.eq.s32.totalorder %s13, 0
      %p68 = por %p66, %p67
      %p69 = scmp.ne.s32.totalorder %s61, %s63
      %p70 = scmp.eq.s32.totalorder %s18, 3
      %p71 = por %p69, %p70
      %p72 = scmp.ne.s32.totalorder %s63, %s64
      %p73 = scmp.eq.s32.totalorder %s18, 0
      %p74 = por %p72, %p73
      %p75 = scmp.ne.s32.totalorder %s63, %s64
      %p76 = scmp.eq.s32.totalorder %s19, 3
      %p77 = por %p75, %p76
      %p79 = scmp.ne.s32.totalorder %s64, %s78
      %p80 = scmp.eq.s32.totalorder %s19, 0
      %p81 = por %p79, %p80
      %s83 = sadd.s32 %s82, 1
      %p86 = scmp.eq.s32.totalorder %s13, 3
      %p87 = scmp.ne.s32.totalorder %s82, %s84
      %p88 = scmp.eq.s32.totalorder %s13, 0
      %p89 = por %p87, %p88
      %p90 = scmp.ne.s32.totalorder %s82, %s84
      %p91 = scmp.eq.s32.totalorder %s18, 3
      %p92 = por %p90, %p91
      %p93 = scmp.ne.s32.totalorder %s84, %s85
      %p94 = scmp.eq.s32.totalorder %s18, 0
      %p95 = por %p93, %p94
      %p96 = scmp.ne.s32.totalorder %s84, %s85
      %p97 = scmp.eq.s32.totalorder %s19, 3
      %p98 = por %p96, %p97
      %p100 = scmp.ne.s32.totalorder %s85, %s99
      %p101 = scmp.eq.s32.totalorder %s19, 0
      %p102 = por %p100, %p101
      %s104 = sadd.s32 %s103, 1
      %p107 = scmp.eq.s32.totalorder %s13, 3
      %p108 = scmp.ne.s32.totalorder %s103, %s105
      %p109 = scmp.eq.s32.totalorder %s13, 0
      %p110 = por %p108, %p109
      %p111 = scmp.ne.s32.totalorder %s103, %s105
      %p112 = scmp.eq.s32.totalorder %s18, 3
      %p113 = por %p111, %p112
      %p114 = scmp.ne.s32.totalorder %s105, %s106
      %p115 = scmp.eq.s32.totalorder %s18, 0
      %p116 = por %p114, %p115
      %p117 = scmp.ne.s32.totalorder %s105, %s106
      %p118 = scmp.eq.s32.totalorder %s19, 3
      %p119 = por %p117, %p118
      %p121 = scmp.ne.s32.totalorder %s106, %s120
      %p122 = scmp.eq.s32.totalorder %s19, 0
      %p123 = por %p121, %p122
      %s124 = ssub.s32 %s20, %s32
      %s125 = ssub.s32 %s21, %s28
      %s126 = sor.u32 %s124, %s125
      %p127 = scmp.eq.s32.totalorder %s126, 0
      %s129 = sadd.s32 %s128, 1
      %s130 = scalar_select %p127, %s128, %s129
      %p133 = pneg %p127
      %p134 = scmp.eq.s32.totalorder %s13, 3
      %p135 = por %p133, %p134
      %p136 = scmp.ne.s32.totalorder %s128, %s131
      %p137 = scmp.eq.s32.totalorder %s13, 0
      %p138 = por %p136, %p137
      %p139 = scmp.ne.s32.totalorder %s128, %s131
      %p140 = scmp.eq.s32.totalorder %s18, 3
      %p141 = por %p139, %p140
      %p142 = scmp.ne.s32.totalorder %s131, %s132
      %p143 = scmp.eq.s32.totalorder %s18, 0
      %p144 = por %p142, %p143
      %p145 = scmp.ne.s32.totalorder %s131, %s132
      %p146 = scmp.eq.s32.totalorder %s19, 3
      %p147 = por %p145, %p146
      %p149 = scmp.ne.s32.totalorder %s132, %s148
      %p150 = scmp.eq.s32.totalorder %s19, 0
      %p151 = por %p149, %p150
      %p152 = scmp.le.s32.totalorder 1, %s13
      %p153 = scmp.lt.s32.totalorder %s13, 5
      %p154 = pnand %p152, %p153
      %p155 = pneg %p154
      // Predicated region
      $region9: #{tpu_custom_call.1} parent=5 // pred_check
        _
      $region10: #{tpu_custom_call.1} parent=5 // pred_check_branch
        %157 = sbr.rel (%p154) target = $region12
      $region11: #{tpu_custom_call.1} parent=5 // pred_region
        %s158 = ssub.s32 %s13, 1
        // Predicated region
        $region13: #{tpu_custom_call.1} parent=11 // pred_check
          %p159 = pneg %p74
        $region14: #{tpu_custom_call.1} parent=11 // pred_check_branch
          %161 = sbr.rel (%p159) target = $region16
        $region15: #{tpu_custom_call.1} parent=11 // pred_region
          _
        $region16: #{tpu_custom_call.1} parent=11 // pred_fallthru
          _
        // Predicated region
        $region17: #{tpu_custom_call.1} parent=11 // pred_check
          %p162 = pneg %p95
        $region18: #{tpu_custom_call.1} parent=11 // pred_check_branch
          %164 = sbr.rel (%p162) target = $region20
        $region19: #{tpu_custom_call.1} parent=11 // pred_region
          _
        $region20: #{tpu_custom_call.1} parent=11 // pred_fallthru
          _
        // Predicated region
        $region21: #{tpu_custom_call.1} parent=11 // pred_check
          %p165 = pneg %p116
        $region22: #{tpu_custom_call.1} parent=11 // pred_check_branch
          %167 = sbr.rel (%p165) target = $region24
        $region23: #{tpu_custom_call.1} parent=11 // pred_region
          _
        $region24: #{tpu_custom_call.1} parent=11 // pred_fallthru
          _
      $region12: #{tpu_custom_call.1} parent=5 // pred_fallthru
        _
      %p168 = scmp.lt.s32.totalorder %s13, 4
      // Predicated region
      $region25: #{tpu_custom_call.1} parent=5 // pred_check
        %p169 = pneg %p168
      $region26: #{tpu_custom_call.1} parent=5 // pred_check_branch
        %171 = sbr.rel (%p169) target = $region28
      $region27: #{tpu_custom_call.1} parent=5 // pred_region
        // Predicated region
        $region29: #{tpu_custom_call.1} parent=27 // pred_check
          %p172 = pneg %p47
        $region30: #{tpu_custom_call.1} parent=27 // pred_check_branch
          %174 = sbr.rel (%p172) target = $region32
        $region31: #{tpu_custom_call.1} parent=27 // pred_region
          %p175 = scmp.lt.s32.totalorder %s20, 1
          %s176 = scalar_select %p175, %s20, 1
          %p177 = scmp.lt.s32.totalorder %s21, 1
          %s178 = scalar_select %p177, %s21, 1
          %s179 = smul.addr %s176, 2
          %s180 = sadd.s32 %s178, %s179
          %s181 = smul.addr %s180, 8
          %s182 = scalar_lea.vmem %s0, %s181
        $region32: #{tpu_custom_call.1} parent=27 // pred_fallthru
          _
      $region28: #{tpu_custom_call.1} parent=5 // pred_fallthru
        _
      %p183 = scmp.le.s32.totalorder 1, %s13
      %p184 = scmp.lt.s32.totalorder %s13, 5
      %p185 = pnand %p183, %p184
      %p186 = pneg %p185
      // Predicated region
      $region33: #{tpu_custom_call.1} parent=5 // pred_check
        _
      $region34: #{tpu_custom_call.1} parent=5 // pred_check_branch
        %188 = sbr.rel (%p185) target = $region36
      $region35: #{tpu_custom_call.1} parent=5 // pred_region
        %s189 = ssub.s32 %s13, 1
        %p190 = scmp.lt.s32.totalorder %s22, 1
        %s191 = scalar_select %p190, %s22, 1
        %p192 = scmp.lt.s32.totalorder %s23, 1
        %s193 = scalar_select %p192, %s23, 1
        %s194 = smul.addr %s191, 2
        %s195 = sadd.s32 %s193, %s194
        %s196 = smul.addr %s195, 8
        %s197 = scalar_lea.vmem %s0, %s196
        %p198 = pneg %p53
        %p199 = pneg %p50
        %p200 = pneg %p74
        %p201 = pneg %p71
        %p202 = pneg %p95
        %p203 = pneg %p92
        %p204 = pneg %p116
        %p205 = pneg %p113
        %p206 = pneg %p144
        %p207 = pneg %p141
        %s208 = sand.u32 %s131, 1
        %s209 = scalar_lea.sflag [#allocation4], %s208
        %s210 = sand.u32 %s131, 1
        %s211 = smul.addr %s210, 8
        %s212 = scalar_lea.vmem [#allocation3], %s211
        %p213 = scmp.lt.s32.totalorder %s22, 1
        %s214 = scalar_select %p213, %s22, 1
        %p215 = scmp.lt.s32.totalorder %s23, 1
        %s216 = scalar_select %p215, %s23, 1
        %s217 = smul.addr %s214, 2
        %s218 = sadd.s32 %s216, %s217
        %s219 = smul.addr %s218, 8
        %s220 = scalar_lea.vmem %s0, %s219
        %p222 = scmp.eq.s32.totalorder %s23, 0
        // Predicated region
        $region37: #{tpu_custom_call.1} parent=35 // pred_check
          %p223 = pneg %p222
        $region38: #{tpu_custom_call.1} parent=35 // pred_check_branch
          %225 = sbr.rel (%p223) target = $region40
        $region39: #{tpu_custom_call.1} parent=35 // pred_region
          %226 = vst [vmem:[#allocation2] sm:$0xff] 0.0
        $region40: #{tpu_custom_call.1} parent=35 // pred_fallthru
          _
        %v227 = vld [vmem:[%s220] sm:$0xff]
        %v228 = vpack.c.bf16 %v227, %v227
        %v229 = vld [vmem:[%s1] sm:$0xff]
        %v230 = vld [vmem:[%s1 + $0x8] sm:$0xff]
        %v231 = vld [vmem:[%s1 + $0x10] sm:$0xff]
        %v232 = vld [vmem:[%s1 + $0x18] sm:$0xff]
        %v233 = vld [vmem:[%s1 + $0x20] sm:$0xff]
        %v234 = vld [vmem:[%s1 + $0x28] sm:$0xff]
        %v235 = vld [vmem:[%s1 + $0x30] sm:$0xff]
        %v236 = vld [vmem:[%s1 + $0x38] sm:$0xff]
        %v237 = vld [vmem:[%s1 + $0x40] sm:$0xff]
        %v238 = vld [vmem:[%s1 + $0x48] sm:$0xff]
        %v239 = vld [vmem:[%s1 + $0x50] sm:$0xff]
        %v240 = vld [vmem:[%s1 + $0x58] sm:$0xff]
        %v241 = vld [vmem:[%s1 + $0x60] sm:$0xff]
        %v242 = vld [vmem:[%s1 + $0x68] sm:$0xff]
        %v243 = vld [vmem:[%s1 + $0x70] sm:$0xff]
        %v244 = vld [vmem:[%s1 + $0x78] sm:$0xff]
        %v245 = vld [vmem:[%s1 + $0x80] sm:$0xff]
        %v246 = vld [vmem:[%s1 + $0x88] sm:$0xff]
        %v247 = vld [vmem:[%s1 + $0x90] sm:$0xff]
        %v248 = vld [vmem:[%s1 + $0x98] sm:$0xff]
        %v249 = vld [vmem:[%s1 + $0xa0] sm:$0xff]
        %v250 = vld [vmem:[%s1 + $0xa8] sm:$0xff]
        %v251 = vld [vmem:[%s1 + $0xb0] sm:$0xff]
        %v252 = vld [vmem:[%s1 + $0xb8] sm:$0xff]
        %v253 = vld [vmem:[%s1 + $0xc0] sm:$0xff]
        %v254 = vld [vmem:[%s1 + $0xc8] sm:$0xff]
        %v255 = vld [vmem:[%s1 + $0xd0] sm:$0xff]
        %v256 = vld [vmem:[%s1 + $0xd8] sm:$0xff]
        %v257 = vld [vmem:[%s1 + $0xe0] sm:$0xff]
        %v258 = vld [vmem:[%s1 + $0xe8] sm:$0xff]
        %v259 = vld [vmem:[%s1 + $0xf0] sm:$0xff]
        %v260 = vld [vmem:[%s1 + $0xf8] sm:$0xff]
        %v261 = vld [vmem:[%s1 + $0x100] sm:$0xff]
        %v262 = vld [vmem:[%s1 + $0x108] sm:$0xff]
        %v263 = vld [vmem:[%s1 + $0x110] sm:$0xff]
        %v264 = vld [vmem:[%s1 + $0x118] sm:$0xff]
        %v301 = vunpack.c.l.b16 %v229
        %v302 = vunpack.c.h.b16 %v229
        %v303 = vunpack.c.l.b16 %v230
        %v304 = vunpack.c.h.b16 %v230
        %v305 = vunpack.c.l.b16 %v231
        %v306 = vunpack.c.h.b16 %v231
        %v307 = vunpack.c.l.b16 %v232
        %v308 = vunpack.c.h.b16 %v232
        %v309 = vunpack.c.l.b16 %v233
        %v310 = vunpack.c.h.b16 %v233
        %v311 = vunpack.c.l.b16 %v234
        %v312 = vunpack.c.h.b16 %v234
        %v313 = vunpack.c.l.b16 %v235
        %v314 = vunpack.c.h.b16 %v235
        %v315 = vunpack.c.l.b16 %v236
        %v316 = vunpack.c.h.b16 %v236
        %v317 = vunpack.c.l.b16 %v237
        %v318 = vunpack.c.h.b16 %v237
        %v319 = vunpack.c.l.b16 %v238
        %v320 = vunpack.c.h.b16 %v238
        %v321 = vunpack.c.l.b16 %v239
        %v322 = vunpack.c.h.b16 %v239
        %v323 = vunpack.c.l.b16 %v240
        %v324 = vunpack.c.h.b16 %v240
        %v325 = vunpack.c.l.b16 %v241
        %v326 = vunpack.c.h.b16 %v241
        %v327 = vunpack.c.l.b16 %v242
        %v328 = vunpack.c.h.b16 %v242
        %v329 = vunpack.c.l.b16 %v243
        %v330 = vunpack.c.h.b16 %v243
        %v331 = vunpack.c.l.b16 %v244
        %v332 = vunpack.c.h.b16 %v244
        %v333 = vunpack.c.l.b16 %v245
        %v334 = vunpack.c.h.b16 %v245
        %v335 = vunpack.c.l.b16 %v246
        %v336 = vunpack.c.h.b16 %v246
        %v337 = vunpack.c.l.b16 %v247
        %v338 = vunpack.c.h.b16 %v247
        %v339 = vunpack.c.l.b16 %v248
        %v340 = vunpack.c.h.b16 %v248
        %v341 = vunpack.c.l.b16 %v249
        %v342 = vunpack.c.h.b16 %v249
        %v343 = vunpack.c.l.b16 %v250
        %v344 = vunpack.c.h.b16 %v250
        %v345 = vunpack.c.l.b16 %v251
        %v346 = vunpack.c.h.b16 %v251
        %v347 = vunpack.c.l.b16 %v252
        %v348 = vunpack.c.h.b16 %v252
        %v349 = vunpack.c.l.b16 %v253
        %v350 = vunpack.c.h.b16 %v253
        %v351 = vunpack.c.l.b16 %v254
        %v352 = vunpack.c.h.b16 %v254
        %v353 = vunpack.c.l.b16 %v255
        %v354 = vunpack.c.h.b16 %v255
        %v355 = vunpack.c.l.b16 %v256
        %v356 = vunpack.c.h.b16 %v256
        %v357 = vunpack.c.l.b16 %v257
        %v358 = vunpack.c.h.b16 %v257
        %v359 = vunpack.c.l.b16 %v258
        %v360 = vunpack.c.h.b16 %v258
        %v361 = vunpack.c.l.b16 %v259
        %v362 = vunpack.c.h.b16 %v259
        %v363 = vunpack.c.l.b16 %v260
        %v364 = vunpack.c.h.b16 %v260
        %v365 = vunpack.c.l.b16 %v261
        %v366 = vunpack.c.h.b16 %v261
        %v367 = vunpack.c.l.b16 %v262
        %v368 = vunpack.c.h.b16 %v262
        %v369 = vunpack.c.l.b16 %v263
        %v370 = vunpack.c.h.b16 %v263
        %v371 = vunpack.c.l.b16 %v264
        %v372 = vunpack.c.h.b16 %v264
        %v373 = vpack.c.b16 %v319, %v301
        %v374 = vpack.c.b16 %v320, %v302
        %v375 = vpack.c.b16 %v321, %v303
        %v376 = vpack.c.b16 %v322, %v304
        %v377 = vpack.c.b16 %v323, %v305
        %v378 = vpack.c.b16 %v324, %v306
        %v379 = vpack.c.b16 %v325, %v307
        %v380 = vpack.c.b16 %v326, %v308
        %v381 = vpack.c.b16 %v327, %v309
        %v382 = vpack.c.b16 %v328, %v310
        %v383 = vpack.c.b16 %v329, %v311
        %v384 = vpack.c.b16 %v330, %v312
        %v385 = vpack.c.b16 %v331, %v313
        %v386 = vpack.c.b16 %v332, %v314
        %v387 = vpack.c.b16 %v333, %v315
        %v388 = vpack.c.b16 %v334, %v316
        %v389 = vpack.c.b16 %v335, %v317
        %v390 = vpack.c.b16 %v336, %v318
        %v391 = vpack.c.b16 %v355, %v337
        %v392 = vpack.c.b16 %v356, %v338
        %v393 = vpack.c.b16 %v357, %v339
        %v394 = vpack.c.b16 %v358, %v340
        %v395 = vpack.c.b16 %v359, %v341
        %v396 = vpack.c.b16 %v360, %v342
        %v397 = vpack.c.b16 %v361, %v343
        %v398 = vpack.c.b16 %v362, %v344
        %v399 = vpack.c.b16 %v363, %v345
        %v400 = vpack.c.b16 %v364, %v346
        %v401 = vpack.c.b16 %v365, %v347
        %v402 = vpack.c.b16 %v366, %v348
        %v403 = vpack.c.b16 %v367, %v349
        %v404 = vpack.c.b16 %v368, %v350
        %v405 = vpack.c.b16 %v369, %v351
        %v406 = vpack.c.b16 %v370, %v352
        %v407 = vpack.c.b16 %v371, %v353
        %v408 = vpack.c.b16 %v372, %v354
        %vm445 = vcmask 261120
        %v447 = vsel %vm445, %v228, 0
        %449 = vmatprep.subr.bf16.mxu0 %v374
        %450 = vmatpush1.bf16.msra.mxu0 %v373
        %451 = vmatprep.subr.bf16.mxu0 %v392
        %452 = vmatpush1.bf16.msra.mxu0 %v391
        %453 = vmatprep.subr.bf16.mxu0 0
        %454 = vmatpush1.bf16.msra.mxu0 0
        %455 = vmatprep.subr.bf16.mxu0 0
        %456 = vmatpush1.bf16.msra.mxu0 0
        %457 = vmatprep.subr.bf16.mxu0 0
        %458 = vmatpush1.bf16.msra.mxu0 0
        %459 = vmatprep.subr.bf16.mxu0 0
        %460 = vmatpush1.bf16.msra.mxu0 0
        %461 = vmatprep.subr.bf16.mxu0 0
        %462 = vmatpush1.bf16.msra.mxu0 0
        %463 = vmatprep.subr.bf16.mxu0 0
        %464 = vmatpush1.bf16.msra.mxu0 0
        %465 = vmatprep.subr.bf16.mxu0 0
        %466 = vmatpush1.bf16.msra.mxu0 0
        %467 = vmatprep.subr.bf16.mxu0 0
        %468 = vmatpush1.bf16.msra.mxu0 0
        %469 = vmatprep.subr.bf16.mxu0 0
        %470 = vmatpush1.bf16.msra.mxu0 0
        %471 = vmatprep.subr.bf16.mxu0 0
        %472 = vmatpush1.bf16.msra.mxu0 0
        %473 = vmatprep.subr.bf16.mxu0 0
        %474 = vmatpush1.bf16.msra.mxu0 0
        %475 = vmatprep.subr.bf16.mxu0 0
        %476 = vmatpush1.bf16.msra.mxu0 0
        %477 = vmatprep.subr.bf16.mxu0 0
        %478 = vmatpush1.bf16.msra.mxu0 0
        %479 = vmatprep.subr.bf16.mxu0 0
        %480 = vmatpush1.bf16.msra.mxu0 0
        %481 = vmatprep.mubr.bf16.mxu0 0
        %482 = vmatmul.mubr.bf16.gmra.mrb[0].mxu0 %v447
        %v483 = vpop.f32.mrb[0].mxu0
        %v484 = vadd.f32 0.0, %v483
        %v485 = vpop.f32.mrb[0].mxu0
        %v486 = vadd.f32 0.0, %v485
        %v487 = vpop.f32.mrb[0].mxu0
        %v488 = vpop.f32.mrb[0].mxu0
        %489 = vdwg.mxu0
        %490 = vmatprep.subr.bf16.mxu0 %v376
        %491 = vmatpush1.bf16.msra.mxu0 %v375
        %492 = vmatprep.subr.bf16.mxu0 %v394
        %493 = vmatpush1.bf16.msra.mxu0 %v393
        %494 = vmatprep.subr.bf16.mxu0 0
        %495 = vmatpush1.bf16.msra.mxu0 0
        %496 = vmatprep.subr.bf16.mxu0 0
        %497 = vmatpush1.bf16.msra.mxu0 0
        %498 = vmatprep.subr.bf16.mxu0 0
        %499 = vmatpush1.bf16.msra.mxu0 0
        %500 = vmatprep.subr.bf16.mxu0 0
        %501 = vmatpush1.bf16.msra.mxu0 0
        %502 = vmatprep.subr.bf16.mxu0 0
        %503 = vmatpush1.bf16.msra.mxu0 0
        %504 = vmatprep.subr.bf16.mxu0 0
        %505 = vmatpush1.bf16.msra.mxu0 0
        %506 = vmatprep.subr.bf16.mxu0 0
        %507 = vmatpush1.bf16.msra.mxu0 0
        %508 = vmatprep.subr.bf16.mxu0 0
        %509 = vmatpush1.bf16.msra.mxu0 0
        %510 = vmatprep.subr.bf16.mxu0 0
        %511 = vmatpush1.bf16.msra.mxu0 0
        %512 = vmatprep.subr.bf16.mxu0 0
        %513 = vmatpush1.bf16.msra.mxu0 0
        %514 = vmatprep.subr.bf16.mxu0 0
        %515 = vmatpush1.bf16.msra.mxu0 0
        %516 = vmatprep.subr.bf16.mxu0 0
        %517 = vmatpush1.bf16.msra.mxu0 0
        %518 = vmatprep.subr.bf16.mxu0 0
        %519 = vmatpush1.bf16.msra.mxu0 0
        %520 = vmatprep.subr.bf16.mxu0 0
        %521 = vmatpush1.bf16.msra.mxu0 0
        %522 = vmatprep.mubr.bf16.mxu0 0
        %523 = vmatmul.mubr.bf16.gmra.mrb[0].mxu0 %v447
        %v524 = vpop.f32.mrb[0].mxu0
        %v525 = vadd.f32 0.0, %v524
        %v526 = vpop.f32.mrb[0].mxu0
        %v527 = vadd.f32 0.0, %v526
        %v528 = vpop.f32.mrb[0].mxu0
        %v529 = vpop.f32.mrb[0].mxu0
        %530 = vdwg.mxu0
        %531 = vmatprep.subr.bf16.mxu0 %v378
        %532 = vmatpush1.bf16.msra.mxu0 %v377
        %533 = vmatprep.subr.bf16.mxu0 %v396
        %534 = vmatpush1.bf16.msra.mxu0 %v395
        %535 = vmatprep.subr.bf16.mxu0 0
        %536 = vmatpush1.bf16.msra.mxu0 0
        %537 = vmatprep.subr.bf16.mxu0 0
        %538 = vmatpush1.bf16.msra.mxu0 0
        %539 = vmatprep.subr.bf16.mxu0 0
        %540 = vmatpush1.bf16.msra.mxu0 0
        %541 = vmatprep.subr.bf16.mxu0 0
        %542 = vmatpush1.bf16.msra.mxu0 0
        %543 = vmatprep.subr.bf16.mxu0 0
        %544 = vmatpush1.bf16.msra.mxu0 0
        %545 = vmatprep.subr.bf16.mxu0 0
        %546 = vmatpush1.bf16.msra.mxu0 0
        %547 = vmatprep.subr.bf16.mxu0 0
        %548 = vmatpush1.bf16.msra.mxu0 0
        %549 = vmatprep.subr.bf16.mxu0 0
        %550 = vmatpush1.bf16.msra.mxu0 0
        %551 = vmatprep.subr.bf16.mxu0 0
        %552 = vmatpush1.bf16.msra.mxu0 0
        %553 = vmatprep.subr.bf16.mxu0 0
        %554 = vmatpush1.bf16.msra.mxu0 0
        %555 = vmatprep.subr.bf16.mxu0 0
        %556 = vmatpush1.bf16.msra.mxu0 0
        %557 = vmatprep.subr.bf16.mxu0 0
        %558 = vmatpush1.bf16.msra.mxu0 0
        %559 = vmatprep.subr.bf16.mxu0 0
        %560 = vmatpush1.bf16.msra.mxu0 0
        %561 = vmatprep.subr.bf16.mxu0 0
        %562 = vmatpush1.bf16.msra.mxu0 0
        %563 = vmatprep.mubr.bf16.mxu0 0
        %564 = vmatmul.mubr.bf16.gmra.mrb[0].mxu0 %v447
        %v565 = vpop.f32.mrb[0].mxu0
        %v566 = vadd.f32 0.0, %v565
        %v567 = vpop.f32.mrb[0].mxu0
        %v568 = vadd.f32 0.0, %v567
        %v569 = vpop.f32.mrb[0].mxu0
        %v570 = vpop.f32.mrb[0].mxu0
        %571 = vdwg.mxu0
        %572 = vmatprep.subr.bf16.mxu0 %v380
        %573 = vmatpush1.bf16.msra.mxu0 %v379
        %574 = vmatprep.subr.bf16.mxu0 %v398
        %575 = vmatpush1.bf16.msra.mxu0 %v397
        %576 = vmatprep.subr.bf16.mxu0 0
        %577 = vmatpush1.bf16.msra.mxu0 0
        %578 = vmatprep.subr.bf16.mxu0 0
        %579 = vmatpush1.bf16.msra.mxu0 0
        %580 = vmatprep.subr.bf16.mxu0 0
        %581 = vmatpush1.bf16.msra.mxu0 0
        %582 = vmatprep.subr.bf16.mxu0 0
        %583 = vmatpush1.bf16.msra.mxu0 0
        %584 = vmatprep.subr.bf16.mxu0 0
        %585 = vmatpush1.bf16.msra.mxu0 0
        %586 = vmatprep.subr.bf16.mxu0 0
        %587 = vmatpush1.bf16.msra.mxu0 0
        %588 = vmatprep.subr.bf16.mxu0 0
        %589 = vmatpush1.bf16.msra.mxu0 0
        %590 = vmatprep.subr.bf16.mxu0 0
        %591 = vmatpush1.bf16.msra.mxu0 0
        %592 = vmatprep.subr.bf16.mxu0 0
        %593 = vmatpush1.bf16.msra.mxu0 0
        %594 = vmatprep.subr.bf16.mxu0 0
        %595 = vmatpush1.bf16.msra.mxu0 0
        %596 = vmatprep.subr.bf16.mxu0 0
        %597 = vmatpush1.bf16.msra.mxu0 0
        %598 = vmatprep.subr.bf16.mxu0 0
        %599 = vmatpush1.bf16.msra.mxu0 0
        %600 = vmatprep.subr.bf16.mxu0 0
        %601 = vmatpush1.bf16.msra.mxu0 0
        %602 = vmatprep.subr.bf16.mxu0 0
        %603 = vmatpush1.bf16.msra.mxu0 0
        %604 = vmatprep.mubr.bf16.mxu0 0
        %605 = vmatmul.mubr.bf16.gmra.mrb[0].mxu0 %v447
        %v606 = vpop.f32.mrb[0].mxu0
        %v607 = vadd.f32 0.0, %v606
        %v608 = vpop.f32.mrb[0].mxu0
        %v609 = vadd.f32 0.0, %v608
        %v610 = vpop.f32.mrb[0].mxu0
        %v611 = vpop.f32.mrb[0].mxu0
        %612 = vdwg.mxu0
        %613 = vmatprep.subr.bf16.mxu0 %v382
        %614 = vmatpush1.bf16.msra.mxu0 %v381
        %615 = vmatprep.subr.bf16.mxu0 %v400
        %616 = vmatpush1.bf16.msra.mxu0 %v399
        %617 = vmatprep.subr.bf16.mxu0 0
        %618 = vmatpush1.bf16.msra.mxu0 0
        %619 = vmatprep.subr.bf16.mxu0 0
        %620 = vmatpush1.bf16.msra.mxu0 0
        %621 = vmatprep.subr.bf16.mxu0 0
        %622 = vmatpush1.bf16.msra.mxu0 0
        %623 = vmatprep.subr.bf16.mxu0 0
        %624 = vmatpush1.bf16.msra.mxu0 0
        %625 = vmatprep.subr.bf16.mxu0 0
        %626 = vmatpush1.bf16.msra.mxu0 0
        %627 = vmatprep.subr.bf16.mxu0 0
        %628 = vmatpush1.bf16.msra.mxu0 0
        %629 = vmatprep.subr.bf16.mxu0 0
        %630 = vmatpush1.bf16.msra.mxu0 0
        %631 = vmatprep.subr.bf16.mxu0 0
        %632 = vmatpush1.bf16.msra.mxu0 0
        %633 = vmatprep.subr.bf16.mxu0 0
        %634 = vmatpush1.bf16.msra.mxu0 0
        %635 = vmatprep.subr.bf16.mxu0 0
        %636 = vmatpush1.bf16.msra.mxu0 0
        %637 = vmatprep.subr.bf16.mxu0 0
        %638 = vmatpush1.bf16.msra.mxu0 0
        %639 = vmatprep.subr.bf16.mxu0 0
        %640 = vmatpush1.bf16.msra.mxu0 0
        %641 = vmatprep.subr.bf16.mxu0 0
        %642 = vmatpush1.bf16.msra.mxu0 0
        %643 = vmatprep.subr.bf16.mxu0 0
        %644 = vmatpush1.bf16.msra.mxu0 0
        %645 = vmatprep.mubr.bf16.mxu0 0
        %646 = vmatmul.mubr.bf16.gmra.mrb[0].mxu0 %v447
        %v647 = vpop.f32.mrb[0].mxu0
        %v648 = vadd.f32 0.0, %v647
        %v649 = vpop.f32.mrb[0].mxu0
        %v650 = vadd.f32 0.0, %v649
        %v651 = vpop.f32.mrb[0].mxu0
        %v652 = vpop.f32.mrb[0].mxu0
        %653 = vdwg.mxu0
        %654 = vmatprep.subr.bf16.mxu0 %v384
        %655 = vmatpush1.bf16.msra.mxu0 %v383
        %656 = vmatprep.subr.bf16.mxu0 %v402
        %657 = vmatpush1.bf16.msra.mxu0 %v401
        %658 = vmatprep.subr.bf16.mxu0 0
        %659 = vmatpush1.bf16.msra.mxu0 0
        %660 = vmatprep.subr.bf16.mxu0 0
        %661 = vmatpush1.bf16.msra.mxu0 0
        %662 = vmatprep.subr.bf16.mxu0 0
        %663 = vmatpush1.bf16.msra.mxu0 0
        %664 = vmatprep.subr.bf16.mxu0 0
        %665 = vmatpush1.bf16.msra.mxu0 0
        %666 = vmatprep.subr.bf16.mxu0 0
        %667 = vmatpush1.bf16.msra.mxu0 0
        %668 = vmatprep.subr.bf16.mxu0 0
        %669 = vmatpush1.bf16.msra.mxu0 0
        %670 = vmatprep.subr.bf16.mxu0 0
        %671 = vmatpush1.bf16.msra.mxu0 0
        %672 = vmatprep.subr.bf16.mxu0 0
        %673 = vmatpush1.bf16.msra.mxu0 0
        %674 = vmatprep.subr.bf16.mxu0 0
        %675 = vmatpush1.bf16.msra.mxu0 0
        %676 = vmatprep.subr.bf16.mxu0 0
        %677 = vmatpush1.bf16.msra.mxu0 0
        %678 = vmatprep.subr.bf16.mxu0 0
        %679 = vmatpush1.bf16.msra.mxu0 0
        %680 = vmatprep.subr.bf16.mxu0 0
        %681 = vmatpush1.bf16.msra.mxu0 0
        %682 = vmatprep.subr.bf16.mxu0 0
        %683 = vmatpush1.bf16.msra.mxu0 0
        %684 = vmatprep.subr.bf16.mxu0 0
        %685 = vmatpush1.bf16.msra.mxu0 0
        %686 = vmatprep.mubr.bf16.mxu0 0
        %687 = vmatmul.mubr.bf16.gmra.mrb[0].mxu0 %v447
        %v688 = vpop.f32.mrb[0].mxu0
        %v689 = vadd.f32 0.0, %v688
        %v690 = vpop.f32.mrb[0].mxu0
        %v691 = vadd.f32 0.0, %v690
        %v692 = vpop.f32.mrb[0].mxu0
        %v693 = vpop.f32.mrb[0].mxu0
        %694 = vdwg.mxu0
        %695 = vmatprep.subr.bf16.mxu0 %v386
        %696 = vmatpush1.bf16.msra.mxu0 %v385
        %697 = vmatprep.subr.bf16.mxu0 %v404
        %698 = vmatpush1.bf16.msra.mxu0 %v403
        %699 = vmatprep.subr.bf16.mxu0 0
        %700 = vmatpush1.bf16.msra.mxu0 0
        %701 = vmatprep.subr.bf16.mxu0 0
        %702 = vmatpush1.bf16.msra.mxu0 0
        %703 = vmatprep.subr.bf16.mxu0 0
        %704 = vmatpush1.bf16.msra.mxu0 0
        %705 = vmatprep.subr.bf16.mxu0 0
        %706 = vmatpush1.bf16.msra.mxu0 0
        %707 = vmatprep.subr.bf16.mxu0 0
        %708 = vmatpush1.bf16.msra.mxu0 0
        %709 = vmatprep.subr.bf16.mxu0 0
        %710 = vmatpush1.bf16.msra.mxu0 0
        %711 = vmatprep.subr.bf16.mxu0 0
        %712 = vmatpush1.bf16.msra.mxu0 0
        %713 = vmatprep.subr.bf16.mxu0 0
        %714 = vmatpush1.bf16.msra.mxu0 0
        %715 = vmatprep.subr.bf16.mxu0 0
        %716 = vmatpush1.bf16.msra.mxu0 0
        %717 = vmatprep.subr.bf16.mxu0 0
        %718 = vmatpush1.bf16.msra.mxu0 0
        %719 = vmatprep.subr.bf16.mxu0 0
        %720 = vmatpush1.bf16.msra.mxu0 0
        %721 = vmatprep.subr.bf16.mxu0 0
        %722 = vmatpush1.bf16.msra.mxu0 0
        %723 = vmatprep.subr.bf16.mxu0 0
        %724 = vmatpush1.bf16.msra.mxu0 0
        %725 = vmatprep.subr.bf16.mxu0 0
        %726 = vmatpush1.bf16.msra.mxu0 0
        %727 = vmatprep.mubr.bf16.mxu0 0
        %728 = vmatmul.mubr.bf16.gmra.mrb[0].mxu0 %v447
        %v729 = vpop.f32.mrb[0].mxu0
        %v730 = vadd.f32 0.0, %v729
        %v731 = vpop.f32.mrb[0].mxu0
        %v732 = vadd.f32 0.0, %v731
        %v733 = vpop.f32.mrb[0].mxu0
        %v734 = vpop.f32.mrb[0].mxu0
        %735 = vdwg.mxu0
        %736 = vmatprep.subr.bf16.mxu0 %v388
        %737 = vmatpush1.bf16.msra.mxu0 %v387
        %738 = vmatprep.subr.bf16.mxu0 %v406
        %739 = vmatpush1.bf16.msra.mxu0 %v405
        %740 = vmatprep.subr.bf16.mxu0 0
        %741 = vmatpush1.bf16.msra.mxu0 0
        %742 = vmatprep.subr.bf16.mxu0 0
        %743 = vmatpush1.bf16.msra.mxu0 0
        %744 = vmatprep.subr.bf16.mxu0 0
        %745 = vmatpush1.bf16.msra.mxu0 0
        %746 = vmatprep.subr.bf16.mxu0 0
        %747 = vmatpush1.bf16.msra.mxu0 0
        %748 = vmatprep.subr.bf16.mxu0 0
        %749 = vmatpush1.bf16.msra.mxu0 0
        %750 = vmatprep.subr.bf16.mxu0 0
        %751 = vmatpush1.bf16.msra.mxu0 0
        %752 = vmatprep.subr.bf16.mxu0 0
        %753 = vmatpush1.bf16.msra.mxu0 0
        %754 = vmatprep.subr.bf16.mxu0 0
        %755 = vmatpush1.bf16.msra.mxu0 0
        %756 = vmatprep.subr.bf16.mxu0 0
        %757 = vmatpush1.bf16.msra.mxu0 0
        %758 = vmatprep.subr.bf16.mxu0 0
        %759 = vmatpush1.bf16.msra.mxu0 0
        %760 = vmatprep.subr.bf16.mxu0 0
        %761 = vmatpush1.bf16.msra.mxu0 0
        %762 = vmatprep.subr.bf16.mxu0 0
        %763 = vmatpush1.bf16.msra.mxu0 0
        %764 = vmatprep.subr.bf16.mxu0 0
        %765 = vmatpush1.bf16.msra.mxu0 0
        %766 = vmatprep.subr.bf16.mxu0 0
        %767 = vmatpush1.bf16.msra.mxu0 0
        %768 = vmatprep.mubr.bf16.mxu0 0
        %769 = vmatmul.mubr.bf16.gmra.mrb[0].mxu0 %v447
        %v770 = vpop.f32.mrb[0].mxu0
        %v771 = vadd.f32 0.0, %v770
        %v772 = vpop.f32.mrb[0].mxu0
        %v773 = vadd.f32 0.0, %v772
        %v774 = vpop.f32.mrb[0].mxu0
        %v775 = vpop.f32.mrb[0].mxu0
        %776 = vdwg.mxu0
        %777 = vmatprep.subr.bf16.mxu0 %v390
        %778 = vmatpush1.bf16.msra.mxu0 %v389
        %779 = vmatprep.subr.bf16.mxu0 %v408
        %780 = vmatpush1.bf16.msra.mxu0 %v407
        %781 = vmatprep.subr.bf16.mxu0 0
        %782 = vmatpush1.bf16.msra.mxu0 0
        %783 = vmatprep.subr.bf16.mxu0 0
        %784 = vmatpush1.bf16.msra.mxu0 0
        %785 = vmatprep.subr.bf16.mxu0 0
        %786 = vmatpush1.bf16.msra.mxu0 0
        %787 = vmatprep.subr.bf16.mxu0 0
        %788 = vmatpush1.bf16.msra.mxu0 0
        %789 = vmatprep.subr.bf16.mxu0 0
        %790 = vmatpush1.bf16.msra.mxu0 0
        %791 = vmatprep.subr.bf16.mxu0 0
        %792 = vmatpush1.bf16.msra.mxu0 0
        %793 = vmatprep.subr.bf16.mxu0 0
        %794 = vmatpush1.bf16.msra.mxu0 0
        %795 = vmatprep.subr.bf16.mxu0 0
        %796 = vmatpush1.bf16.msra.mxu0 0
        %797 = vmatprep.subr.bf16.mxu0 0
        %798 = vmatpush1.bf16.msra.mxu0 0
        %799 = vmatprep.subr.bf16.mxu0 0
        %800 = vmatpush1.bf16.msra.mxu0 0
        %801 = vmatprep.subr.bf16.mxu0 0
        %802 = vmatpush1.bf16.msra.mxu0 0
        %803 = vmatprep.subr.bf16.mxu0 0
        %804 = vmatpush1.bf16.msra.mxu0 0
        %805 = vmatprep.subr.bf16.mxu0 0
        %806 = vmatpush1.bf16.msra.mxu0 0
        %807 = vmatprep.subr.bf16.mxu0 0
        %808 = vmatpush1.bf16.msra.mxu0 0
        %809 = vmatprep.mubr.bf16.mxu0 0
        %810 = vmatmul.mubr.bf16.gmra.mrb[0].mxu0 %v447
        %v811 = vpop.f32.mrb[0].mxu0
        %v812 = vadd.f32 0.0, %v811
        %v813 = vpop.f32.mrb[0].mxu0
        %v814 = vadd.f32 0.0, %v813
        %v815 = vpop.f32.mrb[0].mxu0
        %v816 = vpop.f32.mrb[0].mxu0
        %817 = vdwg.mxu0
        %v818 = vmul.f32 %v648, %v812
        %v819 = vmul.f32 %v650, %v812
        %v820 = vmul.f32 %v689, %v812
        %v821 = vmul.f32 %v691, %v812
        %v822 = vmul.f32 %v730, %v814
        %v823 = vmul.f32 %v732, %v814
        %v824 = vmul.f32 %v771, %v814
        %v825 = vmul.f32 %v773, %v814
        %v826 = vsub.f32 %v818, %v822
        %v827 = vsub.f32 %v819, %v823
        %v828 = vsub.f32 %v820, %v824
        %v829 = vsub.f32 %v821, %v825
        %v830 = vmul.f32 %v648, %v814
        %v831 = vmul.f32 %v650, %v814
        %v832 = vmul.f32 %v689, %v814
        %v833 = vmul.f32 %v691, %v814
        %v834 = vmul.f32 %v730, %v812
        %v835 = vmul.f32 %v732, %v812
        %v836 = vmul.f32 %v771, %v812
        %v837 = vmul.f32 %v773, %v812
        %v838 = vadd.f32 %v830, %v834
        %v839 = vadd.f32 %v831, %v835
        %v840 = vadd.f32 %v832, %v836
        %v841 = vadd.f32 %v833, %v837
        %v842 = vpack.c.bf16 %v826, %v826
        %v843 = vpack.c.bf16 %v827, %v827
        %v844 = vpack.c.bf16 %v828, %v828
        %v845 = vpack.c.bf16 %v829, %v829
        %v846 = vpack.c.bf16 %v838, %v838
        %v847 = vpack.c.bf16 %v839, %v839
        %v848 = vpack.c.bf16 %v840, %v840
        %v849 = vpack.c.bf16 %v841, %v841
        %v850 = vld [vmem:[%s3] sm:$0xf]
        %v851 = vld [vmem:[#allocation2] sm:$0xff]
        %v853 = vlaneseq
        %v854 = vshrl.u32 %v853, 7
        %v855 = vsub.s32 0, %v854
        %v856 = vrot.slane %v851, %v855
        %v857 = vlaneseq
        %v858 = vshrl.u32 %v857, 7
        %v859 = vsub.s32 1, %v858
        %v860 = vrot.slane %v851, %v859
        %v861 = vlaneseq
        %v862 = vshrl.u32 %v861, 7
        %v863 = vsub.s32 2, %v862
        %v864 = vrot.slane %v851, %v863
        %v865 = vlaneseq
        %v866 = vshrl.u32 %v865, 7
        %v867 = vsub.s32 3, %v866
        %v868 = vrot.slane %v851, %v867
        %v869 = vlaneseq
        %v870 = vshrl.u32 %v869, 7
        %v871 = vsub.s32 4, %v870
        %v872 = vrot.slane %v851, %v871
        %v873 = vlaneseq
        %v874 = vshrl.u32 %v873, 7
        %v875 = vsub.s32 5, %v874
        %v876 = vrot.slane %v851, %v875
        %v877 = vlaneseq
        %v878 = vshrl.u32 %v877, 7
        %v879 = vsub.s32 6, %v878
        %v880 = vrot.slane %v851, %v879
        %v881 = vlaneseq
        %v882 = vshrl.u32 %v881, 7
        %v883 = vsub.s32 7, %v882
        %v884 = vrot.slane %v851, %v883
        %vm893 = vcmask 64512
        %v895 = vsel %vm893, %v850, 0
        %vm897 = vcmask 1043456
        %v899 = vsel %vm897, %v842, 0
        %v902 = vsel %vm897, %v843, 0
        %v905 = vsel %vm897, %v844, 0
        %v908 = vsel %vm897, %v845, 0
        %v911 = vsel %vm897, %v846, 0
        %v914 = vsel %vm897, %v847, 0
        %v917 = vsel %vm897, %v848, 0
        %v920 = vsel %vm897, %v849, 0
        %922 = vmatprep.subr.bf16.mxu0 %v902
        %923 = vmatpush1.bf16.msra.mxu0 %v899
        %924 = vmatprep.subr.bf16.mxu0 0
        %925 = vmatpush1.bf16.msra.mxu0 0
        %926 = vmatprep.subr.bf16.mxu0 0
        %927 = vmatpush1.bf16.msra.mxu0 0
        %928 = vmatprep.subr.bf16.mxu0 0
        %929 = vmatpush1.bf16.msra.mxu0 0
        %930 = vmatprep.subr.bf16.mxu0 0
        %931 = vmatpush1.bf16.msra.mxu0 0
        %932 = vmatprep.subr.bf16.mxu0 0
        %933 = vmatpush1.bf16.msra.mxu0 0
        %934 = vmatprep.subr.bf16.mxu0 0
        %935 = vmatpush1.bf16.msra.mxu0 0
        %936 = vmatprep.subr.bf16.mxu0 0
        %937 = vmatpush1.bf16.msra.mxu0 0
        %938 = vmatprep.subr.bf16.mxu0 0
        %939 = vmatpush1.bf16.msra.mxu0 0
        %940 = vmatprep.subr.bf16.mxu0 0
        %941 = vmatpush1.bf16.msra.mxu0 0
        %942 = vmatprep.subr.bf16.mxu0 0
        %943 = vmatpush1.bf16.msra.mxu0 0
        %944 = vmatprep.subr.bf16.mxu0 0
        %945 = vmatpush1.bf16.msra.mxu0 0
        %946 = vmatprep.subr.bf16.mxu0 0
        %947 = vmatpush1.bf16.msra.mxu0 0
        %948 = vmatprep.subr.bf16.mxu0 0
        %949 = vmatpush1.bf16.msra.mxu0 0
        %950 = vmatprep.subr.bf16.mxu0 0
        %951 = vmatpush1.bf16.msra.mxu0 0
        %952 = vmatprep.subr.bf16.mxu0 0
        %953 = vmatpush1.bf16.msra.mxu0 0
        %954 = vmatprep.mubr.bf16.mxu0 0
        %955 = vmatmul.mubr.bf16.gmra.mrb[0].mxu0 %v895
        %v956 = vpop.f32.mrb[0].mxu0
        %v957 = vadd.f32 %v856, %v956
        %v958 = vpop.f32.mrb[0].mxu0
        %v959 = vadd.f32 %v860, %v958
        %v960 = vpop.f32.mrb[0].mxu0
        %v961 = vpop.f32.mrb[0].mxu0
        %962 = vdwg.mxu0
        %963 = vmatprep.subr.bf16.mxu0 %v908
        %964 = vmatpush1.bf16.msra.mxu0 %v905
        %965 = vmatprep.subr.bf16.mxu0 0
        %966 = vmatpush1.bf16.msra.mxu0 0
        %967 = vmatprep.subr.bf16.mxu0 0
        %968 = vmatpush1.bf16.msra.mxu0 0
        %969 = vmatprep.subr.bf16.mxu0 0
        %970 = vmatpush1.bf16.msra.mxu0 0
        %971 = vmatprep.subr.bf16.mxu0 0
        %972 = vmatpush1.bf16.msra.mxu0 0
        %973 = vmatprep.subr.bf16.mxu0 0
        %974 = vmatpush1.bf16.msra.mxu0 0
        %975 = vmatprep.subr.bf16.mxu0 0
        %976 = vmatpush1.bf16.msra.mxu0 0
        %977 = vmatprep.subr.bf16.mxu0 0
        %978 = vmatpush1.bf16.msra.mxu0 0
        %979 = vmatprep.subr.bf16.mxu0 0
        %980 = vmatpush1.bf16.msra.mxu0 0
        %981 = vmatprep.subr.bf16.mxu0 0
        %982 = vmatpush1.bf16.msra.mxu0 0
        %983 = vmatprep.subr.bf16.mxu0 0
        %984 = vmatpush1.bf16.msra.mxu0 0
        %985 = vmatprep.subr.bf16.mxu0 0
        %986 = vmatpush1.bf16.msra.mxu0 0
        %987 = vmatprep.subr.bf16.mxu0 0
        %988 = vmatpush1.bf16.msra.mxu0 0
        %989 = vmatprep.subr.bf16.mxu0 0
        %990 = vmatpush1.bf16.msra.mxu0 0
        %991 = vmatprep.subr.bf16.mxu0 0
        %992 = vmatpush1.bf16.msra.mxu0 0
        %993 = vmatprep.subr.bf16.mxu0 0
        %994 = vmatpush1.bf16.msra.mxu0 0
        %995 = vmatprep.mubr.bf16.mxu0 0
        %996 = vmatmul.mubr.bf16.gmra.mrb[0].mxu0 %v895
        %v997 = vpop.f32.mrb[0].mxu0
        %v998 = vadd.f32 %v864, %v997
        %v999 = vpop.f32.mrb[0].mxu0
        %v1000 = vadd.f32 %v868, %v999
        %v1001 = vpop.f32.mrb[0].mxu0
        %v1002 = vpop.f32.mrb[0].mxu0
        %1003 = vdwg.mxu0
        %1004 = vmatprep.subr.bf16.mxu0 %v914
        %1005 = vmatpush1.bf16.msra.mxu0 %v911
        %1006 = vmatprep.subr.bf16.mxu0 0
        %1007 = vmatpush1.bf16.msra.mxu0 0
        %1008 = vmatprep.subr.bf16.mxu0 0
        %1009 = vmatpush1.bf16.msra.mxu0 0
        %1010 = vmatprep.subr.bf16.mxu0 0
        %1011 = vmatpush1.bf16.msra.mxu0 0
        %1012 = vmatprep.subr.bf16.mxu0 0
        %1013 = vmatpush1.bf16.msra.mxu0 0
        %1014 = vmatprep.subr.bf16.mxu0 0
        %1015 = vmatpush1.bf16.msra.mxu0 0
        %1016 = vmatprep.subr.bf16.mxu0 0
        %1017 = vmatpush1.bf16.msra.mxu0 0
        %1018 = vmatprep.subr.bf16.mxu0 0
        %1019 = vmatpush1.bf16.msra.mxu0 0
        %1020 = vmatprep.subr.bf16.mxu0 0
        %1021 = vmatpush1.bf16.msra.mxu0 0
        %1022 = vmatprep.subr.bf16.mxu0 0
        %1023 = vmatpush1.bf16.msra.mxu0 0
        %1024 = vmatprep.subr.bf16.mxu0 0
        %1025 = vmatpush1.bf16.msra.mxu0 0
        %1026 = vmatprep.subr.bf16.mxu0 0
        %1027 = vmatpush1.bf16.msra.mxu0 0
        %1028 = vmatprep.subr.bf16.mxu0 0
        %1029 = vmatpush1.bf16.msra.mxu0 0
        %1030 = vmatprep.subr.bf16.mxu0 0
        %1031 = vmatpush1.bf16.msra.mxu0 0
        %1032 = vmatprep.subr.bf16.mxu0 0
        %1033 = vmatpush1.bf16.msra.mxu0 0
        %1034 = vmatprep.subr.bf16.mxu0 0
        %1035 = vmatpush1.bf16.msra.mxu0 0
        %1036 = vmatprep.mubr.bf16.mxu0 0
        %1037 = vmatmul.mubr.bf16.gmra.mrb[0].mxu0 %v895
        %v1038 = vpop.f32.mrb[0].mxu0
        %v1039 = vadd.f32 %v872, %v1038
        %v1040 = vpop.f32.mrb[0].mxu0
        %v1041 = vadd.f32 %v876, %v1040
        %v1042 = vpop.f32.mrb[0].mxu0
        %v1043 = vpop.f32.mrb[0].mxu0
        %1044 = vdwg.mxu0
        %1045 = vmatprep.subr.bf16.mxu0 %v920
        %1046 = vmatpush1.bf16.msra.mxu0 %v917
        %1047 = vmatprep.subr.bf16.mxu0 0
        %1048 = vmatpush1.bf16.msra.mxu0 0
        %1049 = vmatprep.subr.bf16.mxu0 0
        %1050 = vmatpush1.bf16.msra.mxu0 0
        %1051 = vmatprep.subr.bf16.mxu0 0
        %1052 = vmatpush1.bf16.msra.mxu0 0
        %1053 = vmatprep.subr.bf16.mxu0 0
        %1054 = vmatpush1.bf16.msra.mxu0 0
        %1055 = vmatprep.subr.bf16.mxu0 0
        %1056 = vmatpush1.bf16.msra.mxu0 0
        %1057 = vmatprep.subr.bf16.mxu0 0
        %1058 = vmatpush1.bf16.msra.mxu0 0
        %1059 = vmatprep.subr.bf16.mxu0 0
        %1060 = vmatpush1.bf16.msra.mxu0 0
        %1061 = vmatprep.subr.bf16.mxu0 0
        %1062 = vmatpush1.bf16.msra.mxu0 0
        %1063 = vmatprep.subr.bf16.mxu0 0
        %1064 = vmatpush1.bf16.msra.mxu0 0
        %1065 = vmatprep.subr.bf16.mxu0 0
        %1066 = vmatpush1.bf16.msra.mxu0 0
        %1067 = vmatprep.subr.bf16.mxu0 0
        %1068 = vmatpush1.bf16.msra.mxu0 0
        %1069 = vmatprep.subr.bf16.mxu0 0
        %1070 = vmatpush1.bf16.msra.mxu0 0
        %1071 = vmatprep.subr.bf16.mxu0 0
        %1072 = vmatpush1.bf16.msra.mxu0 0
        %1073 = vmatprep.subr.bf16.mxu0 0
        %1074 = vmatpush1.bf16.msra.mxu0 0
        %1075 = vmatprep.subr.bf16.mxu0 0
        %1076 = vmatpush1.bf16.msra.mxu0 0
        %1077 = vmatprep.mubr.bf16.mxu0 0
        %1078 = vmatmul.mubr.bf16.gmra.mrb[0].mxu0 %v895
        %v1079 = vpop.f32.mrb[0].mxu0
        %v1080 = vadd.f32 %v880, %v1079
        %v1081 = vpop.f32.mrb[0].mxu0
        %v1082 = vadd.f32 %v884, %v1081
        %v1083 = vpop.f32.mrb[0].mxu0
        %v1084 = vpop.f32.mrb[0].mxu0
        %1085 = vdwg.mxu0
        %v1094 = vcombine.high %v957, %v959
        %v1095 = vcombine.high %v998, %v1000
        %v1096 = vcombine.high %v1039, %v1041
        %v1097 = vcombine.high %v1080, %v1082
        %v1099 = vunpack.c.l.s4 1966171168
        %v1100 = vunpack.c.0.s8 %v1099
        %v1101 = vlaneseq
        %v1102 = vshrl.u32 %v1101, 7
        %v1103 = vsub.s32 %v1100, %v1102
        %v1104 = vrot.slane %v1094, %v1103
        %v1106 = vunpack.c.l.s4 1966171168
        %v1107 = vunpack.c.0.s8 %v1106
        %v1108 = vlaneseq
        %v1109 = vshrl.u32 %v1108, 7
        %v1110 = vsub.s32 %v1107, %v1109
        %v1111 = vrot.slane %v1095, %v1110
        %v1113 = vunpack.c.l.s4 1966171168
        %v1114 = vunpack.c.0.s8 %v1113
        %v1115 = vlaneseq
        %v1116 = vshrl.u32 %v1115, 7
        %v1117 = vsub.s32 %v1114, %v1116
        %v1118 = vrot.slane %v1096, %v1117
        %v1120 = vunpack.c.l.s4 1966171168
        %v1121 = vunpack.c.0.s8 %v1120
        %v1122 = vlaneseq
        %v1123 = vshrl.u32 %v1122, 7
        %v1124 = vsub.s32 %v1121, %v1123
        %v1125 = vrot.slane %v1097, %v1124
        %v1126 = vcombine.high %v1104, %v1111
        %v1127 = vcombine.high %v1118, %v1125
        %v1129 = vunpack.c.l.s4 1966171168
        %v1130 = vunpack.c.0.s8 %v1129
        %v1131 = vlaneseq
        %v1132 = vshrl.u32 %v1131, 7
        %v1133 = vsub.s32 %v1130, %v1132
        %v1134 = vrot.slane %v1126, %v1133
        %v1136 = vunpack.c.l.s4 1966171168
        %v1137 = vunpack.c.0.s8 %v1136
        %v1138 = vlaneseq
        %v1139 = vshrl.u32 %v1138, 7
        %v1140 = vsub.s32 %v1137, %v1139
        %v1141 = vrot.slane %v1127, %v1140
        %v1142 = vcombine.high %v1134, %v1141
        %1144 = vst [vmem:[#allocation2] sm:$0xff] %v1142
        %v1145 = vmul.f32 %v484, %v957
        %v1146 = vmul.f32 %v486, %v959
        %v1147 = vmul.f32 %v525, %v998
        %v1148 = vmul.f32 %v527, %v1000
        %v1149 = vmul.f32 %v566, %v1039
        %v1150 = vmul.f32 %v568, %v1041
        %v1151 = vmul.f32 %v607, %v1080
        %v1152 = vmul.f32 %v609, %v1082
        %v1153 = vadd.f32 %v1145, %v1149
        %v1154 = vadd.f32 %v1146, %v1150
        %v1155 = vadd.f32 %v1147, %v1151
        %v1156 = vadd.f32 %v1148, %v1152
        %v1157 = vmul.f32 %v484, %v1039
        %v1158 = vmul.f32 %v486, %v1041
        %v1159 = vmul.f32 %v525, %v1080
        %v1160 = vmul.f32 %v527, %v1082
        %v1161 = vmul.f32 %v566, %v957
        %v1162 = vmul.f32 %v568, %v959
        %v1163 = vmul.f32 %v607, %v998
        %v1164 = vmul.f32 %v609, %v1000
        %v1165 = vsub.f32 %v1157, %v1161
        %v1166 = vsub.f32 %v1158, %v1162
        %v1167 = vsub.f32 %v1159, %v1163
        %v1168 = vsub.f32 %v1160, %v1164
        %v1169 = vpack.c.bf16 %v1153, %v1153
        %v1170 = vpack.c.bf16 %v1154, %v1154
        %v1171 = vpack.c.bf16 %v1155, %v1155
        %v1172 = vpack.c.bf16 %v1156, %v1156
        %v1173 = vpack.c.bf16 %v1165, %v1165
        %v1174 = vpack.c.bf16 %v1166, %v1166
        %v1175 = vpack.c.bf16 %v1167, %v1167
        %v1176 = vpack.c.bf16 %v1168, %v1168
        %v1177 = vld [vmem:[%s2] sm:$0xf]
        %v1178 = vld [vmem:[%s2 + $0x4] sm:$0xf]
        %v1179 = vld [vmem:[%s2 + $0x8] sm:$0xf]
        %v1180 = vld [vmem:[%s2 + $0xc] sm:$0xf]
        %v1181 = vld [vmem:[%s2 + $0x10] sm:$0xf]
        %v1182 = vld [vmem:[%s2 + $0x14] sm:$0xf]
        %v1183 = vld [vmem:[%s2 + $0x18] sm:$0xf]
        %v1184 = vld [vmem:[%s2 + $0x1c] sm:$0xf]
        %v1185 = vld [vmem:[%s2 + $0x20] sm:$0xf]
        %v1186 = vld [vmem:[%s2 + $0x24] sm:$0xf]
        %v1187 = vld [vmem:[%s2 + $0x28] sm:$0xf]
        %v1188 = vld [vmem:[%s2 + $0x2c] sm:$0xf]
        %v1189 = vld [vmem:[%s2 + $0x30] sm:$0xf]
        %v1190 = vld [vmem:[%s2 + $0x34] sm:$0xf]
        %v1191 = vld [vmem:[%s2 + $0x38] sm:$0xf]
        %v1192 = vld [vmem:[%s2 + $0x3c] sm:$0xf]
        %v1193 = vld [vmem:[%s2 + $0x40] sm:$0xf]
        %v1194 = vld [vmem:[%s2 + $0x44] sm:$0xf]
        %v1195 = vld [vmem:[%s2 + $0x48] sm:$0xf]
        %v1196 = vld [vmem:[%s2 + $0x4c] sm:$0xf]
        %v1197 = vld [vmem:[%s2 + $0x50] sm:$0xf]
        %v1198 = vld [vmem:[%s2 + $0x54] sm:$0xf]
        %v1199 = vld [vmem:[%s2 + $0x58] sm:$0xf]
        %v1200 = vld [vmem:[%s2 + $0x5c] sm:$0xf]
        %v1201 = vld [vmem:[%s2 + $0x60] sm:$0xf]
        %v1202 = vld [vmem:[%s2 + $0x64] sm:$0xf]
        %v1203 = vld [vmem:[%s2 + $0x68] sm:$0xf]
        %v1204 = vld [vmem:[%s2 + $0x6c] sm:$0xf]
        %v1205 = vld [vmem:[%s2 + $0x70] sm:$0xf]
        %v1206 = vld [vmem:[%s2 + $0x74] sm:$0xf]
        %v1207 = vld [vmem:[%s2 + $0x78] sm:$0xf]
        %v1208 = vld [vmem:[%s2 + $0x7c] sm:$0xf]
        %v1209 = vld [vmem:[%s2 + $0x80] sm:$0xf]
        %v1210 = vld [vmem:[%s2 + $0x84] sm:$0xf]
        %v1211 = vld [vmem:[%s2 + $0x88] sm:$0xf]
        %v1212 = vld [vmem:[%s2 + $0x8c] sm:$0xf]
        %v1213 = vld [vmem:[%s2 + $0x90] sm:$0xf]
        %v1214 = vld [vmem:[%s2 + $0x94] sm:$0xf]
        %v1215 = vld [vmem:[%s2 + $0x98] sm:$0xf]
        %v1216 = vld [vmem:[%s2 + $0x9c] sm:$0xf]
        %v1217 = vld [vmem:[%s2 + $0xa0] sm:$0xf]
        %v1218 = vld [vmem:[%s2 + $0xa4] sm:$0xf]
        %v1219 = vld [vmem:[%s2 + $0xa8] sm:$0xf]
        %v1220 = vld [vmem:[%s2 + $0xac] sm:$0xf]
        %v1221 = vld [vmem:[%s2 + $0xb0] sm:$0xf]
        %v1222 = vld [vmem:[%s2 + $0xb4] sm:$0xf]
        %v1223 = vld [vmem:[%s2 + $0xb8] sm:$0xf]
        %v1224 = vld [vmem:[%s2 + $0xbc] sm:$0xf]
        %v1225 = vld [vmem:[%s2 + $0xc0] sm:$0xf]
        %v1226 = vld [vmem:[%s2 + $0xc4] sm:$0xf]
        %v1227 = vld [vmem:[%s2 + $0xc8] sm:$0xf]
        %v1228 = vld [vmem:[%s2 + $0xcc] sm:$0xf]
        %v1229 = vld [vmem:[%s2 + $0xd0] sm:$0xf]
        %v1230 = vld [vmem:[%s2 + $0xd4] sm:$0xf]
        %v1231 = vld [vmem:[%s2 + $0xd8] sm:$0xf]
        %v1232 = vld [vmem:[%s2 + $0xdc] sm:$0xf]
        %v1233 = vld [vmem:[%s2 + $0xe0] sm:$0xf]
        %v1234 = vld [vmem:[%s2 + $0xe4] sm:$0xf]
        %v1235 = vld [vmem:[%s2 + $0xe8] sm:$0xf]
        %v1236 = vld [vmem:[%s2 + $0xec] sm:$0xf]
        %v1237 = vld [vmem:[%s2 + $0xf0] sm:$0xf]
        %v1238 = vld [vmem:[%s2 + $0xf4] sm:$0xf]
        %v1239 = vld [vmem:[%s2 + $0xf8] sm:$0xf]
        %v1240 = vld [vmem:[%s2 + $0xfc] sm:$0xf]
        %v1241 = vld [vmem:[%s2 + $0x100] sm:$0xf]
        %v1242 = vld [vmem:[%s2 + $0x104] sm:$0xf]
        %v1243 = vld [vmem:[%s2 + $0x108] sm:$0xf]
        %v1244 = vld [vmem:[%s2 + $0x10c] sm:$0xf]
        %v1245 = vld [vmem:[%s2 + $0x110] sm:$0xf]
        %v1246 = vld [vmem:[%s2 + $0x114] sm:$0xf]
        %v1247 = vld [vmem:[%s2 + $0x118] sm:$0xf]
        %v1248 = vld [vmem:[%s2 + $0x11c] sm:$0xf]
        %v1249 = vld [vmem:[%s2 + $0x120] sm:$0xf]
        %v1250 = vld [vmem:[%s2 + $0x124] sm:$0xf]
        %v1251 = vld [vmem:[%s2 + $0x128] sm:$0xf]
        %v1252 = vld [vmem:[%s2 + $0x12c] sm:$0xf]
        %v1253 = vld [vmem:[%s2 + $0x130] sm:$0xf]
        %v1254 = vld [vmem:[%s2 + $0x134] sm:$0xf]
        %v1255 = vld [vmem:[%s2 + $0x138] sm:$0xf]
        %v1256 = vld [vmem:[%s2 + $0x13c] sm:$0xf]
        %v1257 = vld [vmem:[%s2 + $0x140] sm:$0xf]
        %v1258 = vld [vmem:[%s2 + $0x144] sm:$0xf]
        %v1259 = vld [vmem:[%s2 + $0x148] sm:$0xf]
        %v1260 = vld [vmem:[%s2 + $0x14c] sm:$0xf]
        %v1261 = vld [vmem:[%s2 + $0x150] sm:$0xf]
        %v1262 = vld [vmem:[%s2 + $0x154] sm:$0xf]
        %v1263 = vld [vmem:[%s2 + $0x158] sm:$0xf]
        %v1264 = vld [vmem:[%s2 + $0x15c] sm:$0xf]
        %v1265 = vld [vmem:[%s2 + $0x160] sm:$0xf]
        %v1266 = vld [vmem:[%s2 + $0x164] sm:$0xf]
        %v1267 = vld [vmem:[%s2 + $0x168] sm:$0xf]
        %v1268 = vld [vmem:[%s2 + $0x16c] sm:$0xf]
        %v1269 = vld [vmem:[%s2 + $0x170] sm:$0xf]
        %v1270 = vld [vmem:[%s2 + $0x174] sm:$0xf]
        %v1271 = vld [vmem:[%s2 + $0x178] sm:$0xf]
        %v1272 = vld [vmem:[%s2 + $0x17c] sm:$0xf]
        %v1273 = vld [vmem:[%s2 + $0x180] sm:$0xf]
        %v1274 = vld [vmem:[%s2 + $0x184] sm:$0xf]
        %v1275 = vld [vmem:[%s2 + $0x188] sm:$0xf]
        %v1276 = vld [vmem:[%s2 + $0x18c] sm:$0xf]
        %v1277 = vld [vmem:[%s2 + $0x190] sm:$0xf]
        %v1278 = vld [vmem:[%s2 + $0x194] sm:$0xf]
        %v1279 = vld [vmem:[%s2 + $0x198] sm:$0xf]
        %v1280 = vld [vmem:[%s2 + $0x19c] sm:$0xf]
        %v1281 = vld [vmem:[%s2 + $0x1a0] sm:$0xf]
        %v1282 = vld [vmem:[%s2 + $0x1a4] sm:$0xf]
        %v1283 = vld [vmem:[%s2 + $0x1a8] sm:$0xf]
        %v1284 = vld [vmem:[%s2 + $0x1ac] sm:$0xf]
        %v1285 = vld [vmem:[%s2 + $0x1b0] sm:$0xf]
        %v1286 = vld [vmem:[%s2 + $0x1b4] sm:$0xf]
        %v1287 = vld [vmem:[%s2 + $0x1b8] sm:$0xf]
        %v1288 = vld [vmem:[%s2 + $0x1bc] sm:$0xf]
        %v1289 = vld [vmem:[%s2 + $0x1c0] sm:$0xf]
        %v1290 = vld [vmem:[%s2 + $0x1c4] sm:$0xf]
        %v1291 = vld [vmem:[%s2 + $0x1c8] sm:$0xf]
        %v1292 = vld [vmem:[%s2 + $0x1cc] sm:$0xf]
        %v1293 = vld [vmem:[%s2 + $0x1d0] sm:$0xf]
        %v1294 = vld [vmem:[%s2 + $0x1d4] sm:$0xf]
        %v1295 = vld [vmem:[%s2 + $0x1d8] sm:$0xf]
        %v1296 = vld [vmem:[%s2 + $0x1dc] sm:$0xf]
        %v1297 = vld [vmem:[%s2 + $0x1e0] sm:$0xf]
        %v1298 = vld [vmem:[%s2 + $0x1e4] sm:$0xf]
        %v1299 = vld [vmem:[%s2 + $0x1e8] sm:$0xf]
        %v1300 = vld [vmem:[%s2 + $0x1ec] sm:$0xf]
        %v1301 = vld [vmem:[%s2 + $0x1f0] sm:$0xf]
        %v1302 = vld [vmem:[%s2 + $0x1f4] sm:$0xf]
        %v1303 = vld [vmem:[%s2 + $0x1f8] sm:$0xf]
        %v1304 = vld [vmem:[%s2 + $0x1fc] sm:$0xf]
        %v1433 = vunpack.c.l.b16 %v1177
        %v1434 = vunpack.c.l.b16 %v1178
        %v1435 = vunpack.c.l.b16 %v1179
        %v1436 = vunpack.c.l.b16 %v1180
        %v1437 = vunpack.c.l.b16 %v1181
        %v1438 = vunpack.c.l.b16 %v1182
        %v1439 = vunpack.c.l.b16 %v1183
        %v1440 = vunpack.c.l.b16 %v1184
        %v1441 = vunpack.c.l.b16 %v1185
        %v1442 = vunpack.c.l.b16 %v1186
        %v1443 = vunpack.c.l.b16 %v1187
        %v1444 = vunpack.c.l.b16 %v1188
        %v1445 = vunpack.c.l.b16 %v1189
        %v1446 = vunpack.c.l.b16 %v1190
        %v1447 = vunpack.c.l.b16 %v1191
        %v1448 = vunpack.c.l.b16 %v1192
        %v1449 = vunpack.c.l.b16 %v1193
        %v1450 = vunpack.c.l.b16 %v1194
        %v1451 = vunpack.c.l.b16 %v1195
        %v1452 = vunpack.c.l.b16 %v1196
        %v1453 = vunpack.c.l.b16 %v1197
        %v1454 = vunpack.c.l.b16 %v1198
        %v1455 = vunpack.c.l.b16 %v1199
        %v1456 = vunpack.c.l.b16 %v1200
        %v1457 = vunpack.c.l.b16 %v1201
        %v1458 = vunpack.c.l.b16 %v1202
        %v1459 = vunpack.c.l.b16 %v1203
        %v1460 = vunpack.c.l.b16 %v1204
        %v1461 = vunpack.c.l.b16 %v1205
        %v1462 = vunpack.c.l.b16 %v1206
        %v1463 = vunpack.c.l.b16 %v1207
        %v1464 = vunpack.c.l.b16 %v1208
        %v1465 = vunpack.c.l.b16 %v1209
        %v1466 = vunpack.c.l.b16 %v1210
        %v1467 = vunpack.c.l.b16 %v1211
        %v1468 = vunpack.c.l.b16 %v1212
        %v1469 = vunpack.c.l.b16 %v1213
        %v1470 = vunpack.c.l.b16 %v1214
        %v1471 = vunpack.c.l.b16 %v1215
        %v1472 = vunpack.c.l.b16 %v1216
        %v1473 = vunpack.c.l.b16 %v1217
        %v1474 = vunpack.c.l.b16 %v1218
        %v1475 = vunpack.c.l.b16 %v1219
        %v1476 = vunpack.c.l.b16 %v1220
        %v1477 = vunpack.c.l.b16 %v1221
        %v1478 = vunpack.c.l.b16 %v1222
        %v1479 = vunpack.c.l.b16 %v1223
        %v1480 = vunpack.c.l.b16 %v1224
        %v1481 = vunpack.c.l.b16 %v1225
        %v1482 = vunpack.c.l.b16 %v1226
        %v1483 = vunpack.c.l.b16 %v1227
        %v1484 = vunpack.c.l.b16 %v1228
        %v1485 = vunpack.c.l.b16 %v1229
        %v1486 = vunpack.c.l.b16 %v1230
        %v1487 = vunpack.c.l.b16 %v1231
        %v1488 = vunpack.c.l.b16 %v1232
        %v1489 = vunpack.c.l.b16 %v1233
        %v1490 = vunpack.c.l.b16 %v1234
        %v1491 = vunpack.c.l.b16 %v1235
        %v1492 = vunpack.c.l.b16 %v1236
        %v1493 = vunpack.c.l.b16 %v1237
        %v1494 = vunpack.c.l.b16 %v1238
        %v1495 = vunpack.c.l.b16 %v1239
        %v1496 = vunpack.c.l.b16 %v1240
        %v1497 = vunpack.c.l.b16 %v1241
        %v1498 = vunpack.c.l.b16 %v1242
        %v1499 = vunpack.c.l.b16 %v1243
        %v1500 = vunpack.c.l.b16 %v1244
        %v1501 = vunpack.c.l.b16 %v1245
        %v1502 = vunpack.c.l.b16 %v1246
        %v1503 = vunpack.c.l.b16 %v1247
        %v1504 = vunpack.c.l.b16 %v1248
        %v1505 = vunpack.c.l.b16 %v1249
        %v1506 = vunpack.c.l.b16 %v1250
        %v1507 = vunpack.c.l.b16 %v1251
        %v1508 = vunpack.c.l.b16 %v1252
        %v1509 = vunpack.c.l.b16 %v1253
        %v1510 = vunpack.c.l.b16 %v1254
        %v1511 = vunpack.c.l.b16 %v1255
        %v1512 = vunpack.c.l.b16 %v1256
        %v1513 = vunpack.c.l.b16 %v1257
        %v1514 = vunpack.c.l.b16 %v1258
        %v1515 = vunpack.c.l.b16 %v1259
        %v1516 = vunpack.c.l.b16 %v1260
        %v1517 = vunpack.c.l.b16 %v1261
        %v1518 = vunpack.c.l.b16 %v1262
        %v1519 = vunpack.c.l.b16 %v1263
        %v1520 = vunpack.c.l.b16 %v1264
        %v1521 = vunpack.c.l.b16 %v1265
        %v1522 = vunpack.c.l.b16 %v1266
        %v1523 = vunpack.c.l.b16 %v1267
        %v1524 = vunpack.c.l.b16 %v1268
        %v1525 = vunpack.c.l.b16 %v1269
        %v1526 = vunpack.c.l.b16 %v1270
        %v1527 = vunpack.c.l.b16 %v1271
        %v1528 = vunpack.c.l.b16 %v1272
        %v1529 = vunpack.c.l.b16 %v1273
        %v1530 = vunpack.c.l.b16 %v1274
        %v1531 = vunpack.c.l.b16 %v1275
        %v1532 = vunpack.c.l.b16 %v1276
        %v1533 = vunpack.c.l.b16 %v1277
        %v1534 = vunpack.c.l.b16 %v1278
        %v1535 = vunpack.c.l.b16 %v1279
        %v1536 = vunpack.c.l.b16 %v1280
        %v1537 = vunpack.c.l.b16 %v1281
        %v1538 = vunpack.c.l.b16 %v1282
        %v1539 = vunpack.c.l.b16 %v1283
        %v1540 = vunpack.c.l.b16 %v1284
        %v1541 = vunpack.c.l.b16 %v1285
        %v1542 = vunpack.c.l.b16 %v1286
        %v1543 = vunpack.c.l.b16 %v1287
        %v1544 = vunpack.c.l.b16 %v1288
        %v1545 = vunpack.c.l.b16 %v1289
        %v1546 = vunpack.c.l.b16 %v1290
        %v1547 = vunpack.c.l.b16 %v1291
        %v1548 = vunpack.c.l.b16 %v1292
        %v1549 = vunpack.c.l.b16 %v1293
        %v1550 = vunpack.c.l.b16 %v1294
        %v1551 = vunpack.c.l.b16 %v1295
        %v1552 = vunpack.c.l.b16 %v1296
        %v1553 = vunpack.c.l.b16 %v1297
        %v1554 = vunpack.c.l.b16 %v1298
        %v1555 = vunpack.c.l.b16 %v1299
        %v1556 = vunpack.c.l.b16 %v1300
        %v1557 = vunpack.c.l.b16 %v1301
        %v1558 = vunpack.c.l.b16 %v1302
        %v1559 = vunpack.c.l.b16 %v1303
        %v1560 = vunpack.c.l.b16 %v1304
        %v1561 = vpack.c.b16 %v1434, %v1433
        %v1562 = vpack.c.b16 %v1436, %v1435
        %v1563 = vpack.c.b16 %v1438, %v1437
        %v1564 = vpack.c.b16 %v1440, %v1439
        %v1565 = vpack.c.b16 %v1442, %v1441
        %v1566 = vpack.c.b16 %v1444, %v1443
        %v1567 = vpack.c.b16 %v1446, %v1445
        %v1568 = vpack.c.b16 %v1448, %v1447
        %v1569 = vpack.c.b16 %v1450, %v1449
        %v1570 = vpack.c.b16 %v1452, %v1451
        %v1571 = vpack.c.b16 %v1454, %v1453
        %v1572 = vpack.c.b16 %v1456, %v1455
        %v1573 = vpack.c.b16 %v1458, %v1457
        %v1574 = vpack.c.b16 %v1460, %v1459
        %v1575 = vpack.c.b16 %v1462, %v1461
        %v1576 = vpack.c.b16 %v1464, %v1463
        %v1577 = vpack.c.b16 %v1466, %v1465
        %v1578 = vpack.c.b16 %v1468, %v1467
        %v1579 = vpack.c.b16 %v1470, %v1469
        %v1580 = vpack.c.b16 %v1472, %v1471
        %v1581 = vpack.c.b16 %v1474, %v1473
        %v1582 = vpack.c.b16 %v1476, %v1475
        %v1583 = vpack.c.b16 %v1478, %v1477
        %v1584 = vpack.c.b16 %v1480, %v1479
        %v1585 = vpack.c.b16 %v1482, %v1481
        %v1586 = vpack.c.b16 %v1484, %v1483
        %v1587 = vpack.c.b16 %v1486, %v1485
        %v1588 = vpack.c.b16 %v1488, %v1487
        %v1589 = vpack.c.b16 %v1490, %v1489
        %v1590 = vpack.c.b16 %v1492, %v1491
        %v1591 = vpack.c.b16 %v1494, %v1493
        %v1592 = vpack.c.b16 %v1496, %v1495
        %v1593 = vpack.c.b16 %v1498, %v1497
        %v1594 = vpack.c.b16 %v1500, %v1499
        %v1595 = vpack.c.b16 %v1502, %v1501
        %v1596 = vpack.c.b16 %v1504, %v1503
        %v1597 = vpack.c.b16 %v1506, %v1505
        %v1598 = vpack.c.b16 %v1508, %v1507
        %v1599 = vpack.c.b16 %v1510, %v1509
        %v1600 = vpack.c.b16 %v1512, %v1511
        %v1601 = vpack.c.b16 %v1514, %v1513
        %v1602 = vpack.c.b16 %v1516, %v1515
        %v1603 = vpack.c.b16 %v1518, %v1517
        %v1604 = vpack.c.b16 %v1520, %v1519
        %v1605 = vpack.c.b16 %v1522, %v1521
        %v1606 = vpack.c.b16 %v1524, %v1523
        %v1607 = vpack.c.b16 %v1526, %v1525
        %v1608 = vpack.c.b16 %v1528, %v1527
        %v1609 = vpack.c.b16 %v1530, %v1529
        %v1610 = vpack.c.b16 %v1532, %v1531
        %v1611 = vpack.c.b16 %v1534, %v1533
        %v1612 = vpack.c.b16 %v1536, %v1535
        %v1613 = vpack.c.b16 %v1538, %v1537
        %v1614 = vpack.c.b16 %v1540, %v1539
        %v1615 = vpack.c.b16 %v1542, %v1541
        %v1616 = vpack.c.b16 %v1544, %v1543
        %v1617 = vpack.c.b16 %v1546, %v1545
        %v1618 = vpack.c.b16 %v1548, %v1547
        %v1619 = vpack.c.b16 %v1550, %v1549
        %v1620 = vpack.c.b16 %v1552, %v1551
        %v1621 = vpack.c.b16 %v1554, %v1553
        %v1622 = vpack.c.b16 %v1556, %v1555
        %v1623 = vpack.c.b16 %v1558, %v1557
        %v1624 = vpack.c.b16 %v1560, %v1559
        %1689 = vmatprep.subr.bf16.mxu0 0
        %1690 = vmatpush1.bf16.msra.mxu0 %v1561
        %1691 = vmatprep.subr.bf16.mxu0 0
        %1692 = vmatpush1.bf16.msra.mxu0 %v1562
        %1693 = vmatprep.subr.bf16.mxu0 0
        %1694 = vmatpush1.bf16.msra.mxu0 %v1563
        %1695 = vmatprep.subr.bf16.mxu0 0
        %1696 = vmatpush1.bf16.msra.mxu0 %v1564
        %1697 = vmatprep.subr.bf16.mxu0 0
        %1698 = vmatpush1.bf16.msra.mxu0 %v1565
        %1699 = vmatprep.subr.bf16.mxu0 0
        %1700 = vmatpush1.bf16.msra.mxu0 %v1566
        %1701 = vmatprep.subr.bf16.mxu0 0
        %1702 = vmatpush1.bf16.msra.mxu0 %v1567
        %1703 = vmatprep.subr.bf16.mxu0 0
        %1704 = vmatpush1.bf16.msra.mxu0 %v1568
        %1705 = vmatprep.subr.bf16.mxu0 0
        %1706 = vmatpush1.bf16.msra.mxu0 %v1569
        %1707 = vmatprep.subr.bf16.mxu0 0
        %1708 = vmatpush1.bf16.msra.mxu0 %v1570
        %1709 = vmatprep.subr.bf16.mxu0 0
        %1710 = vmatpush1.bf16.msra.mxu0 %v1571
        %1711 = vmatprep.subr.bf16.mxu0 0
        %1712 = vmatpush1.bf16.msra.mxu0 %v1572
        %1713 = vmatprep.subr.bf16.mxu0 0
        %1714 = vmatpush1.bf16.msra.mxu0 %v1573
        %1715 = vmatprep.subr.bf16.mxu0 0
        %1716 = vmatpush1.bf16.msra.mxu0 %v1574
        %1717 = vmatprep.subr.bf16.mxu0 0
        %1718 = vmatpush1.bf16.msra.mxu0 %v1575
        %1719 = vmatprep.subr.bf16.mxu0 0
        %1720 = vmatpush1.bf16.msra.mxu0 %v1576
        %1721 = vmatprep.mubr.bf16.mxu0 %v1170
        %1722 = vmatmul.mubr.bf16.gmra.mrb[0].mxu0 %v1169
        %v1723 = vpop.f32.mrb[0].mxu0
        %v1724 = vadd.f32 0.0, %v1723
        %v1725 = vpop.f32.mrb[0].mxu0
        %v1726 = vpop.f32.mrb[0].mxu0
        %v1727 = vpop.f32.mrb[0].mxu0
        %1728 = vdwg.mxu0
        %1729 = vmatprep.subr.bf16.mxu0 0
        %1730 = vmatpush1.bf16.msra.mxu0 %v1577
        %1731 = vmatprep.subr.bf16.mxu0 0
        %1732 = vmatpush1.bf16.msra.mxu0 %v1578
        %1733 = vmatprep.subr.bf16.mxu0 0
        %1734 = vmatpush1.bf16.msra.mxu0 %v1579
        %1735 = vmatprep.subr.bf16.mxu0 0
        %1736 = vmatpush1.bf16.msra.mxu0 %v1580
        %1737 = vmatprep.subr.bf16.mxu0 0
        %1738 = vmatpush1.bf16.msra.mxu0 %v1581
        %1739 = vmatprep.subr.bf16.mxu0 0
        %1740 = vmatpush1.bf16.msra.mxu0 %v1582
        %1741 = vmatprep.subr.bf16.mxu0 0
        %1742 = vmatpush1.bf16.msra.mxu0 %v1583
        %1743 = vmatprep.subr.bf16.mxu0 0
        %1744 = vmatpush1.bf16.msra.mxu0 %v1584
        %1745 = vmatprep.subr.bf16.mxu0 0
        %1746 = vmatpush1.bf16.msra.mxu0 %v1585
        %1747 = vmatprep.subr.bf16.mxu0 0
        %1748 = vmatpush1.bf16.msra.mxu0 %v1586
        %1749 = vmatprep.subr.bf16.mxu0 0
        %1750 = vmatpush1.bf16.msra.mxu0 %v1587
        %1751 = vmatprep.subr.bf16.mxu0 0
        %1752 = vmatpush1.bf16.msra.mxu0 %v1588
        %1753 = vmatprep.subr.bf16.mxu0 0
        %1754 = vmatpush1.bf16.msra.mxu0 %v1589
        %1755 = vmatprep.subr.bf16.mxu0 0
        %1756 = vmatpush1.bf16.msra.mxu0 %v1590
        %1757 = vmatprep.subr.bf16.mxu0 0
        %1758 = vmatpush1.bf16.msra.mxu0 %v1591
        %1759 = vmatprep.subr.bf16.mxu0 0
        %1760 = vmatpush1.bf16.msra.mxu0 %v1592
        %1761 = vmatprep.mubr.bf16.mxu0 %v1172
        %1762 = vmatmul.mubr.bf16.gmra.mrb[0].mxu0 %v1171
        %v1763 = vpop.f32.mrb[0].mxu0
        %v1764 = vadd.f32 %v1724, %v1763
        %v1765 = vpop.f32.mrb[0].mxu0
        %v1766 = vpop.f32.mrb[0].mxu0
        %v1767 = vpop.f32.mrb[0].mxu0
        %1768 = vdwg.mxu0
        %1769 = vmatprep.subr.bf16.mxu0 0
        %1770 = vmatpush1.bf16.msra.mxu0 %v1593
        %1771 = vmatprep.subr.bf16.mxu0 0
        %1772 = vmatpush1.bf16.msra.mxu0 %v1594
        %1773 = vmatprep.subr.bf16.mxu0 0
        %1774 = vmatpush1.bf16.msra.mxu0 %v1595
        %1775 = vmatprep.subr.bf16.mxu0 0
        %1776 = vmatpush1.bf16.msra.mxu0 %v1596
        %1777 = vmatprep.subr.bf16.mxu0 0
        %1778 = vmatpush1.bf16.msra.mxu0 %v1597
        %1779 = vmatprep.subr.bf16.mxu0 0
        %1780 = vmatpush1.bf16.msra.mxu0 %v1598
        %1781 = vmatprep.subr.bf16.mxu0 0
        %1782 = vmatpush1.bf16.msra.mxu0 %v1599
        %1783 = vmatprep.subr.bf16.mxu0 0
        %1784 = vmatpush1.bf16.msra.mxu0 %v1600
        %1785 = vmatprep.subr.bf16.mxu0 0
        %1786 = vmatpush1.bf16.msra.mxu0 %v1601
        %1787 = vmatprep.subr.bf16.mxu0 0
        %1788 = vmatpush1.bf16.msra.mxu0 %v1602
        %1789 = vmatprep.subr.bf16.mxu0 0
        %1790 = vmatpush1.bf16.msra.mxu0 %v1603
        %1791 = vmatprep.subr.bf16.mxu0 0
        %1792 = vmatpush1.bf16.msra.mxu0 %v1604
        %1793 = vmatprep.subr.bf16.mxu0 0
        %1794 = vmatpush1.bf16.msra.mxu0 %v1605
        %1795 = vmatprep.subr.bf16.mxu0 0
        %1796 = vmatpush1.bf16.msra.mxu0 %v1606
        %1797 = vmatprep.subr.bf16.mxu0 0
        %1798 = vmatpush1.bf16.msra.mxu0 %v1607
        %1799 = vmatprep.subr.bf16.mxu0 0
        %1800 = vmatpush1.bf16.msra.mxu0 %v1608
        %1801 = vmatprep.mubr.bf16.mxu0 %v1174
        %1802 = vmatmul.mubr.bf16.gmra.mrb[0].mxu0 %v1173
        %v1803 = vpop.f32.mrb[0].mxu0
        %v1804 = vadd.f32 %v1764, %v1803
        %v1805 = vpop.f32.mrb[0].mxu0
        %v1806 = vpop.f32.mrb[0].mxu0
        %v1807 = vpop.f32.mrb[0].mxu0
        %1808 = vdwg.mxu0
        %1809 = vmatprep.subr.bf16.mxu0 0
        %1810 = vmatpush1.bf16.msra.mxu0 %v1609
        %1811 = vmatprep.subr.bf16.mxu0 0
        %1812 = vmatpush1.bf16.msra.mxu0 %v1610
        %1813 = vmatprep.subr.bf16.mxu0 0
        %1814 = vmatpush1.bf16.msra.mxu0 %v1611
        %1815 = vmatprep.subr.bf16.mxu0 0
        %1816 = vmatpush1.bf16.msra.mxu0 %v1612
        %1817 = vmatprep.subr.bf16.mxu0 0
        %1818 = vmatpush1.bf16.msra.mxu0 %v1613
        %1819 = vmatprep.subr.bf16.mxu0 0
        %1820 = vmatpush1.bf16.msra.mxu0 %v1614
        %1821 = vmatprep.subr.bf16.mxu0 0
        %1822 = vmatpush1.bf16.msra.mxu0 %v1615
        %1823 = vmatprep.subr.bf16.mxu0 0
        %1824 = vmatpush1.bf16.msra.mxu0 %v1616
        %1825 = vmatprep.subr.bf16.mxu0 0
        %1826 = vmatpush1.bf16.msra.mxu0 %v1617
        %1827 = vmatprep.subr.bf16.mxu0 0
        %1828 = vmatpush1.bf16.msra.mxu0 %v1618
        %1829 = vmatprep.subr.bf16.mxu0 0
        %1830 = vmatpush1.bf16.msra.mxu0 %v1619
        %1831 = vmatprep.subr.bf16.mxu0 0
        %1832 = vmatpush1.bf16.msra.mxu0 %v1620
        %1833 = vmatprep.subr.bf16.mxu0 0
        %1834 = vmatpush1.bf16.msra.mxu0 %v1621
        %1835 = vmatprep.subr.bf16.mxu0 0
        %1836 = vmatpush1.bf16.msra.mxu0 %v1622
        %1837 = vmatprep.subr.bf16.mxu0 0
        %1838 = vmatpush1.bf16.msra.mxu0 %v1623
        %1839 = vmatprep.subr.bf16.mxu0 0
        %1840 = vmatpush1.bf16.msra.mxu0 %v1624
        %1841 = vmatprep.mubr.bf16.mxu0 %v1176
        %1842 = vmatmul.mubr.bf16.gmra.mrb[0].mxu0 %v1175
        %v1843 = vpop.f32.mrb[0].mxu0
        %v1844 = vadd.f32 %v1804, %v1843
        %v1845 = vpop.f32.mrb[0].mxu0
        %v1846 = vpop.f32.mrb[0].mxu0
        %v1847 = vpop.f32.mrb[0].mxu0
        %1848 = vdwg.mxu0
        %1849 = vst.msk [vmem:[%s212] sm:$0xff] %vm445, %v1844
        %s1850 = sand.u32 %s131, 1
        %s1851 = scalar_lea.sflag [#allocation4], %s1850
        %s1852 = sand.u32 %s131, 1
        %s1853 = smul.addr %s1852, 8
        %s1854 = scalar_lea.vmem [#allocation3], %s1853
        // Predicated region
        $region41: #{tpu_custom_call.1} parent=35 // pred_check
          %p1855 = pneg %p141
        $region42: #{tpu_custom_call.1} parent=35 // pred_check_branch
          %1857 = sbr.rel (%p1855) target = $region44
        $region43: #{tpu_custom_call.1} parent=35 // pred_region
          %s1859 = ssub.s32 128, 128
          %1860 = vsyncadd %s1851, %s1859
          %s1861 = smul.addr %s22, 2
          %s1862 = sadd.s32 %s23, %s1861
          %s1863 = smul.addr %s1862, 128
          %s1864 = scalar_lea.hbm %s4, %s1863
          %s1866 = sshll.u32 %s1854, 4
          %s1867 = int_to_ptr.vmem [resolvable:$true] %s1866
          %1869 = dma.vmem_to_hbm [thread:$0]  %s1867, 128, %s1864, %s1851
        $region44: #{tpu_custom_call.1} parent=35 // pred_fallthru
          _
      $region36: #{tpu_custom_call.1} parent=5 // pred_fallthru
        _
      %p1870 = scmp.le.s32.totalorder 2, %s13
      // Predicated region
      $region45: #{tpu_custom_call.1} parent=5 // pred_check
        %p1871 = pneg %p1870
      $region46: #{tpu_custom_call.1} parent=5 // pred_check_branch
        %1873 = sbr.rel (%p1871) target = $region48
      $region47: #{tpu_custom_call.1} parent=5 // pred_region
        %s1874 = ssub.s32 %s13, 2
        // Predicated region
        $region49: #{tpu_custom_call.1} parent=47 // pred_check
          %p1875 = pneg %p147
        $region50: #{tpu_custom_call.1} parent=47 // pred_check_branch
          %1877 = sbr.rel (%p1875) target = $region52
        $region51: #{tpu_custom_call.1} parent=47 // pred_region
          %s1878 = sand.u32 %s132, 1
          %s1879 = scalar_lea.sflag [#allocation4], %s1878
          %s1880 = sand.u32 %s132, 1
          %s1881 = smul.addr %s1880, 8
          %s1882 = scalar_lea.vmem [#allocation3], %s1881
          %1883 = dma.done %s1879, 128
        $region52: #{tpu_custom_call.1} parent=47 // pred_fallthru
          _
      $region48: #{tpu_custom_call.1} parent=5 // pred_fallthru
        _
    $region6: #{tpu_custom_call.1} parent=1 // loop_footer
      %s17 = sadd.s32 1, %s13
    $region7: #{tpu_custom_call.1} parent=1 // loop_footer_branch
      %12 = sbr.rel target = $region3
    $region8: #{tpu_custom_call.1} parent=1 // loop_exit
      _
    %1884 = vsyncpa [#allocation4], 1
    %s1885 = scalar_lea.sflag [#allocation4], 1
    %1886 = vsyncpa %s1885, 1

// kernel: tpu_custom_call.1
$region0: #{tpu_custom_call.1}
  #allocation0 [shape = 'u32[]', space=smem, size = 0x4, offset = 0x4, fixed_abs, tag = 'smem constant byte address 0x4 - core index']
  #allocation1 [shape = 'u32[144,128]{1,0:T(1,128)}', space=vmem, size = 0x12000, scoped, tag = 'internal scratch']
  #allocation2 [shape = 'f32[1,1024]{1,0:T(1,128)}', space=vmem, size = 0x1000, scoped, tag = 'scratch operand']
  %s0 = inlined_call_operand.vmem [shape: f32[2,16,32], index: 0, kind: input, shape index: {}]
  %s1 = inlined_call_operand.vmem [shape: bf16[32,2304], index: 1, kind: input, shape index: {}]
  %s2 = inlined_call_operand.vmem [shape: bf16[1024,32], index: 2, kind: input, shape index: {}]
  %s3 = inlined_call_operand.vmem [shape: bf16[8,8], index: 3, kind: input, shape index: {}]
  %s4 = inlined_call_operand.hbm [shape: f32[2,16,32], index: 4, kind: output, shape index: {}]
  %s5 = sld [smem:[#allocation0]]
  $region53: #{tpu_custom_call.1} parent=0
    _
  %s7 = ssub.s32 1, %s5
  %s8 = scalar_select 0, %s7, %s5
  $region1: #{tpu_custom_call.1} parent=0
    #allocation3 [shape = 'u8[8192]{0}', space=vmem, size = 0x2000, scoped, tag = 'output window, operand 0']
    #allocation4 [shape = 's32[2]{0}', space=sflag, size = 0x8, scoped, tag = 'scoped memory for tpu_custom_call.1']
    %9 = vsyncpa [#allocation4], 0
    %s10 = scalar_lea.sflag [#allocation4], 1
    %11 = vsyncpa %s10, 0
    loop: start=0, step=1, limit=6
    $region2: #{tpu_custom_call.1} parent=1 // loop_pre_header
      _
    $region3: #{tpu_custom_call.1} parent=1 // loop_header
      %s13 = sphi 0, %s17
      %p14 = scmp.ge.s32.totalorder %s13, 6
      %s20 = sphi 0, %s32
      %s21 = sphi 0, %s28
      %s22 = sphi 0, %s20
      %s23 = sphi 0, %s21
      %s24 = sphi 0, %s22
      %s25 = sphi 0, %s23
      %s37 = sphi 0, %s39
      %s40 = sphi 0, %s37
      %s41 = sphi 0, %s40
      %s57 = sphi 0, %s41
      %s61 = sphi 0, %s61
      %s63 = sphi 0, %s61
      %s64 = sphi 0, %s63
      %s78 = sphi 0, %s64
      %s82 = sphi 0, %s82
      %s84 = sphi 0, %s82
      %s85 = sphi 0, %s84
      %s99 = sphi 0, %s85
      %s103 = sphi 0, %s103
      %s105 = sphi 0, %s103
      %s106 = sphi 0, %s105
      %s120 = sphi 0, %s106
      %s128 = sphi 0, %s130
      %s131 = sphi 0, %s128
      %s132 = sphi 0, %s131
      %s148 = sphi 0, %s132
    $region4: #{tpu_custom_call.1} parent=1 // loop_header_branch
      %16 = sbr.rel (%p14) target = $region8
    $region5: #{tpu_custom_call.1} parent=1 // loop_body
      %s18 = ssub.s32 %s13, 1
      %s19 = ssub.s32 %s13, 2
      %s26 = sadd.s32 1, %s21
      %p27 = scmp.ge.s32.totalorder %s26, 2
      %s28 = scalar_select %p27, 0, %s26
      %s29 = sadd.s32 1, %s20
      %s30 = scalar_select %p27, %s29, %s20
      %p31 = scmp.ge.s32.totalorder %s30, 2
      %s32 = scalar_select %p31, 0, %s30
      %s33 = ssub.s32 %s20, %s32
      %s34 = ssub.s32 %s21, %s28
      %s35 = sor.u32 %s33, %s34
      %p36 = scmp.eq.s32.totalorder %s35, 0
      %s38 = sadd.s32 %s37, 1
      %s39 = scalar_select %p36, %s37, %s38
      %p42 = pneg %p36
      %p43 = scmp.eq.s32.totalorder %s13, 3
      %p44 = por %p42, %p43
      %p45 = scmp.ne.s32.totalorder %s37, %s40
      %p46 = scmp.eq.s32.totalorder %s13, 0
      %p47 = por %p45, %p46
      %p48 = scmp.ne.s32.totalorder %s37, %s40
      %p49 = scmp.eq.s32.totalorder %s18, 3
      %p50 = por %p48, %p49
      %p51 = scmp.ne.s32.totalorder %s40, %s41
      %p52 = scmp.eq.s32.totalorder %s18, 0
      %p53 = por %p51, %p52
      %p54 = scmp.ne.s32.totalorder %s40, %s41
      %p55 = scmp.eq.s32.totalorder %s19, 3
      %p56 = por %p54, %p55
      %p58 = scmp.ne.s32.totalorder %s41, %s57
      %p59 = scmp.eq.s32.totalorder %s19, 0
      %p60 = por %p58, %p59
      %s62 = sadd.s32 %s61, 1
      %p65 = scmp.eq.s32.totalorder %s13, 3
      %p66 = scmp.ne.s32.totalorder %s61, %s63
      %p67 = scmp.eq.s32.totalorder %s13, 0
      %p68 = por %p66, %p67
      %p69 = scmp.ne.s32.totalorder %s61, %s63
      %p70 = scmp.eq.s32.totalorder %s18, 3
      %p71 = por %p69, %p70
      %p72 = scmp.ne.s32.totalorder %s63, %s64
      %p73 = scmp.eq.s32.totalorder %s18, 0
      %p74 = por %p72, %p73
      %p75 = scmp.ne.s32.totalorder %s63, %s64
      %p76 = scmp.eq.s32.totalorder %s19, 3
      %p77 = por %p75, %p76
      %p79 = scmp.ne.s32.totalorder %s64, %s78
      %p80 = scmp.eq.s32.totalorder %s19, 0
      %p81 = por %p79, %p80
      %s83 = sadd.s32 %s82, 1
      %p86 = scmp.eq.s32.totalorder %s13, 3
      %p87 = scmp.ne.s32.totalorder %s82, %s84
      %p88 = scmp.eq.s32.totalorder %s13, 0
      %p89 = por %p87, %p88
      %p90 = scmp.ne.s32.totalorder %s82, %s84
      %p91 = scmp.eq.s32.totalorder %s18, 3
      %p92 = por %p90, %p91
      %p93 = scmp.ne.s32.totalorder %s84, %s85
      %p94 = scmp.eq.s32.totalorder %s18, 0
      %p95 = por %p93, %p94
      %p96 = scmp.ne.s32.totalorder %s84, %s85
      %p97 = scmp.eq.s32.totalorder %s19, 3
      %p98 = por %p96, %p97
      %p100 = scmp.ne.s32.totalorder %s85, %s99
      %p101 = scmp.eq.s32.totalorder %s19, 0
      %p102 = por %p100, %p101
      %s104 = sadd.s32 %s103, 1
      %p107 = scmp.eq.s32.totalorder %s13, 3
      %p108 = scmp.ne.s32.totalorder %s103, %s105
      %p109 = scmp.eq.s32.totalorder %s13, 0
      %p110 = por %p108, %p109
      %p111 = scmp.ne.s32.totalorder %s103, %s105
      %p112 = scmp.eq.s32.totalorder %s18, 3
      %p113 = por %p111, %p112
      %p114 = scmp.ne.s32.totalorder %s105, %s106
      %p115 = scmp.eq.s32.totalorder %s18, 0
      %p116 = por %p114, %p115
      %p117 = scmp.ne.s32.totalorder %s105, %s106
      %p118 = scmp.eq.s32.totalorder %s19, 3
      %p119 = por %p117, %p118
      %p121 = scmp.ne.s32.totalorder %s106, %s120
      %p122 = scmp.eq.s32.totalorder %s19, 0
      %p123 = por %p121, %p122
      %s124 = ssub.s32 %s20, %s32
      %s125 = ssub.s32 %s21, %s28
      %s126 = sor.u32 %s124, %s125
      %p127 = scmp.eq.s32.totalorder %s126, 0
      %s129 = sadd.s32 %s128, 1
      %s130 = scalar_select %p127, %s128, %s129
      %p133 = pneg %p127
      %p134 = scmp.eq.s32.totalorder %s13, 3
      %p135 = por %p133, %p134
      %p136 = scmp.ne.s32.totalorder %s128, %s131
      %p137 = scmp.eq.s32.totalorder %s13, 0
      %p138 = por %p136, %p137
      %p139 = scmp.ne.s32.totalorder %s128, %s131
      %p140 = scmp.eq.s32.totalorder %s18, 3
      %p141 = por %p139, %p140
      %p142 = scmp.ne.s32.totalorder %s131, %s132
      %p143 = scmp.eq.s32.totalorder %s18, 0
      %p144 = por %p142, %p143
      %p145 = scmp.ne.s32.totalorder %s131, %s132
      %p146 = scmp.eq.s32.totalorder %s19, 3
      %p147 = por %p145, %p146
      %p149 = scmp.ne.s32.totalorder %s132, %s148
      %p150 = scmp.eq.s32.totalorder %s19, 0
      %p151 = por %p149, %p150
      %p152 = scmp.le.s32.totalorder 1, %s13
      %p153 = scmp.lt.s32.totalorder %s13, 5
      %p154 = pnand %p152, %p153
      %p155 = pneg %p154
      // Predicated region
      $region9: #{tpu_custom_call.1} parent=5 // pred_check
        _
      $region10: #{tpu_custom_call.1} parent=5 // pred_check_branch
        %157 = sbr.rel (%p154) target = $region12
      $region11: #{tpu_custom_call.1} parent=5 // pred_region
        %s158 = ssub.s32 %s13, 1
        // Predicated region
        $region13: #{tpu_custom_call.1} parent=11 // pred_check
          %p159 = pneg %p74
        $region14: #{tpu_custom_call.1} parent=11 // pred_check_branch
          %161 = sbr.rel (%p159) target = $region16
        $region15: #{tpu_custom_call.1} parent=11 // pred_region
          _
        $region16: #{tpu_custom_call.1} parent=11 // pred_fallthru
          _
        // Predicated region
        $region17: #{tpu_custom_call.1} parent=11 // pred_check
          %p162 = pneg %p95
        $region18: #{tpu_custom_call.1} parent=11 // pred_check_branch
          %164 = sbr.rel (%p162) target = $region20
        $region19: #{tpu_custom_call.1} parent=11 // pred_region
          _
        $region20: #{tpu_custom_call.1} parent=11 // pred_fallthru
          _
        // Predicated region
        $region21: #{tpu_custom_call.1} parent=11 // pred_check
          %p165 = pneg %p116
        $region22: #{tpu_custom_call.1} parent=11 // pred_check_branch
          %167 = sbr.rel (%p165) target = $region24
        $region23: #{tpu_custom_call.1} parent=11 // pred_region
          _
        $region24: #{tpu_custom_call.1} parent=11 // pred_fallthru
          _
      $region12: #{tpu_custom_call.1} parent=5 // pred_fallthru
        _
      %p168 = scmp.lt.s32.totalorder %s13, 4
      // Predicated region
      $region25: #{tpu_custom_call.1} parent=5 // pred_check
        %p169 = pneg %p168
      $region26: #{tpu_custom_call.1} parent=5 // pred_check_branch
        %171 = sbr.rel (%p169) target = $region28
      $region27: #{tpu_custom_call.1} parent=5 // pred_region
        // Predicated region
        $region29: #{tpu_custom_call.1} parent=27 // pred_check
          %p172 = pneg %p47
        $region30: #{tpu_custom_call.1} parent=27 // pred_check_branch
          %174 = sbr.rel (%p172) target = $region32
        $region31: #{tpu_custom_call.1} parent=27 // pred_region
          %p175 = scmp.lt.s32.totalorder %s20, 1
          %s176 = scalar_select %p175, %s20, 1
          %p177 = scmp.lt.s32.totalorder %s21, 1
          %s178 = scalar_select %p177, %s21, 1
          %s179 = smul.addr %s176, 2
          %s180 = sadd.s32 %s178, %s179
          %s181 = smul.addr %s180, 8
          %s182 = scalar_lea.vmem %s0, %s181
        $region32: #{tpu_custom_call.1} parent=27 // pred_fallthru
          _
      $region28: #{tpu_custom_call.1} parent=5 // pred_fallthru
        _
      %p183 = scmp.le.s32.totalorder 1, %s13
      %p184 = scmp.lt.s32.totalorder %s13, 5
      %p185 = pnand %p183, %p184
      %p186 = pneg %p185
      // Predicated region
      $region33: #{tpu_custom_call.1} parent=5 // pred_check
        _
      $region34: #{tpu_custom_call.1} parent=5 // pred_check_branch
        %188 = sbr.rel (%p185) target = $region36
      $region35: #{tpu_custom_call.1} parent=5 // pred_region
        %s189 = ssub.s32 %s13, 1
        %p190 = scmp.lt.s32.totalorder %s22, 1
        %s191 = scalar_select %p190, %s22, 1
        %p192 = scmp.lt.s32.totalorder %s23, 1
        %s193 = scalar_select %p192, %s23, 1
        %s194 = smul.addr %s191, 2
        %s195 = sadd.s32 %s193, %s194
        %s196 = smul.addr %s195, 8
        %s197 = scalar_lea.vmem %s0, %s196
        %p198 = pneg %p53
        %p199 = pneg %p50
        %p200 = pneg %p74
        %p201 = pneg %p71
        %p202 = pneg %p95
        %p203 = pneg %p92
        %p204 = pneg %p116
        %p205 = pneg %p113
        %p206 = pneg %p144
        %p207 = pneg %p141
        %s208 = sand.u32 %s131, 1
        %s209 = scalar_lea.sflag [#allocation4], %s208
        %s210 = sand.u32 %s131, 1
        %s211 = smul.addr %s210, 8
        %s212 = scalar_lea.vmem [#allocation3], %s211
        %p213 = scmp.lt.s32.totalorder %s22, 1
        %s214 = scalar_select %p213, %s22, 1
        %p215 = scmp.lt.s32.totalorder %s23, 1
        %s216 = scalar_select %p215, %s23, 1
        %s217 = smul.addr %s214, 2
        %s218 = sadd.s32 %s216, %s217
        %s219 = smul.addr %s218, 8
        %s220 = scalar_lea.vmem %s0, %s219
        %p222 = scmp.eq.s32.totalorder %s23, 0
        // Predicated region
        $region37: #{tpu_custom_call.1} parent=35 // pred_check
          %p223 = pneg %p222
        $region38: #{tpu_custom_call.1} parent=35 // pred_check_branch
          %225 = sbr.rel (%p223) target = $region40
        $region39: #{tpu_custom_call.1} parent=35 // pred_region
          %226 = vst [vmem:[#allocation2] sm:$0xff] 0.0
        $region40: #{tpu_custom_call.1} parent=35 // pred_fallthru
          _
        %v227 = vld [vmem:[%s220] sm:$0xff]
        %v228 = vpack.c.bf16 %v227, %v227
        %v229 = vld [vmem:[%s1] sm:$0xff]
        %v230 = vld [vmem:[%s1 + $0x8] sm:$0xff]
        %v231 = vld [vmem:[%s1 + $0x10] sm:$0xff]
        %v232 = vld [vmem:[%s1 + $0x18] sm:$0xff]
        %v233 = vld [vmem:[%s1 + $0x20] sm:$0xff]
        %v234 = vld [vmem:[%s1 + $0x28] sm:$0xff]
        %v235 = vld [vmem:[%s1 + $0x30] sm:$0xff]
        %v236 = vld [vmem:[%s1 + $0x38] sm:$0xff]
        %v237 = vld [vmem:[%s1 + $0x40] sm:$0xff]
        %v238 = vld [vmem:[%s1 + $0x48] sm:$0xff]
        %v239 = vld [vmem:[%s1 + $0x50] sm:$0xff]
        %v240 = vld [vmem:[%s1 + $0x58] sm:$0xff]
        %v241 = vld [vmem:[%s1 + $0x60] sm:$0xff]
        %v242 = vld [vmem:[%s1 + $0x68] sm:$0xff]
        %v243 = vld [vmem:[%s1 + $0x70] sm:$0xff]
        %v244 = vld [vmem:[%s1 + $0x78] sm:$0xff]
        %v245 = vld [vmem:[%s1 + $0x80] sm:$0xff]
        %v246 = vld [vmem:[%s1 + $0x88] sm:$0xff]
        %v247 = vld [vmem:[%s1 + $0x90] sm:$0xff]
        %v248 = vld [vmem:[%s1 + $0x98] sm:$0xff]
        %v249 = vld [vmem:[%s1 + $0xa0] sm:$0xff]
        %v250 = vld [vmem:[%s1 + $0xa8] sm:$0xff]
        %v251 = vld [vmem:[%s1 + $0xb0] sm:$0xff]
        %v252 = vld [vmem:[%s1 + $0xb8] sm:$0xff]
        %v253 = vld [vmem:[%s1 + $0xc0] sm:$0xff]
        %v254 = vld [vmem:[%s1 + $0xc8] sm:$0xff]
        %v255 = vld [vmem:[%s1 + $0xd0] sm:$0xff]
        %v256 = vld [vmem:[%s1 + $0xd8] sm:$0xff]
        %v257 = vld [vmem:[%s1 + $0xe0] sm:$0xff]
        %v258 = vld [vmem:[%s1 + $0xe8] sm:$0xff]
        %v259 = vld [vmem:[%s1 + $0xf0] sm:$0xff]
        %v260 = vld [vmem:[%s1 + $0xf8] sm:$0xff]
        %v261 = vld [vmem:[%s1 + $0x100] sm:$0xff]
        %v262 = vld [vmem:[%s1 + $0x108] sm:$0xff]
        %v263 = vld [vmem:[%s1 + $0x110] sm:$0xff]
        %v264 = vld [vmem:[%s1 + $0x118] sm:$0xff]
        %v301 = vunpack.c.l.b16 %v229
        %v302 = vunpack.c.h.b16 %v229
        %v303 = vunpack.c.l.b16 %v230
        %v304 = vunpack.c.h.b16 %v230
        %v305 = vunpack.c.l.b16 %v231
        %v306 = vunpack.c.h.b16 %v231
        %v307 = vunpack.c.l.b16 %v232
        %v308 = vunpack.c.h.b16 %v232
        %v309 = vunpack.c.l.b16 %v233
        %v310 = vunpack.c.h.b16 %v233
        %v311 = vunpack.c.l.b16 %v234
        %v312 = vunpack.c.h.b16 %v234
        %v313 = vunpack.c.l.b16 %v235
        %v314 = vunpack.c.h.b16 %v235
        %v315 = vunpack.c.l.b16 %v236
        %v316 = vunpack.c.h.b16 %v236
        %v317 = vunpack.c.l.b16 %v237
        %v318 = vunpack.c.h.b16 %v237
        %v319 = vunpack.c.l.b16 %v238
        %v320 = vunpack.c.h.b16 %v238
        %v321 = vunpack.c.l.b16 %v239
        %v322 = vunpack.c.h.b16 %v239
        %v323 = vunpack.c.l.b16 %v240
        %v324 = vunpack.c.h.b16 %v240
        %v325 = vunpack.c.l.b16 %v241
        %v326 = vunpack.c.h.b16 %v241
        %v327 = vunpack.c.l.b16 %v242
        %v328 = vunpack.c.h.b16 %v242
        %v329 = vunpack.c.l.b16 %v243
        %v330 = vunpack.c.h.b16 %v243
        %v331 = vunpack.c.l.b16 %v244
        %v332 = vunpack.c.h.b16 %v244
        %v333 = vunpack.c.l.b16 %v245
        %v334 = vunpack.c.h.b16 %v245
        %v335 = vunpack.c.l.b16 %v246
        %v336 = vunpack.c.h.b16 %v246
        %v337 = vunpack.c.l.b16 %v247
        %v338 = vunpack.c.h.b16 %v247
        %v339 = vunpack.c.l.b16 %v248
        %v340 = vunpack.c.h.b16 %v248
        %v341 = vunpack.c.l.b16 %v249
        %v342 = vunpack.c.h.b16 %v249
        %v343 = vunpack.c.l.b16 %v250
        %v344 = vunpack.c.h.b16 %v250
        %v345 = vunpack.c.l.b16 %v251
        %v346 = vunpack.c.h.b16 %v251
        %v347 = vunpack.c.l.b16 %v252
        %v348 = vunpack.c.h.b16 %v252
        %v349 = vunpack.c.l.b16 %v253
        %v350 = vunpack.c.h.b16 %v253
        %v351 = vunpack.c.l.b16 %v254
        %v352 = vunpack.c.h.b16 %v254
        %v353 = vunpack.c.l.b16 %v255
        %v354 = vunpack.c.h.b16 %v255
        %v355 = vunpack.c.l.b16 %v256
        %v356 = vunpack.c.h.b16 %v256
        %v357 = vunpack.c.l.b16 %v257
        %v358 = vunpack.c.h.b16 %v257
        %v359 = vunpack.c.l.b16 %v258
        %v360 = vunpack.c.h.b16 %v258
        %v361 = vunpack.c.l.b16 %v259
        %v362 = vunpack.c.h.b16 %v259
        %v363 = vunpack.c.l.b16 %v260
        %v364 = vunpack.c.h.b16 %v260
        %v365 = vunpack.c.l.b16 %v261
        %v366 = vunpack.c.h.b16 %v261
        %v367 = vunpack.c.l.b16 %v262
        %v368 = vunpack.c.h.b16 %v262
        %v369 = vunpack.c.l.b16 %v263
        %v370 = vunpack.c.h.b16 %v263
        %v371 = vunpack.c.l.b16 %v264
        %v372 = vunpack.c.h.b16 %v264
        %v373 = vpack.c.b16 %v319, %v301
        %v374 = vpack.c.b16 %v320, %v302
        %v375 = vpack.c.b16 %v321, %v303
        %v376 = vpack.c.b16 %v322, %v304
        %v377 = vpack.c.b16 %v323, %v305
        %v378 = vpack.c.b16 %v324, %v306
        %v379 = vpack.c.b16 %v325, %v307
        %v380 = vpack.c.b16 %v326, %v308
        %v381 = vpack.c.b16 %v327, %v309
        %v382 = vpack.c.b16 %v328, %v310
        %v383 = vpack.c.b16 %v329, %v311
        %v384 = vpack.c.b16 %v330, %v312
        %v385 = vpack.c.b16 %v331, %v313
        %v386 = vpack.c.b16 %v332, %v314
        %v387 = vpack.c.b16 %v333, %v315
        %v388 = vpack.c.b16 %v334, %v316
        %v389 = vpack.c.b16 %v335, %v317
        %v390 = vpack.c.b16 %v336, %v318
        %v391 = vpack.c.b16 %v355, %v337
        %v392 = vpack.c.b16 %v356, %v338
        %v393 = vpack.c.b16 %v357, %v339
        %v394 = vpack.c.b16 %v358, %v340
        %v395 = vpack.c.b16 %v359, %v341
        %v396 = vpack.c.b16 %v360, %v342
        %v397 = vpack.c.b16 %v361, %v343
        %v398 = vpack.c.b16 %v362, %v344
        %v399 = vpack.c.b16 %v363, %v345
        %v400 = vpack.c.b16 %v364, %v346
        %v401 = vpack.c.b16 %v365, %v347
        %v402 = vpack.c.b16 %v366, %v348
        %v403 = vpack.c.b16 %v367, %v349
        %v404 = vpack.c.b16 %v368, %v350
        %v405 = vpack.c.b16 %v369, %v351
        %v406 = vpack.c.b16 %v370, %v352
        %v407 = vpack.c.b16 %v371, %v353
        %v408 = vpack.c.b16 %v372, %v354
        %vm445 = vcmask 261120
        %v447 = vsel %vm445, %v228, 0
        %449 = vmatprep.subr.bf16.mxu0 %v374
        %450 = vmatpush1.bf16.msra.mxu0 %v373
        %451 = vmatprep.subr.bf16.mxu0 %v392
        %452 = vmatpush1.bf16.msra.mxu0 %v391
        %453 = vmatprep.subr.bf16.mxu0 0
        %454 = vmatpush1.bf16.msra.mxu0 0
        %455 = vmatprep.subr.bf16.mxu0 0
        %456 = vmatpush1.bf16.msra.mxu0 0
        %457 = vmatprep.subr.bf16.mxu0 0
        %458 = vmatpush1.bf16.msra.mxu0 0
        %459 = vmatprep.subr.bf16.mxu0 0
        %460 = vmatpush1.bf16.msra.mxu0 0
        %461 = vmatprep.subr.bf16.mxu0 0
        %462 = vmatpush1.bf16.msra.mxu0 0
        %463 = vmatprep.subr.bf16.mxu0 0
        %464 = vmatpush1.bf16.msra.mxu0 0
        %465 = vmatprep.subr.bf16.mxu0 0
        %466 = vmatpush1.bf16.msra.mxu0 0
        %467 = vmatprep.subr.bf16.mxu0 0
        %468 = vmatpush1.bf16.msra.mxu0 0
        %469 = vmatprep.subr.bf16.mxu0 0
        %470 = vmatpush1.bf16.msra.mxu0 0
        %471 = vmatprep.subr.bf16.mxu0 0
        %472 = vmatpush1.bf16.msra.mxu0 0
        %473 = vmatprep.subr.bf16.mxu0 0
        %474 = vmatpush1.bf16.msra.mxu0 0
        %475 = vmatprep.subr.bf16.mxu0 0
        %476 = vmatpush1.bf16.msra.mxu0 0
        %477 = vmatprep.subr.bf16.mxu0 0
        %478 = vmatpush1.bf16.msra.mxu0 0
        %479 = vmatprep.subr.bf16.mxu0 0
        %480 = vmatpush1.bf16.msra.mxu0 0
        %481 = vmatprep.mubr.bf16.mxu0 0
        %482 = vmatmul.mubr.bf16.gmra.mrb[0].mxu0 %v447
        %v483 = vpop.f32.mrb[0].mxu0
        %v484 = vadd.f32 0.0, %v483
        %v485 = vpop.f32.mrb[0].mxu0
        %v486 = vadd.f32 0.0, %v485
        %v487 = vpop.f32.mrb[0].mxu0
        %v488 = vpop.f32.mrb[0].mxu0
        %489 = vdwg.mxu0
        %490 = vmatprep.subr.bf16.mxu0 %v376
        %491 = vmatpush1.bf16.msra.mxu0 %v375
        %492 = vmatprep.subr.bf16.mxu0 %v394
        %493 = vmatpush1.bf16.msra.mxu0 %v393
        %494 = vmatprep.subr.bf16.mxu0 0
        %495 = vmatpush1.bf16.msra.mxu0 0
        %496 = vmatprep.subr.bf16.mxu0 0
        %497 = vmatpush1.bf16.msra.mxu0 0
        %498 = vmatprep.subr.bf16.mxu0 0
        %499 = vmatpush1.bf16.msra.mxu0 0
        %500 = vmatprep.subr.bf16.mxu0 0
        %501 = vmatpush1.bf16.msra.mxu0 0
        %502 = vmatprep.subr.bf16.mxu0 0
        %503 = vmatpush1.bf16.msra.mxu0 0
        %504 = vmatprep.subr.bf16.mxu0 0
        %505 = vmatpush1.bf16.msra.mxu0 0
        %506 = vmatprep.subr.bf16.mxu0 0
        %507 = vmatpush1.bf16.msra.mxu0 0
        %508 = vmatprep.subr.bf16.mxu0 0
        %509 = vmatpush1.bf16.msra.mxu0 0
        %510 = vmatprep.subr.bf16.mxu0 0
        %511 = vmatpush1.bf16.msra.mxu0 0
        %512 = vmatprep.subr.bf16.mxu0 0
        %513 = vmatpush1.bf16.msra.mxu0 0
        %514 = vmatprep.subr.bf16.mxu0 0
        %515 = vmatpush1.bf16.msra.mxu0 0
        %516 = vmatprep.subr.bf16.mxu0 0
        %517 = vmatpush1.bf16.msra.mxu0 0
        %518 = vmatprep.subr.bf16.mxu0 0
        %519 = vmatpush1.bf16.msra.mxu0 0
        %520 = vmatprep.subr.bf16.mxu0 0
        %521 = vmatpush1.bf16.msra.mxu0 0
        %522 = vmatprep.mubr.bf16.mxu0 0
        %523 = vmatmul.mubr.bf16.gmra.mrb[0].mxu0 %v447
        %v524 = vpop.f32.mrb[0].mxu0
        %v525 = vadd.f32 0.0, %v524
        %v526 = vpop.f32.mrb[0].mxu0
        %v527 = vadd.f32 0.0, %v526
        %v528 = vpop.f32.mrb[0].mxu0
        %v529 = vpop.f32.mrb[0].mxu0
        %530 = vdwg.mxu0
        %531 = vmatprep.subr.bf16.mxu0 %v378
        %532 = vmatpush1.bf16.msra.mxu0 %v377
        %533 = vmatprep.subr.bf16.mxu0 %v396
        %534 = vmatpush1.bf16.msra.mxu0 %v395
        %535 = vmatprep.subr.bf16.mxu0 0
        %536 = vmatpush1.bf16.msra.mxu0 0
        %537 = vmatprep.subr.bf16.mxu0 0
        %538 = vmatpush1.bf16.msra.mxu0 0
        %539 = vmatprep.subr.bf16.mxu0 0
        %540 = vmatpush1.bf16.msra.mxu0 0
        %541 = vmatprep.subr.bf16.mxu0 0
        %542 = vmatpush1.bf16.msra.mxu0 0
        %543 = vmatprep.subr.bf16.mxu0 0
        %544 = vmatpush1.bf16.msra.mxu0 0
        %545 = vmatprep.subr.bf16.mxu0 0
        %546 = vmatpush1.bf16.msra.mxu0 0
        %547 = vmatprep.subr.bf16.mxu0 0
        %548 = vmatpush1.bf16.msra.mxu0 0
        %549 = vmatprep.subr.bf16.mxu0 0
        %550 = vmatpush1.bf16.msra.mxu0 0
        %551 = vmatprep.subr.bf16.mxu0 0
        %552 = vmatpush1.bf16.msra.mxu0 0
        %553 = vmatprep.subr.bf16.mxu0 0
        %554 = vmatpush1.bf16.msra.mxu0 0
        %555 = vmatprep.subr.bf16.mxu0 0
        %556 = vmatpush1.bf16.msra.mxu0 0
        %557 = vmatprep.subr.bf16.mxu0 0
        %558 = vmatpush1.bf16.msra.mxu0 0
        %559 = vmatprep.subr.bf16.mxu0 0
        %560 = vmatpush1.bf16.msra.mxu0 0
        %561 = vmatprep.subr.bf16.mxu0 0
        %562 = vmatpush1.bf16.msra.mxu0 0
        %563 = vmatprep.mubr.bf16.mxu0 0
        %564 = vmatmul.mubr.bf16.gmra.mrb[0].mxu0 %v447
        %v565 = vpop.f32.mrb[0].mxu0
        %v566 = vadd.f32 0.0, %v565
        %v567 = vpop.f32.mrb[0].mxu0
        %v568 = vadd.f32 0.0, %v567
        %v569 = vpop.f32.mrb[0].mxu0
        %v570 = vpop.f32.mrb[0].mxu0
        %571 = vdwg.mxu0
        %572 = vmatprep.subr.bf16.mxu0 %v380
        %573 = vmatpush1.bf16.msra.mxu0 %v379
        %574 = vmatprep.subr.bf16.mxu0 %v398
        %575 = vmatpush1.bf16.msra.mxu0 %v397
        %576 = vmatprep.subr.bf16.mxu0 0
        %577 = vmatpush1.bf16.msra.mxu0 0
        %578 = vmatprep.subr.bf16.mxu0 0
        %579 = vmatpush1.bf16.msra.mxu0 0
        %580 = vmatprep.subr.bf16.mxu0 0
        %581 = vmatpush1.bf16.msra.mxu0 0
        %582 = vmatprep.subr.bf16.mxu0 0
        %583 = vmatpush1.bf16.msra.mxu0 0
        %584 = vmatprep.subr.bf16.mxu0 0
        %585 = vmatpush1.bf16.msra.mxu0 0
        %586 = vmatprep.subr.bf16.mxu0 0
        %587 = vmatpush1.bf16.msra.mxu0 0
        %588 = vmatprep.subr.bf16.mxu0 0
        %589 = vmatpush1.bf16.msra.mxu0 0
        %590 = vmatprep.subr.bf16.mxu0 0
        %591 = vmatpush1.bf16.msra.mxu0 0
        %592 = vmatprep.subr.bf16.mxu0 0
        %593 = vmatpush1.bf16.msra.mxu0 0
        %594 = vmatprep.subr.bf16.mxu0 0
        %595 = vmatpush1.bf16.msra.mxu0 0
        %596 = vmatprep.subr.bf16.mxu0 0
        %597 = vmatpush1.bf16.msra.mxu0 0
        %598 = vmatprep.subr.bf16.mxu0 0
        %599 = vmatpush1.bf16.msra.mxu0 0
        %600 = vmatprep.subr.bf16.mxu0 0
        %601 = vmatpush1.bf16.msra.mxu0 0
        %602 = vmatprep.subr.bf16.mxu0 0
        %603 = vmatpush1.bf16.msra.mxu0 0
        %604 = vmatprep.mubr.bf16.mxu0 0
        %605 = vmatmul.mubr.bf16.gmra.mrb[0].mxu0 %v447
        %v606 = vpop.f32.mrb[0].mxu0
        %v607 = vadd.f32 0.0, %v606
        %v608 = vpop.f32.mrb[0].mxu0
        %v609 = vadd.f32 0.0, %v608
        %v610 = vpop.f32.mrb[0].mxu0
        %v611 = vpop.f32.mrb[0].mxu0
        %612 = vdwg.mxu0
        %613 = vmatprep.subr.bf16.mxu0 %v382
        %614 = vmatpush1.bf16.msra.mxu0 %v381
        %615 = vmatprep.subr.bf16.mxu0 %v400
        %616 = vmatpush1.bf16.msra.mxu0 %v399
        %617 = vmatprep.subr.bf16.mxu0 0
        %618 = vmatpush1.bf16.msra.mxu0 0
        %619 = vmatprep.subr.bf16.mxu0 0
        %620 = vmatpush1.bf16.msra.mxu0 0
        %621 = vmatprep.subr.bf16.mxu0 0
        %622 = vmatpush1.bf16.msra.mxu0 0
        %623 = vmatprep.subr.bf16.mxu0 0
        %624 = vmatpush1.bf16.msra.mxu0 0
        %625 = vmatprep.subr.bf16.mxu0 0
        %626 = vmatpush1.bf16.msra.mxu0 0
        %627 = vmatprep.subr.bf16.mxu0 0
        %628 = vmatpush1.bf16.msra.mxu0 0
        %629 = vmatprep.subr.bf16.mxu0 0
        %630 = vmatpush1.bf16.msra.mxu0 0
        %631 = vmatprep.subr.bf16.mxu0 0
        %632 = vmatpush1.bf16.msra.mxu0 0
        %633 = vmatprep.subr.bf16.mxu0 0
        %634 = vmatpush1.bf16.msra.mxu0 0
        %635 = vmatprep.subr.bf16.mxu0 0
        %636 = vmatpush1.bf16.msra.mxu0 0
        %637 = vmatprep.subr.bf16.mxu0 0
        %638 = vmatpush1.bf16.msra.mxu0 0
        %639 = vmatprep.subr.bf16.mxu0 0
        %640 = vmatpush1.bf16.msra.mxu0 0
        %641 = vmatprep.subr.bf16.mxu0 0
        %642 = vmatpush1.bf16.msra.mxu0 0
        %643 = vmatprep.subr.bf16.mxu0 0
        %644 = vmatpush1.bf16.msra.mxu0 0
        %645 = vmatprep.mubr.bf16.mxu0 0
        %646 = vmatmul.mubr.bf16.gmra.mrb[0].mxu0 %v447
        %v647 = vpop.f32.mrb[0].mxu0
        %v648 = vadd.f32 0.0, %v647
        %v649 = vpop.f32.mrb[0].mxu0
        %v650 = vadd.f32 0.0, %v649
        %v651 = vpop.f32.mrb[0].mxu0
        %v652 = vpop.f32.mrb[0].mxu0
        %653 = vdwg.mxu0
        %654 = vmatprep.subr.bf16.mxu0 %v384
        %655 = vmatpush1.bf16.msra.mxu0 %v383
        %656 = vmatprep.subr.bf16.mxu0 %v402
        %657 = vmatpush1.bf16.msra.mxu0 %v401
        %658 = vmatprep.subr.bf16.mxu0 0
        %659 = vmatpush1.bf16.msra.mxu0 0
        %660 = vmatprep.subr.bf16.mxu0 0
        %661 = vmatpush1.bf16.msra.mxu0 0
        %662 = vmatprep.subr.bf16.mxu0 0
        %663 = vmatpush1.bf16.msra.mxu0 0
        %664 = vmatprep.subr.bf16.mxu0 0
        %665 = vmatpush1.bf16.msra.mxu0 0
        %666 = vmatprep.subr.bf16.mxu0 0
        %667 = vmatpush1.bf16.msra.mxu0 0
        %668 = vmatprep.subr.bf16.mxu0 0
        %669 = vmatpush1.bf16.msra.mxu0 0
        %670 = vmatprep.subr.bf16.mxu0 0
        %671 = vmatpush1.bf16.msra.mxu0 0
        %672 = vmatprep.subr.bf16.mxu0 0
        %673 = vmatpush1.bf16.msra.mxu0 0
        %674 = vmatprep.subr.bf16.mxu0 0
        %675 = vmatpush1.bf16.msra.mxu0 0
        %676 = vmatprep.subr.bf16.mxu0 0
        %677 = vmatpush1.bf16.msra.mxu0 0
        %678 = vmatprep.subr.bf16.mxu0 0
        %679 = vmatpush1.bf16.msra.mxu0 0
        %680 = vmatprep.subr.bf16.mxu0 0
        %681 = vmatpush1.bf16.msra.mxu0 0
        %682 = vmatprep.subr.bf16.mxu0 0
        %683 = vmatpush1.bf16.msra.mxu0 0
        %684 = vmatprep.subr.bf16.mxu0 0
        %685 = vmatpush1.bf16.msra.mxu0 0
        %686 = vmatprep.mubr.bf16.mxu0 0
        %687 = vmatmul.mubr.bf16.gmra.mrb[0].mxu0 %v447
        %v688 = vpop.f32.mrb[0].mxu0
        %v689 = vadd.f32 0.0, %v688
        %v690 = vpop.f32.mrb[0].mxu0
        %v691 = vadd.f32 0.0, %v690
        %v692 = vpop.f32.mrb[0].mxu0
        %v693 = vpop.f32.mrb[0].mxu0
        %694 = vdwg.mxu0
        %695 = vmatprep.subr.bf16.mxu0 %v386
        %696 = vmatpush1.bf16.msra.mxu0 %v385
        %697 = vmatprep.subr.bf16.mxu0 %v404
        %698 = vmatpush1.bf16.msra.mxu0 %v403
        %699 = vmatprep.subr.bf16.mxu0 0
        %700 = vmatpush1.bf16.msra.mxu0 0
        %701 = vmatprep.subr.bf16.mxu0 0
        %702 = vmatpush1.bf16.msra.mxu0 0
        %703 = vmatprep.subr.bf16.mxu0 0
        %704 = vmatpush1.bf16.msra.mxu0 0
        %705 = vmatprep.subr.bf16.mxu0 0
        %706 = vmatpush1.bf16.msra.mxu0 0
        %707 = vmatprep.subr.bf16.mxu0 0
        %708 = vmatpush1.bf16.msra.mxu0 0
        %709 = vmatprep.subr.bf16.mxu0 0
        %710 = vmatpush1.bf16.msra.mxu0 0
        %711 = vmatprep.subr.bf16.mxu0 0
        %712 = vmatpush1.bf16.msra.mxu0 0
        %713 = vmatprep.subr.bf16.mxu0 0
        %714 = vmatpush1.bf16.msra.mxu0 0
        %715 = vmatprep.subr.bf16.mxu0 0
        %716 = vmatpush1.bf16.msra.mxu0 0
        %717 = vmatprep.subr.bf16.mxu0 0
        %718 = vmatpush1.bf16.msra.mxu0 0
        %719 = vmatprep.subr.bf16.mxu0 0
        %720 = vmatpush1.bf16.msra.mxu0 0
        %721 = vmatprep.subr.bf16.mxu0 0
        %722 = vmatpush1.bf16.msra.mxu0 0
        %723 = vmatprep.subr.bf16.mxu0 0
        %724 = vmatpush1.bf16.msra.mxu0 0
        %725 = vmatprep.subr.bf16.mxu0 0
        %726 = vmatpush1.bf16.msra.mxu0 0
        %727 = vmatprep.mubr.bf16.mxu0 0
        %728 = vmatmul.mubr.bf16.gmra.mrb[0].mxu0 %v447
        %v729 = vpop.f32.mrb[0].mxu0
        %v730 = vadd.f32 0.0, %v729
        %v731 = vpop.f32.mrb[0].mxu0
        %v732 = vadd.f32 0.0, %v731
        %v733 = vpop.f32.mrb[0].mxu0
        %v734 = vpop.f32.mrb[0].mxu0
        %735 = vdwg.mxu0
        %736 = vmatprep.subr.bf16.mxu0 %v388
        %737 = vmatpush1.bf16.msra.mxu0 %v387
        %738 = vmatprep.subr.bf16.mxu0 %v406
        %739 = vmatpush1.bf16.msra.mxu0 %v405
        %740 = vmatprep.subr.bf16.mxu0 0
        %741 = vmatpush1.bf16.msra.mxu0 0
        %742 = vmatprep.subr.bf16.mxu0 0
        %743 = vmatpush1.bf16.msra.mxu0 0
        %744 = vmatprep.subr.bf16.mxu0 0
        %745 = vmatpush1.bf16.msra.mxu0 0
        %746 = vmatprep.subr.bf16.mxu0 0
        %747 = vmatpush1.bf16.msra.mxu0 0
        %748 = vmatprep.subr.bf16.mxu0 0
        %749 = vmatpush1.bf16.msra.mxu0 0
        %750 = vmatprep.subr.bf16.mxu0 0
        %751 = vmatpush1.bf16.msra.mxu0 0
        %752 = vmatprep.subr.bf16.mxu0 0
        %753 = vmatpush1.bf16.msra.mxu0 0
        %754 = vmatprep.subr.bf16.mxu0 0
        %755 = vmatpush1.bf16.msra.mxu0 0
        %756 = vmatprep.subr.bf16.mxu0 0
        %757 = vmatpush1.bf16.msra.mxu0 0
        %758 = vmatprep.subr.bf16.mxu0 0
        %759 = vmatpush1.bf16.msra.mxu0 0
        %760 = vmatprep.subr.bf16.mxu0 0
        %761 = vmatpush1.bf16.msra.mxu0 0
        %762 = vmatprep.subr.bf16.mxu0 0
        %763 = vmatpush1.bf16.msra.mxu0 0
        %764 = vmatprep.subr.bf16.mxu0 0
        %765 = vmatpush1.bf16.msra.mxu0 0
        %766 = vmatprep.subr.bf16.mxu0 0
        %767 = vmatpush1.bf16.msra.mxu0 0
        %768 = vmatprep.mubr.bf16.mxu0 0
        %769 = vmatmul.mubr.bf16.gmra.mrb[0].mxu0 %v447
        %v770 = vpop.f32.mrb[0].mxu0
        %v771 = vadd.f32 0.0, %v770
        %v772 = vpop.f32.mrb[0].mxu0
        %v773 = vadd.f32 0.0, %v772
        %v774 = vpop.f32.mrb[0].mxu0
        %v775 = vpop.f32.mrb[0].mxu0
        %776 = vdwg.mxu0
        %777 = vmatprep.subr.bf16.mxu0 %v390
        %778 = vmatpush1.bf16.msra.mxu0 %v389
        %779 = vmatprep.subr.bf16.mxu0 %v408
        %780 = vmatpush1.bf16.msra.mxu0 %v407
        %781 = vmatprep.subr.bf16.mxu0 0
        %782 = vmatpush1.bf16.msra.mxu0 0
        %783 = vmatprep.subr.bf16.mxu0 0
        %784 = vmatpush1.bf16.msra.mxu0 0
        %785 = vmatprep.subr.bf16.mxu0 0
        %786 = vmatpush1.bf16.msra.mxu0 0
        %787 = vmatprep.subr.bf16.mxu0 0
        %788 = vmatpush1.bf16.msra.mxu0 0
        %789 = vmatprep.subr.bf16.mxu0 0
        %790 = vmatpush1.bf16.msra.mxu0 0
        %791 = vmatprep.subr.bf16.mxu0 0
        %792 = vmatpush1.bf16.msra.mxu0 0
        %793 = vmatprep.subr.bf16.mxu0 0
        %794 = vmatpush1.bf16.msra.mxu0 0
        %795 = vmatprep.subr.bf16.mxu0 0
        %796 = vmatpush1.bf16.msra.mxu0 0
        %797 = vmatprep.subr.bf16.mxu0 0
        %798 = vmatpush1.bf16.msra.mxu0 0
        %799 = vmatprep.subr.bf16.mxu0 0
        %800 = vmatpush1.bf16.msra.mxu0 0
        %801 = vmatprep.subr.bf16.mxu0 0
        %802 = vmatpush1.bf16.msra.mxu0 0
        %803 = vmatprep.subr.bf16.mxu0 0
        %804 = vmatpush1.bf16.msra.mxu0 0
        %805 = vmatprep.subr.bf16.mxu0 0
        %806 = vmatpush1.bf16.msra.mxu0 0
        %807 = vmatprep.subr.bf16.mxu0 0
        %808 = vmatpush1.bf16.msra.mxu0 0
        %809 = vmatprep.mubr.bf16.mxu0 0
        %810 = vmatmul.mubr.bf16.gmra.mrb[0].mxu0 %v447
        %v811 = vpop.f32.mrb[0].mxu0
        %v812 = vadd.f32 0.0, %v811
        %v813 = vpop.f32.mrb[0].mxu0
        %v814 = vadd.f32 0.0, %v813
        %v815 = vpop.f32.mrb[0].mxu0
        %v816 = vpop.f32.mrb[0].mxu0
        %817 = vdwg.mxu0
        %v818 = vmul.f32 %v648, %v812
        %v819 = vmul.f32 %v650, %v812
        %v820 = vmul.f32 %v689, %v812
        %v821 = vmul.f32 %v691, %v812
        %v822 = vmul.f32 %v730, %v814
        %v823 = vmul.f32 %v732, %v814
        %v824 = vmul.f32 %v771, %v814
        %v825 = vmul.f32 %v773, %v814
        %v826 = vsub.f32 %v818, %v822
        %v827 = vsub.f32 %v819, %v823
        %v828 = vsub.f32 %v820, %v824
        %v829 = vsub.f32 %v821, %v825
        %v830 = vmul.f32 %v648, %v814
        %v831 = vmul.f32 %v650, %v814
        %v832 = vmul.f32 %v689, %v814
        %v833 = vmul.f32 %v691, %v814
        %v834 = vmul.f32 %v730, %v812
        %v835 = vmul.f32 %v732, %v812
        %v836 = vmul.f32 %v771, %v812
        %v837 = vmul.f32 %v773, %v812
        %v838 = vadd.f32 %v830, %v834
        %v839 = vadd.f32 %v831, %v835
        %v840 = vadd.f32 %v832, %v836
        %v841 = vadd.f32 %v833, %v837
        %v842 = vpack.c.bf16 %v826, %v826
        %v843 = vpack.c.bf16 %v827, %v827
        %v844 = vpack.c.bf16 %v828, %v828
        %v845 = vpack.c.bf16 %v829, %v829
        %v846 = vpack.c.bf16 %v838, %v838
        %v847 = vpack.c.bf16 %v839, %v839
        %v848 = vpack.c.bf16 %v840, %v840
        %v849 = vpack.c.bf16 %v841, %v841
        %v850 = vld [vmem:[%s3] sm:$0xf]
        %v851 = vld [vmem:[#allocation2] sm:$0xff]
        %v853 = vlaneseq
        %v854 = vshrl.u32 %v853, 7
        %v855 = vsub.s32 0, %v854
        %v856 = vrot.slane %v851, %v855
        %v857 = vlaneseq
        %v858 = vshrl.u32 %v857, 7
        %v859 = vsub.s32 1, %v858
        %v860 = vrot.slane %v851, %v859
        %v861 = vlaneseq
        %v862 = vshrl.u32 %v861, 7
        %v863 = vsub.s32 2, %v862
        %v864 = vrot.slane %v851, %v863
        %v865 = vlaneseq
        %v866 = vshrl.u32 %v865, 7
        %v867 = vsub.s32 3, %v866
        %v868 = vrot.slane %v851, %v867
        %v869 = vlaneseq
        %v870 = vshrl.u32 %v869, 7
        %v871 = vsub.s32 4, %v870
        %v872 = vrot.slane %v851, %v871
        %v873 = vlaneseq
        %v874 = vshrl.u32 %v873, 7
        %v875 = vsub.s32 5, %v874
        %v876 = vrot.slane %v851, %v875
        %v877 = vlaneseq
        %v878 = vshrl.u32 %v877, 7
        %v879 = vsub.s32 6, %v878
        %v880 = vrot.slane %v851, %v879
        %v881 = vlaneseq
        %v882 = vshrl.u32 %v881, 7
        %v883 = vsub.s32 7, %v882
        %v884 = vrot.slane %v851, %v883
        %vm893 = vcmask 64512
        %v895 = vsel %vm893, %v850, 0
        %vm897 = vcmask 1043456
        %v899 = vsel %vm897, %v842, 0
        %v902 = vsel %vm897, %v843, 0
        %v905 = vsel %vm897, %v844, 0
        %v908 = vsel %vm897, %v845, 0
        %v911 = vsel %vm897, %v846, 0
        %v914 = vsel %vm897, %v847, 0
        %v917 = vsel %vm897, %v848, 0
        %v920 = vsel %vm897, %v849, 0
        %922 = vmatprep.subr.bf16.mxu0 %v902
        %923 = vmatpush1.bf16.msra.mxu0 %v899
        %924 = vmatprep.subr.bf16.mxu0 0
        %925 = vmatpush1.bf16.msra.mxu0 0
        %926 = vmatprep.subr.bf16.mxu0 0
        %927 = vmatpush1.bf16.msra.mxu0 0
        %928 = vmatprep.subr.bf16.mxu0 0
        %929 = vmatpush1.bf16.msra.mxu0 0
        %930 = vmatprep.subr.bf16.mxu0 0
        %931 = vmatpush1.bf16.msra.mxu0 0
        %932 = vmatprep.subr.bf16.mxu0 0
        %933 = vmatpush1.bf16.msra.mxu0 0
        %934 = vmatprep.subr.bf16.mxu0 0
        %935 = vmatpush1.bf16.msra.mxu0 0
        %936 = vmatprep.subr.bf16.mxu0 0
        %937 = vmatpush1.bf16.msra.mxu0 0
        %938 = vmatprep.subr.bf16.mxu0 0
        %939 = vmatpush1.bf16.msra.mxu0 0
        %940 = vmatprep.subr.bf16.mxu0 0
        %941 = vmatpush1.bf16.msra.mxu0 0
        %942 = vmatprep.subr.bf16.mxu0 0
        %943 = vmatpush1.bf16.msra.mxu0 0
        %944 = vmatprep.subr.bf16.mxu0 0
        %945 = vmatpush1.bf16.msra.mxu0 0
        %946 = vmatprep.subr.bf16.mxu0 0
        %947 = vmatpush1.bf16.msra.mxu0 0
        %948 = vmatprep.subr.bf16.mxu0 0
        %949 = vmatpush1.bf16.msra.mxu0 0
        %950 = vmatprep.subr.bf16.mxu0 0
        %951 = vmatpush1.bf16.msra.mxu0 0
        %952 = vmatprep.subr.bf16.mxu0 0
        %953 = vmatpush1.bf16.msra.mxu0 0
        %954 = vmatprep.mubr.bf16.mxu0 0
        %955 = vmatmul.mubr.bf16.gmra.mrb[0].mxu0 %v895
        %v956 = vpop.f32.mrb[0].mxu0
        %v957 = vadd.f32 %v856, %v956
        %v958 = vpop.f32.mrb[0].mxu0
        %v959 = vadd.f32 %v860, %v958
        %v960 = vpop.f32.mrb[0].mxu0
        %v961 = vpop.f32.mrb[0].mxu0
        %962 = vdwg.mxu0
        %963 = vmatprep.subr.bf16.mxu0 %v908
        %964 = vmatpush1.bf16.msra.mxu0 %v905
        %965 = vmatprep.subr.bf16.mxu0 0
        %966 = vmatpush1.bf16.msra.mxu0 0
        %967 = vmatprep.subr.bf16.mxu0 0
        %968 = vmatpush1.bf16.msra.mxu0 0
        %969 = vmatprep.subr.bf16.mxu0 0
        %970 = vmatpush1.bf16.msra.mxu0 0
        %971 = vmatprep.subr.bf16.mxu0 0
        %972 = vmatpush1.bf16.msra.mxu0 0
        %973 = vmatprep.subr.bf16.mxu0 0
        %974 = vmatpush1.bf16.msra.mxu0 0
        %975 = vmatprep.subr.bf16.mxu0 0
        %976 = vmatpush1.bf16.msra.mxu0 0
        %977 = vmatprep.subr.bf16.mxu0 0
        %978 = vmatpush1.bf16.msra.mxu0 0
        %979 = vmatprep.subr.bf16.mxu0 0
        %980 = vmatpush1.bf16.msra.mxu0 0
        %981 = vmatprep.subr.bf16.mxu0 0
        %982 = vmatpush1.bf16.msra.mxu0 0
        %983 = vmatprep.subr.bf16.mxu0 0
        %984 = vmatpush1.bf16.msra.mxu0 0
        %985 = vmatprep.subr.bf16.mxu0 0
        %986 = vmatpush1.bf16.msra.mxu0 0
        %987 = vmatprep.subr.bf16.mxu0 0
        %988 = vmatpush1.bf16.msra.mxu0 0
        %989 = vmatprep.subr.bf16.mxu0 0
        %990 = vmatpush1.bf16.msra.mxu0 0
        %991 = vmatprep.subr.bf16.mxu0 0
        %992 = vmatpush1.bf16.msra.mxu0 0
        %993 = vmatprep.subr.bf16.mxu0 0
        %994 = vmatpush1.bf16.msra.mxu0 0
        %995 = vmatprep.mubr.bf16.mxu0 0
        %996 = vmatmul.mubr.bf16.gmra.mrb[0].mxu0 %v895
        %v997 = vpop.f32.mrb[0].mxu0
        %v998 = vadd.f32 %v864, %v997
        %v999 = vpop.f32.mrb[0].mxu0
        %v1000 = vadd.f32 %v868, %v999
        %v1001 = vpop.f32.mrb[0].mxu0
        %v1002 = vpop.f32.mrb[0].mxu0
        %1003 = vdwg.mxu0
        %1004 = vmatprep.subr.bf16.mxu0 %v914
        %1005 = vmatpush1.bf16.msra.mxu0 %v911
        %1006 = vmatprep.subr.bf16.mxu0 0
        %1007 = vmatpush1.bf16.msra.mxu0 0
        %1008 = vmatprep.subr.bf16.mxu0 0
        %1009 = vmatpush1.bf16.msra.mxu0 0
        %1010 = vmatprep.subr.bf16.mxu0 0
        %1011 = vmatpush1.bf16.msra.mxu0 0
        %1012 = vmatprep.subr.bf16.mxu0 0
        %1013 = vmatpush1.bf16.msra.mxu0 0
        %1014 = vmatprep.subr.bf16.mxu0 0
        %1015 = vmatpush1.bf16.msra.mxu0 0
        %1016 = vmatprep.subr.bf16.mxu0 0
        %1017 = vmatpush1.bf16.msra.mxu0 0
        %1018 = vmatprep.subr.bf16.mxu0 0
        %1019 = vmatpush1.bf16.msra.mxu0 0
        %1020 = vmatprep.subr.bf16.mxu0 0
        %1021 = vmatpush1.bf16.msra.mxu0 0
        %1022 = vmatprep.subr.bf16.mxu0 0
        %1023 = vmatpush1.bf16.msra.mxu0 0
        %1024 = vmatprep.subr.bf16.mxu0 0
        %1025 = vmatpush1.bf16.msra.mxu0 0
        %1026 = vmatprep.subr.bf16.mxu0 0
        %1027 = vmatpush1.bf16.msra.mxu0 0
        %1028 = vmatprep.subr.bf16.mxu0 0
        %1029 = vmatpush1.bf16.msra.mxu0 0
        %1030 = vmatprep.subr.bf16.mxu0 0
        %1031 = vmatpush1.bf16.msra.mxu0 0
        %1032 = vmatprep.subr.bf16.mxu0 0
        %1033 = vmatpush1.bf16.msra.mxu0 0
        %1034 = vmatprep.subr.bf16.mxu0 0
        %1035 = vmatpush1.bf16.msra.mxu0 0
        %1036 = vmatprep.mubr.bf16.mxu0 0
        %1037 = vmatmul.mubr.bf16.gmra.mrb[0].mxu0 %v895
        %v1038 = vpop.f32.mrb[0].mxu0
        %v1039 = vadd.f32 %v872, %v1038
        %v1040 = vpop.f32.mrb[0].mxu0
        %v1041 = vadd.f32 %v876, %v1040
        %v1042 = vpop.f32.mrb[0].mxu0
        %v1043 = vpop.f32.mrb[0].mxu0
        %1044 = vdwg.mxu0
        %1045 = vmatprep.subr.bf16.mxu0 %v920
        %1046 = vmatpush1.bf16.msra.mxu0 %v917
        %1047 = vmatprep.subr.bf16.mxu0 0
        %1048 = vmatpush1.bf16.msra.mxu0 0
        %1049 = vmatprep.subr.bf16.mxu0 0
        %1050 = vmatpush1.bf16.msra.mxu0 0
        %1051 = vmatprep.subr.bf16.mxu0 0
        %1052 = vmatpush1.bf16.msra.mxu0 0
        %1053 = vmatprep.subr.bf16.mxu0 0
        %1054 = vmatpush1.bf16.msra.mxu0 0
        %1055 = vmatprep.subr.bf16.mxu0 0
        %1056 = vmatpush1.bf16.msra.mxu0 0
        %1057 = vmatprep.subr.bf16.mxu0 0
        %1058 = vmatpush1.bf16.msra.mxu0 0
        %1059 = vmatprep.subr.bf16.mxu0 0
        %1060 = vmatpush1.bf16.msra.mxu0 0
        %1061 = vmatprep.subr.bf16.mxu0 0
        %1062 = vmatpush1.bf16.msra.mxu0 0
        %1063 = vmatprep.subr.bf16.mxu0 0
        %1064 = vmatpush1.bf16.msra.mxu0 0
        %1065 = vmatprep.subr.bf16.mxu0 0
        %1066 = vmatpush1.bf16.msra.mxu0 0
        %1067 = vmatprep.subr.bf16.mxu0 0
        %1068 = vmatpush1.bf16.msra.mxu0 0
        %1069 = vmatprep.subr.bf16.mxu0 0
        %1070 = vmatpush1.bf16.msra.mxu0 0
        %1071 = vmatprep.subr.bf16.mxu0 0
        %1072 = vmatpush1.bf16.msra.mxu0 0
        %1073 = vmatprep.subr.bf16.mxu0 0
        %1074 = vmatpush1.bf16.msra.mxu0 0
        %1075 = vmatprep.subr.bf16.mxu0 0
        %1076 = vmatpush1.bf16.msra.mxu0 0
        %1077 = vmatprep.mubr.bf16.mxu0 0
        %1078 = vmatmul.mubr.bf16.gmra.mrb[0].mxu0 %v895
        %v1079 = vpop.f32.mrb[0].mxu0
        %v1080 = vadd.f32 %v880, %v1079
        %v1081 = vpop.f32.mrb[0].mxu0
        %v1082 = vadd.f32 %v884, %v1081
        %v1083 = vpop.f32.mrb[0].mxu0
        %v1084 = vpop.f32.mrb[0].mxu0
        %1085 = vdwg.mxu0
        %v1094 = vcombine.high %v957, %v959
        %v1095 = vcombine.high %v998, %v1000
        %v1096 = vcombine.high %v1039, %v1041
        %v1097 = vcombine.high %v1080, %v1082
        %v1099 = vunpack.c.l.s4 1966171168
        %v1100 = vunpack.c.0.s8 %v1099
        %v1101 = vlaneseq
        %v1102 = vshrl.u32 %v1101, 7
        %v1103 = vsub.s32 %v1100, %v1102
        %v1104 = vrot.slane %v1094, %v1103
        %v1106 = vunpack.c.l.s4 1966171168
        %v1107 = vunpack.c.0.s8 %v1106
        %v1108 = vlaneseq
        %v1109 = vshrl.u32 %v1108, 7
        %v1110 = vsub.s32 %v1107, %v1109
        %v1111 = vrot.slane %v1095, %v1110
        %v1113 = vunpack.c.l.s4 1966171168
        %v1114 = vunpack.c.0.s8 %v1113
        %v1115 = vlaneseq
        %v1116 = vshrl.u32 %v1115, 7
        %v1117 = vsub.s32 %v1114, %v1116
        %v1118 = vrot.slane %v1096, %v1117
        %v1120 = vunpack.c.l.s4 1966171168
        %v1121 = vunpack.c.0.s8 %v1120
        %v1122 = vlaneseq
        %v1123 = vshrl.u32 %v1122, 7
        %v1124 = vsub.s32 %v1121, %v1123
        %v1125 = vrot.slane %v1097, %v1124
        %v1126 = vcombine.high %v1104, %v1111
        %v1127 = vcombine.high %v1118, %v1125
        %v1129 = vunpack.c.l.s4 1966171168
        %v1130 = vunpack.c.0.s8 %v1129
        %v1131 = vlaneseq
        %v1132 = vshrl.u32 %v1131, 7
        %v1133 = vsub.s32 %v1130, %v1132
        %v1134 = vrot.slane %v1126, %v1133
        %v1136 = vunpack.c.l.s4 1966171168
        %v1137 = vunpack.c.0.s8 %v1136
        %v1138 = vlaneseq
        %v1139 = vshrl.u32 %v1138, 7
        %v1140 = vsub.s32 %v1137, %v1139
        %v1141 = vrot.slane %v1127, %v1140
        %v1142 = vcombine.high %v1134, %v1141
        %1144 = vst [vmem:[#allocation2] sm:$0xff] %v1142
        %v1145 = vmul.f32 %v484, %v957
        %v1146 = vmul.f32 %v486, %v959
        %v1147 = vmul.f32 %v525, %v998
        %v1148 = vmul.f32 %v527, %v1000
        %v1149 = vmul.f32 %v566, %v1039
        %v1150 = vmul.f32 %v568, %v1041
        %v1151 = vmul.f32 %v607, %v1080
        %v1152 = vmul.f32 %v609, %v1082
        %v1153 = vadd.f32 %v1145, %v1149
        %v1154 = vadd.f32 %v1146, %v1150
        %v1155 = vadd.f32 %v1147, %v1151
        %v1156 = vadd.f32 %v1148, %v1152
        %v1157 = vmul.f32 %v484, %v1039
        %v1158 = vmul.f32 %v486, %v1041
        %v1159 = vmul.f32 %v525, %v1080
        %v1160 = vmul.f32 %v527, %v1082
        %v1161 = vmul.f32 %v566, %v957
        %v1162 = vmul.f32 %v568, %v959
        %v1163 = vmul.f32 %v607, %v998
        %v1164 = vmul.f32 %v609, %v1000
        %v1165 = vsub.f32 %v1157, %v1161
        %v1166 = vsub.f32 %v1158, %v1162
        %v1167 = vsub.f32 %v1159, %v1163
        %v1168 = vsub.f32 %v1160, %v1164
        %v1169 = vpack.c.bf16 %v1153, %v1153
        %v1170 = vpack.c.bf16 %v1154, %v1154
        %v1171 = vpack.c.bf16 %v1155, %v1155
        %v1172 = vpack.c.bf16 %v1156, %v1156
        %v1173 = vpack.c.bf16 %v1165, %v1165
        %v1174 = vpack.c.bf16 %v1166, %v1166
        %v1175 = vpack.c.bf16 %v1167, %v1167
        %v1176 = vpack.c.bf16 %v1168, %v1168
        %v1177 = vld [vmem:[%s2] sm:$0xf]
        %v1178 = vld [vmem:[%s2 + $0x4] sm:$0xf]
        %v1179 = vld [vmem:[%s2 + $0x8] sm:$0xf]
        %v1180 = vld [vmem:[%s2 + $0xc] sm:$0xf]
        %v1181 = vld [vmem:[%s2 + $0x10] sm:$0xf]
        %v1182 = vld [vmem:[%s2 + $0x14] sm:$0xf]
        %v1183 = vld [vmem:[%s2 + $0x18] sm:$0xf]
        %v1184 = vld [vmem:[%s2 + $0x1c] sm:$0xf]
        %v1185 = vld [vmem:[%s2 + $0x20] sm:$0xf]
        %v1186 = vld [vmem:[%s2 + $0x24] sm:$0xf]
        %v1187 = vld [vmem:[%s2 + $0x28] sm:$0xf]
        %v1188 = vld [vmem:[%s2 + $0x2c] sm:$0xf]
        %v1189 = vld [vmem:[%s2 + $0x30] sm:$0xf]
        %v1190 = vld [vmem:[%s2 + $0x34] sm:$0xf]
        %v1191 = vld [vmem:[%s2 + $0x38] sm:$0xf]
        %v1192 = vld [vmem:[%s2 + $0x3c] sm:$0xf]
        %v1193 = vld [vmem:[%s2 + $0x40] sm:$0xf]
        %v1194 = vld [vmem:[%s2 + $0x44] sm:$0xf]
        %v1195 = vld [vmem:[%s2 + $0x48] sm:$0xf]
        %v1196 = vld [vmem:[%s2 + $0x4c] sm:$0xf]
        %v1197 = vld [vmem:[%s2 + $0x50] sm:$0xf]
        %v1198 = vld [vmem:[%s2 + $0x54] sm:$0xf]
        %v1199 = vld [vmem:[%s2 + $0x58] sm:$0xf]
        %v1200 = vld [vmem:[%s2 + $0x5c] sm:$0xf]
        %v1201 = vld [vmem:[%s2 + $0x60] sm:$0xf]
        %v1202 = vld [vmem:[%s2 + $0x64] sm:$0xf]
        %v1203 = vld [vmem:[%s2 + $0x68] sm:$0xf]
        %v1204 = vld [vmem:[%s2 + $0x6c] sm:$0xf]
        %v1205 = vld [vmem:[%s2 + $0x70] sm:$0xf]
        %v1206 = vld [vmem:[%s2 + $0x74] sm:$0xf]
        %v1207 = vld [vmem:[%s2 + $0x78] sm:$0xf]
        %v1208 = vld [vmem:[%s2 + $0x7c] sm:$0xf]
        %v1209 = vld [vmem:[%s2 + $0x80] sm:$0xf]
        %v1210 = vld [vmem:[%s2 + $0x84] sm:$0xf]
        %v1211 = vld [vmem:[%s2 + $0x88] sm:$0xf]
        %v1212 = vld [vmem:[%s2 + $0x8c] sm:$0xf]
        %v1213 = vld [vmem:[%s2 + $0x90] sm:$0xf]
        %v1214 = vld [vmem:[%s2 + $0x94] sm:$0xf]
        %v1215 = vld [vmem:[%s2 + $0x98] sm:$0xf]
        %v1216 = vld [vmem:[%s2 + $0x9c] sm:$0xf]
        %v1217 = vld [vmem:[%s2 + $0xa0] sm:$0xf]
        %v1218 = vld [vmem:[%s2 + $0xa4] sm:$0xf]
        %v1219 = vld [vmem:[%s2 + $0xa8] sm:$0xf]
        %v1220 = vld [vmem:[%s2 + $0xac] sm:$0xf]
        %v1221 = vld [vmem:[%s2 + $0xb0] sm:$0xf]
        %v1222 = vld [vmem:[%s2 + $0xb4] sm:$0xf]
        %v1223 = vld [vmem:[%s2 + $0xb8] sm:$0xf]
        %v1224 = vld [vmem:[%s2 + $0xbc] sm:$0xf]
        %v1225 = vld [vmem:[%s2 + $0xc0] sm:$0xf]
        %v1226 = vld [vmem:[%s2 + $0xc4] sm:$0xf]
        %v1227 = vld [vmem:[%s2 + $0xc8] sm:$0xf]
        %v1228 = vld [vmem:[%s2 + $0xcc] sm:$0xf]
        %v1229 = vld [vmem:[%s2 + $0xd0] sm:$0xf]
        %v1230 = vld [vmem:[%s2 + $0xd4] sm:$0xf]
        %v1231 = vld [vmem:[%s2 + $0xd8] sm:$0xf]
        %v1232 = vld [vmem:[%s2 + $0xdc] sm:$0xf]
        %v1233 = vld [vmem:[%s2 + $0xe0] sm:$0xf]
        %v1234 = vld [vmem:[%s2 + $0xe4] sm:$0xf]
        %v1235 = vld [vmem:[%s2 + $0xe8] sm:$0xf]
        %v1236 = vld [vmem:[%s2 + $0xec] sm:$0xf]
        %v1237 = vld [vmem:[%s2 + $0xf0] sm:$0xf]
        %v1238 = vld [vmem:[%s2 + $0xf4] sm:$0xf]
        %v1239 = vld [vmem:[%s2 + $0xf8] sm:$0xf]
        %v1240 = vld [vmem:[%s2 + $0xfc] sm:$0xf]
        %v1241 = vld [vmem:[%s2 + $0x100] sm:$0xf]
        %v1242 = vld [vmem:[%s2 + $0x104] sm:$0xf]
        %v1243 = vld [vmem:[%s2 + $0x108] sm:$0xf]
        %v1244 = vld [vmem:[%s2 + $0x10c] sm:$0xf]
        %v1245 = vld [vmem:[%s2 + $0x110] sm:$0xf]
        %v1246 = vld [vmem:[%s2 + $0x114] sm:$0xf]
        %v1247 = vld [vmem:[%s2 + $0x118] sm:$0xf]
        %v1248 = vld [vmem:[%s2 + $0x11c] sm:$0xf]
        %v1249 = vld [vmem:[%s2 + $0x120] sm:$0xf]
        %v1250 = vld [vmem:[%s2 + $0x124] sm:$0xf]
        %v1251 = vld [vmem:[%s2 + $0x128] sm:$0xf]
        %v1252 = vld [vmem:[%s2 + $0x12c] sm:$0xf]
        %v1253 = vld [vmem:[%s2 + $0x130] sm:$0xf]
        %v1254 = vld [vmem:[%s2 + $0x134] sm:$0xf]
        %v1255 = vld [vmem:[%s2 + $0x138] sm:$0xf]
        %v1256 = vld [vmem:[%s2 + $0x13c] sm:$0xf]
        %v1257 = vld [vmem:[%s2 + $0x140] sm:$0xf]
        %v1258 = vld [vmem:[%s2 + $0x144] sm:$0xf]
        %v1259 = vld [vmem:[%s2 + $0x148] sm:$0xf]
        %v1260 = vld [vmem:[%s2 + $0x14c] sm:$0xf]
        %v1261 = vld [vmem:[%s2 + $0x150] sm:$0xf]
        %v1262 = vld [vmem:[%s2 + $0x154] sm:$0xf]
        %v1263 = vld [vmem:[%s2 + $0x158] sm:$0xf]
        %v1264 = vld [vmem:[%s2 + $0x15c] sm:$0xf]
        %v1265 = vld [vmem:[%s2 + $0x160] sm:$0xf]
        %v1266 = vld [vmem:[%s2 + $0x164] sm:$0xf]
        %v1267 = vld [vmem:[%s2 + $0x168] sm:$0xf]
        %v1268 = vld [vmem:[%s2 + $0x16c] sm:$0xf]
        %v1269 = vld [vmem:[%s2 + $0x170] sm:$0xf]
        %v1270 = vld [vmem:[%s2 + $0x174] sm:$0xf]
        %v1271 = vld [vmem:[%s2 + $0x178] sm:$0xf]
        %v1272 = vld [vmem:[%s2 + $0x17c] sm:$0xf]
        %v1273 = vld [vmem:[%s2 + $0x180] sm:$0xf]
        %v1274 = vld [vmem:[%s2 + $0x184] sm:$0xf]
        %v1275 = vld [vmem:[%s2 + $0x188] sm:$0xf]
        %v1276 = vld [vmem:[%s2 + $0x18c] sm:$0xf]
        %v1277 = vld [vmem:[%s2 + $0x190] sm:$0xf]
        %v1278 = vld [vmem:[%s2 + $0x194] sm:$0xf]
        %v1279 = vld [vmem:[%s2 + $0x198] sm:$0xf]
        %v1280 = vld [vmem:[%s2 + $0x19c] sm:$0xf]
        %v1281 = vld [vmem:[%s2 + $0x1a0] sm:$0xf]
        %v1282 = vld [vmem:[%s2 + $0x1a4] sm:$0xf]
        %v1283 = vld [vmem:[%s2 + $0x1a8] sm:$0xf]
        %v1284 = vld [vmem:[%s2 + $0x1ac] sm:$0xf]
        %v1285 = vld [vmem:[%s2 + $0x1b0] sm:$0xf]
        %v1286 = vld [vmem:[%s2 + $0x1b4] sm:$0xf]
        %v1287 = vld [vmem:[%s2 + $0x1b8] sm:$0xf]
        %v1288 = vld [vmem:[%s2 + $0x1bc] sm:$0xf]
        %v1289 = vld [vmem:[%s2 + $0x1c0] sm:$0xf]
        %v1290 = vld [vmem:[%s2 + $0x1c4] sm:$0xf]
        %v1291 = vld [vmem:[%s2 + $0x1c8] sm:$0xf]
        %v1292 = vld [vmem:[%s2 + $0x1cc] sm:$0xf]
        %v1293 = vld [vmem:[%s2 + $0x1d0] sm:$0xf]
        %v1294 = vld [vmem:[%s2 + $0x1d4] sm:$0xf]
        %v1295 = vld [vmem:[%s2 + $0x1d8] sm:$0xf]
        %v1296 = vld [vmem:[%s2 + $0x1dc] sm:$0xf]
        %v1297 = vld [vmem:[%s2 + $0x1e0] sm:$0xf]
        %v1298 = vld [vmem:[%s2 + $0x1e4] sm:$0xf]
        %v1299 = vld [vmem:[%s2 + $0x1e8] sm:$0xf]
        %v1300 = vld [vmem:[%s2 + $0x1ec] sm:$0xf]
        %v1301 = vld [vmem:[%s2 + $0x1f0] sm:$0xf]
        %v1302 = vld [vmem:[%s2 + $0x1f4] sm:$0xf]
        %v1303 = vld [vmem:[%s2 + $0x1f8] sm:$0xf]
        %v1304 = vld [vmem:[%s2 + $0x1fc] sm:$0xf]
        %v1433 = vunpack.c.l.b16 %v1177
        %v1434 = vunpack.c.l.b16 %v1178
        %v1435 = vunpack.c.l.b16 %v1179
        %v1436 = vunpack.c.l.b16 %v1180
        %v1437 = vunpack.c.l.b16 %v1181
        %v1438 = vunpack.c.l.b16 %v1182
        %v1439 = vunpack.c.l.b16 %v1183
        %v1440 = vunpack.c.l.b16 %v1184
        %v1441 = vunpack.c.l.b16 %v1185
        %v1442 = vunpack.c.l.b16 %v1186
        %v1443 = vunpack.c.l.b16 %v1187
        %v1444 = vunpack.c.l.b16 %v1188
        %v1445 = vunpack.c.l.b16 %v1189
        %v1446 = vunpack.c.l.b16 %v1190
        %v1447 = vunpack.c.l.b16 %v1191
        %v1448 = vunpack.c.l.b16 %v1192
        %v1449 = vunpack.c.l.b16 %v1193
        %v1450 = vunpack.c.l.b16 %v1194
        %v1451 = vunpack.c.l.b16 %v1195
        %v1452 = vunpack.c.l.b16 %v1196
        %v1453 = vunpack.c.l.b16 %v1197
        %v1454 = vunpack.c.l.b16 %v1198
        %v1455 = vunpack.c.l.b16 %v1199
        %v1456 = vunpack.c.l.b16 %v1200
        %v1457 = vunpack.c.l.b16 %v1201
        %v1458 = vunpack.c.l.b16 %v1202
        %v1459 = vunpack.c.l.b16 %v1203
        %v1460 = vunpack.c.l.b16 %v1204
        %v1461 = vunpack.c.l.b16 %v1205
        %v1462 = vunpack.c.l.b16 %v1206
        %v1463 = vunpack.c.l.b16 %v1207
        %v1464 = vunpack.c.l.b16 %v1208
        %v1465 = vunpack.c.l.b16 %v1209
        %v1466 = vunpack.c.l.b16 %v1210
        %v1467 = vunpack.c.l.b16 %v1211
        %v1468 = vunpack.c.l.b16 %v1212
        %v1469 = vunpack.c.l.b16 %v1213
        %v1470 = vunpack.c.l.b16 %v1214
        %v1471 = vunpack.c.l.b16 %v1215
        %v1472 = vunpack.c.l.b16 %v1216
        %v1473 = vunpack.c.l.b16 %v1217
        %v1474 = vunpack.c.l.b16 %v1218
        %v1475 = vunpack.c.l.b16 %v1219
        %v1476 = vunpack.c.l.b16 %v1220
        %v1477 = vunpack.c.l.b16 %v1221
        %v1478 = vunpack.c.l.b16 %v1222
        %v1479 = vunpack.c.l.b16 %v1223
        %v1480 = vunpack.c.l.b16 %v1224
        %v1481 = vunpack.c.l.b16 %v1225
        %v1482 = vunpack.c.l.b16 %v1226
        %v1483 = vunpack.c.l.b16 %v1227
        %v1484 = vunpack.c.l.b16 %v1228
        %v1485 = vunpack.c.l.b16 %v1229
        %v1486 = vunpack.c.l.b16 %v1230
        %v1487 = vunpack.c.l.b16 %v1231
        %v1488 = vunpack.c.l.b16 %v1232
        %v1489 = vunpack.c.l.b16 %v1233
        %v1490 = vunpack.c.l.b16 %v1234
        %v1491 = vunpack.c.l.b16 %v1235
        %v1492 = vunpack.c.l.b16 %v1236
        %v1493 = vunpack.c.l.b16 %v1237
        %v1494 = vunpack.c.l.b16 %v1238
        %v1495 = vunpack.c.l.b16 %v1239
        %v1496 = vunpack.c.l.b16 %v1240
        %v1497 = vunpack.c.l.b16 %v1241
        %v1498 = vunpack.c.l.b16 %v1242
        %v1499 = vunpack.c.l.b16 %v1243
        %v1500 = vunpack.c.l.b16 %v1244
        %v1501 = vunpack.c.l.b16 %v1245
        %v1502 = vunpack.c.l.b16 %v1246
        %v1503 = vunpack.c.l.b16 %v1247
        %v1504 = vunpack.c.l.b16 %v1248
        %v1505 = vunpack.c.l.b16 %v1249
        %v1506 = vunpack.c.l.b16 %v1250
        %v1507 = vunpack.c.l.b16 %v1251
        %v1508 = vunpack.c.l.b16 %v1252
        %v1509 = vunpack.c.l.b16 %v1253
        %v1510 = vunpack.c.l.b16 %v1254
        %v1511 = vunpack.c.l.b16 %v1255
        %v1512 = vunpack.c.l.b16 %v1256
        %v1513 = vunpack.c.l.b16 %v1257
        %v1514 = vunpack.c.l.b16 %v1258
        %v1515 = vunpack.c.l.b16 %v1259
        %v1516 = vunpack.c.l.b16 %v1260
        %v1517 = vunpack.c.l.b16 %v1261
        %v1518 = vunpack.c.l.b16 %v1262
        %v1519 = vunpack.c.l.b16 %v1263
        %v1520 = vunpack.c.l.b16 %v1264
        %v1521 = vunpack.c.l.b16 %v1265
        %v1522 = vunpack.c.l.b16 %v1266
        %v1523 = vunpack.c.l.b16 %v1267
        %v1524 = vunpack.c.l.b16 %v1268
        %v1525 = vunpack.c.l.b16 %v1269
        %v1526 = vunpack.c.l.b16 %v1270
        %v1527 = vunpack.c.l.b16 %v1271
        %v1528 = vunpack.c.l.b16 %v1272
        %v1529 = vunpack.c.l.b16 %v1273
        %v1530 = vunpack.c.l.b16 %v1274
        %v1531 = vunpack.c.l.b16 %v1275
        %v1532 = vunpack.c.l.b16 %v1276
        %v1533 = vunpack.c.l.b16 %v1277
        %v1534 = vunpack.c.l.b16 %v1278
        %v1535 = vunpack.c.l.b16 %v1279
        %v1536 = vunpack.c.l.b16 %v1280
        %v1537 = vunpack.c.l.b16 %v1281
        %v1538 = vunpack.c.l.b16 %v1282
        %v1539 = vunpack.c.l.b16 %v1283
        %v1540 = vunpack.c.l.b16 %v1284
        %v1541 = vunpack.c.l.b16 %v1285
        %v1542 = vunpack.c.l.b16 %v1286
        %v1543 = vunpack.c.l.b16 %v1287
        %v1544 = vunpack.c.l.b16 %v1288
        %v1545 = vunpack.c.l.b16 %v1289
        %v1546 = vunpack.c.l.b16 %v1290
        %v1547 = vunpack.c.l.b16 %v1291
        %v1548 = vunpack.c.l.b16 %v1292
        %v1549 = vunpack.c.l.b16 %v1293
        %v1550 = vunpack.c.l.b16 %v1294
        %v1551 = vunpack.c.l.b16 %v1295
        %v1552 = vunpack.c.l.b16 %v1296
        %v1553 = vunpack.c.l.b16 %v1297
        %v1554 = vunpack.c.l.b16 %v1298
        %v1555 = vunpack.c.l.b16 %v1299
        %v1556 = vunpack.c.l.b16 %v1300
        %v1557 = vunpack.c.l.b16 %v1301
        %v1558 = vunpack.c.l.b16 %v1302
        %v1559 = vunpack.c.l.b16 %v1303
        %v1560 = vunpack.c.l.b16 %v1304
        %v1561 = vpack.c.b16 %v1434, %v1433
        %v1562 = vpack.c.b16 %v1436, %v1435
        %v1563 = vpack.c.b16 %v1438, %v1437
        %v1564 = vpack.c.b16 %v1440, %v1439
        %v1565 = vpack.c.b16 %v1442, %v1441
        %v1566 = vpack.c.b16 %v1444, %v1443
        %v1567 = vpack.c.b16 %v1446, %v1445
        %v1568 = vpack.c.b16 %v1448, %v1447
        %v1569 = vpack.c.b16 %v1450, %v1449
        %v1570 = vpack.c.b16 %v1452, %v1451
        %v1571 = vpack.c.b16 %v1454, %v1453
        %v1572 = vpack.c.b16 %v1456, %v1455
        %v1573 = vpack.c.b16 %v1458, %v1457
        %v1574 = vpack.c.b16 %v1460, %v1459
        %v1575 = vpack.c.b16 %v1462, %v1461
        %v1576 = vpack.c.b16 %v1464, %v1463
        %v1577 = vpack.c.b16 %v1466, %v1465
        %v1578 = vpack.c.b16 %v1468, %v1467
        %v1579 = vpack.c.b16 %v1470, %v1469
        %v1580 = vpack.c.b16 %v1472, %v1471
        %v1581 = vpack.c.b16 %v1474, %v1473
        %v1582 = vpack.c.b16 %v1476, %v1475
        %v1583 = vpack.c.b16 %v1478, %v1477
        %v1584 = vpack.c.b16 %v1480, %v1479
        %v1585 = vpack.c.b16 %v1482, %v1481
        %v1586 = vpack.c.b16 %v1484, %v1483
        %v1587 = vpack.c.b16 %v1486, %v1485
        %v1588 = vpack.c.b16 %v1488, %v1487
        %v1589 = vpack.c.b16 %v1490, %v1489
        %v1590 = vpack.c.b16 %v1492, %v1491
        %v1591 = vpack.c.b16 %v1494, %v1493
        %v1592 = vpack.c.b16 %v1496, %v1495
        %v1593 = vpack.c.b16 %v1498, %v1497
        %v1594 = vpack.c.b16 %v1500, %v1499
        %v1595 = vpack.c.b16 %v1502, %v1501
        %v1596 = vpack.c.b16 %v1504, %v1503
        %v1597 = vpack.c.b16 %v1506, %v1505
        %v1598 = vpack.c.b16 %v1508, %v1507
        %v1599 = vpack.c.b16 %v1510, %v1509
        %v1600 = vpack.c.b16 %v1512, %v1511
        %v1601 = vpack.c.b16 %v1514, %v1513
        %v1602 = vpack.c.b16 %v1516, %v1515
        %v1603 = vpack.c.b16 %v1518, %v1517
        %v1604 = vpack.c.b16 %v1520, %v1519
        %v1605 = vpack.c.b16 %v1522, %v1521
        %v1606 = vpack.c.b16 %v1524, %v1523
        %v1607 = vpack.c.b16 %v1526, %v1525
        %v1608 = vpack.c.b16 %v1528, %v1527
        %v1609 = vpack.c.b16 %v1530, %v1529
        %v1610 = vpack.c.b16 %v1532, %v1531
        %v1611 = vpack.c.b16 %v1534, %v1533
        %v1612 = vpack.c.b16 %v1536, %v1535
        %v1613 = vpack.c.b16 %v1538, %v1537
        %v1614 = vpack.c.b16 %v1540, %v1539
        %v1615 = vpack.c.b16 %v1542, %v1541
        %v1616 = vpack.c.b16 %v1544, %v1543
        %v1617 = vpack.c.b16 %v1546, %v1545
        %v1618 = vpack.c.b16 %v1548, %v1547
        %v1619 = vpack.c.b16 %v1550, %v1549
        %v1620 = vpack.c.b16 %v1552, %v1551
        %v1621 = vpack.c.b16 %v1554, %v1553
        %v1622 = vpack.c.b16 %v1556, %v1555
        %v1623 = vpack.c.b16 %v1558, %v1557
        %v1624 = vpack.c.b16 %v1560, %v1559
        %1689 = vmatprep.subr.bf16.mxu0 0
        %1690 = vmatpush1.bf16.msra.mxu0 %v1561
        %1691 = vmatprep.subr.bf16.mxu0 0
        %1692 = vmatpush1.bf16.msra.mxu0 %v1562
        %1693 = vmatprep.subr.bf16.mxu0 0
        %1694 = vmatpush1.bf16.msra.mxu0 %v1563
        %1695 = vmatprep.subr.bf16.mxu0 0
        %1696 = vmatpush1.bf16.msra.mxu0 %v1564
        %1697 = vmatprep.subr.bf16.mxu0 0
        %1698 = vmatpush1.bf16.msra.mxu0 %v1565
        %1699 = vmatprep.subr.bf16.mxu0 0
        %1700 = vmatpush1.bf16.msra.mxu0 %v1566
        %1701 = vmatprep.subr.bf16.mxu0 0
        %1702 = vmatpush1.bf16.msra.mxu0 %v1567
        %1703 = vmatprep.subr.bf16.mxu0 0
        %1704 = vmatpush1.bf16.msra.mxu0 %v1568
        %1705 = vmatprep.subr.bf16.mxu0 0
        %1706 = vmatpush1.bf16.msra.mxu0 %v1569
        %1707 = vmatprep.subr.bf16.mxu0 0
        %1708 = vmatpush1.bf16.msra.mxu0 %v1570
        %1709 = vmatprep.subr.bf16.mxu0 0
        %1710 = vmatpush1.bf16.msra.mxu0 %v1571
        %1711 = vmatprep.subr.bf16.mxu0 0
        %1712 = vmatpush1.bf16.msra.mxu0 %v1572
        %1713 = vmatprep.subr.bf16.mxu0 0
        %1714 = vmatpush1.bf16.msra.mxu0 %v1573
        %1715 = vmatprep.subr.bf16.mxu0 0
        %1716 = vmatpush1.bf16.msra.mxu0 %v1574
        %1717 = vmatprep.subr.bf16.mxu0 0
        %1718 = vmatpush1.bf16.msra.mxu0 %v1575
        %1719 = vmatprep.subr.bf16.mxu0 0
        %1720 = vmatpush1.bf16.msra.mxu0 %v1576
        %1721 = vmatprep.mubr.bf16.mxu0 %v1170
        %1722 = vmatmul.mubr.bf16.gmra.mrb[0].mxu0 %v1169
        %v1723 = vpop.f32.mrb[0].mxu0
        %v1724 = vadd.f32 0.0, %v1723
        %v1725 = vpop.f32.mrb[0].mxu0
        %v1726 = vpop.f32.mrb[0].mxu0
        %v1727 = vpop.f32.mrb[0].mxu0
        %1728 = vdwg.mxu0
        %1729 = vmatprep.subr.bf16.mxu0 0
        %1730 = vmatpush1.bf16.msra.mxu0 %v1577
        %1731 = vmatprep.subr.bf16.mxu0 0
        %1732 = vmatpush1.bf16.msra.mxu0 %v1578
        %1733 = vmatprep.subr.bf16.mxu0 0
        %1734 = vmatpush1.bf16.msra.mxu0 %v1579
        %1735 = vmatprep.subr.bf16.mxu0 0
        %1736 = vmatpush1.bf16.msra.mxu0 %v1580
        %1737 = vmatprep.subr.bf16.mxu0 0
        %1738 = vmatpush1.bf16.msra.mxu0 %v1581
        %1739 = vmatprep.subr.bf16.mxu0 0
        %1740 = vmatpush1.bf16.msra.mxu0 %v1582
        %1741 = vmatprep.subr.bf16.mxu0 0
        %1742 = vmatpush1.bf16.msra.mxu0 %v1583
        %1743 = vmatprep.subr.bf16.mxu0 0
        %1744 = vmatpush1.bf16.msra.mxu0 %v1584
        %1745 = vmatprep.subr.bf16.mxu0 0
        %1746 = vmatpush1.bf16.msra.mxu0 %v1585
        %1747 = vmatprep.subr.bf16.mxu0 0
        %1748 = vmatpush1.bf16.msra.mxu0 %v1586
        %1749 = vmatprep.subr.bf16.mxu0 0
        %1750 = vmatpush1.bf16.msra.mxu0 %v1587
        %1751 = vmatprep.subr.bf16.mxu0 0
        %1752 = vmatpush1.bf16.msra.mxu0 %v1588
        %1753 = vmatprep.subr.bf16.mxu0 0
        %1754 = vmatpush1.bf16.msra.mxu0 %v1589
        %1755 = vmatprep.subr.bf16.mxu0 0
        %1756 = vmatpush1.bf16.msra.mxu0 %v1590
        %1757 = vmatprep.subr.bf16.mxu0 0
        %1758 = vmatpush1.bf16.msra.mxu0 %v1591
        %1759 = vmatprep.subr.bf16.mxu0 0
        %1760 = vmatpush1.bf16.msra.mxu0 %v1592
        %1761 = vmatprep.mubr.bf16.mxu0 %v1172
        %1762 = vmatmul.mubr.bf16.gmra.mrb[0].mxu0 %v1171
        %v1763 = vpop.f32.mrb[0].mxu0
        %v1764 = vadd.f32 %v1724, %v1763
        %v1765 = vpop.f32.mrb[0].mxu0
        %v1766 = vpop.f32.mrb[0].mxu0
        %v1767 = vpop.f32.mrb[0].mxu0
        %1768 = vdwg.mxu0
        %1769 = vmatprep.subr.bf16.mxu0 0
        %1770 = vmatpush1.bf16.msra.mxu0 %v1593
        %1771 = vmatprep.subr.bf16.mxu0 0
        %1772 = vmatpush1.bf16.msra.mxu0 %v1594
        %1773 = vmatprep.subr.bf16.mxu0 0
        %1774 = vmatpush1.bf16.msra.mxu0 %v1595
        %1775 = vmatprep.subr.bf16.mxu0 0
        %1776 = vmatpush1.bf16.msra.mxu0 %v1596
        %1777 = vmatprep.subr.bf16.mxu0 0
        %1778 = vmatpush1.bf16.msra.mxu0 %v1597
        %1779 = vmatprep.subr.bf16.mxu0 0
        %1780 = vmatpush1.bf16.msra.mxu0 %v1598
        %1781 = vmatprep.subr.bf16.mxu0 0
        %1782 = vmatpush1.bf16.msra.mxu0 %v1599
        %1783 = vmatprep.subr.bf16.mxu0 0
        %1784 = vmatpush1.bf16.msra.mxu0 %v1600
        %1785 = vmatprep.subr.bf16.mxu0 0
        %1786 = vmatpush1.bf16.msra.mxu0 %v1601
        %1787 = vmatprep.subr.bf16.mxu0 0
        %1788 = vmatpush1.bf16.msra.mxu0 %v1602
        %1789 = vmatprep.subr.bf16.mxu0 0
        %1790 = vmatpush1.bf16.msra.mxu0 %v1603
        %1791 = vmatprep.subr.bf16.mxu0 0
        %1792 = vmatpush1.bf16.msra.mxu0 %v1604
        %1793 = vmatprep.subr.bf16.mxu0 0
        %1794 = vmatpush1.bf16.msra.mxu0 %v1605
        %1795 = vmatprep.subr.bf16.mxu0 0
        %1796 = vmatpush1.bf16.msra.mxu0 %v1606
        %1797 = vmatprep.subr.bf16.mxu0 0
        %1798 = vmatpush1.bf16.msra.mxu0 %v1607
        %1799 = vmatprep.subr.bf16.mxu0 0
        %1800 = vmatpush1.bf16.msra.mxu0 %v1608
        %1801 = vmatprep.mubr.bf16.mxu0 %v1174
        %1802 = vmatmul.mubr.bf16.gmra.mrb[0].mxu0 %v1173
        %v1803 = vpop.f32.mrb[0].mxu0
        %v1804 = vadd.f32 %v1764, %v1803
        %v1805 = vpop.f32.mrb[0].mxu0
        %v1806 = vpop.f32.mrb[0].mxu0
        %v1807 = vpop.f32.mrb[0].mxu0
        %1808 = vdwg.mxu0
        %1809 = vmatprep.subr.bf16.mxu0 0
        %1810 = vmatpush1.bf16.msra.mxu0 %v1609
        %1811 = vmatprep.subr.bf16.mxu0 0
        %1812 = vmatpush1.bf16.msra.mxu0 %v1610
        %1813 = vmatprep.subr.bf16.mxu0 0
        %1814 = vmatpush1.bf16.msra.mxu0 %v1611
        %1815 = vmatprep.subr.bf16.mxu0 0
        %1816 = vmatpush1.bf16.msra.mxu0 %v1612
        %1817 = vmatprep.subr.bf16.mxu0 0
        %1818 = vmatpush1.bf16.msra.mxu0 %v1613
        %1819 = vmatprep.subr.bf16.mxu0 0
        %1820 = vmatpush1.bf16.msra.mxu0 %v1614
        %1821 = vmatprep.subr.bf16.mxu0 0
        %1822 = vmatpush1.bf16.msra.mxu0 %v1615
        %1823 = vmatprep.subr.bf16.mxu0 0
        %1824 = vmatpush1.bf16.msra.mxu0 %v1616
        %1825 = vmatprep.subr.bf16.mxu0 0
        %1826 = vmatpush1.bf16.msra.mxu0 %v1617
        %1827 = vmatprep.subr.bf16.mxu0 0
        %1828 = vmatpush1.bf16.msra.mxu0 %v1618
        %1829 = vmatprep.subr.bf16.mxu0 0
        %1830 = vmatpush1.bf16.msra.mxu0 %v1619
        %1831 = vmatprep.subr.bf16.mxu0 0
        %1832 = vmatpush1.bf16.msra.mxu0 %v1620
        %1833 = vmatprep.subr.bf16.mxu0 0
        %1834 = vmatpush1.bf16.msra.mxu0 %v1621
        %1835 = vmatprep.subr.bf16.mxu0 0
        %1836 = vmatpush1.bf16.msra.mxu0 %v1622
        %1837 = vmatprep.subr.bf16.mxu0 0
        %1838 = vmatpush1.bf16.msra.mxu0 %v1623
        %1839 = vmatprep.subr.bf16.mxu0 0
        %1840 = vmatpush1.bf16.msra.mxu0 %v1624
        %1841 = vmatprep.mubr.bf16.mxu0 %v1176
        %1842 = vmatmul.mubr.bf16.gmra.mrb[0].mxu0 %v1175
        %v1843 = vpop.f32.mrb[0].mxu0
        %v1844 = vadd.f32 %v1804, %v1843
        %v1845 = vpop.f32.mrb[0].mxu0
        %v1846 = vpop.f32.mrb[0].mxu0
        %v1847 = vpop.f32.mrb[0].mxu0
        %1848 = vdwg.mxu0
        %1849 = vst.msk [vmem:[%s212] sm:$0xff] %vm445, %v1844
        %s1850 = sand.u32 %s131, 1
        %s1851 = scalar_lea.sflag [#allocation4], %s1850
        %s1852 = sand.u32 %s131, 1
        %s1853 = smul.addr %s1852, 8
        %s1854 = scalar_lea.vmem [#allocation3], %s1853
        // Predicated region
        $region41: #{tpu_custom_call.1} parent=35 // pred_check
          %p1855 = pneg %p141
        $region42: #{tpu_custom_call.1} parent=35 // pred_check_branch
          %1857 = sbr.rel (%p1855) target = $region44
        $region43: #{tpu_custom_call.1} parent=35 // pred_region
          %s1859 = ssub.s32 128, 128
          %1860 = vsyncadd %s1851, %s1859
          %s1861 = smul.addr %s22, 2
          %s1862 = sadd.s32 %s23, %s1861
          %s1863 = smul.addr %s1862, 128
          %s1864 = scalar_lea.hbm %s4, %s1863
          %s1866 = sshll.u32 %s1854, 4
          %s1867 = int_to_ptr.vmem [resolvable:$true] %s1866
          %1869 = dma.vmem_to_hbm [thread:$0]  %s1867, 128, %s1864, %s1851
        $region44: #{tpu_custom_call.1} parent=35 // pred_fallthru
          _
      $region36: #{tpu_custom_call.1} parent=5 // pred_fallthru
        _
      %p1870 = scmp.le.s32.totalorder 2, %s13
      // Predicated region
      $region45: #{tpu_custom_call.1} parent=5 // pred_check
        %p1871 = pneg %p1870
      $region46: #{tpu_custom_call.1} parent=5 // pred_check_branch
        %1873 = sbr.rel (%p1871) target = $region48
      $region47: #{tpu_custom_call.1} parent=5 // pred_region
        %s1874 = ssub.s32 %s13, 2
        // Predicated region
        $region49: #{tpu_custom_call.1} parent=47 // pred_check
          %p1875 = pneg %p147
        $region50: #{tpu_custom_call.1} parent=47 // pred_check_branch
          %1877 = sbr.rel (%p1875) target = $region52
        $region51: #{tpu_custom_call.1} parent=47 // pred_region
          %s1878 = sand.u32 %s132, 1
          %s1879 = scalar_lea.sflag [#allocation4], %s1878
          %s1880 = sand.u32 %s132, 1
          %s1881 = smul.addr %s1880, 8
          %s1882 = scalar_lea.vmem [#allocation3], %s1881
          %1883 = dma.done %s1879, 128
        $region52: #{tpu_custom_call.1} parent=47 // pred_fallthru
          _
      $region48: #{tpu_custom_call.1} parent=5 // pred_fallthru
        _
    $region6: #{tpu_custom_call.1} parent=1 // loop_footer
      %s17 = sadd.s32 1, %s13
    $region7: #{tpu_custom_call.1} parent=1 // loop_footer_branch
      %12 = sbr.rel target = $region3
    $region8: #{tpu_custom_call.1} parent=1 // loop_exit
      _
    %1884 = vsyncpa [#allocation4], 1
    %s1885 = scalar_lea.sflag [#allocation4], 1
    %1886 = vsyncpa %s1885, 1

</llo_original>
